<compile_context>
chip_gen: v7x
topology: tpu7x:2x2x1
jax: 0.10.0
libtpu: 0.0.40
codegen_flags: <defaults>
</compile_context>

<pallas_src>
import functools

import numpy as np
import jax
import jax.numpy as jnp
from jax.experimental import pallas as pl
from jax.experimental.pallas import tpu as pltpu

# ---- scaled-down module hyper-parameters (shapes implied by DeepONetMulti) ----
INPUT_DIM = 2                 # trunk input dim (coordinates y)
BRANCH_IN = 3                 # branch input dim (u reshaped to (..., 3))
PLANES = [32, 64, 128]        # planes_branch == planes_trunk (scaled-down from [128,256,512])
OUTPUT_DIM = 2                # number of trunks / output channels
HID = PLANES[-1]              # final hidden width shared by branch and trunks

# erf rational approximation constants (Abramowitz & Stegun 7.1.25, |err| <= 2.5e-5)
_ERF_P = 0.47047
_ERF_A1 = 0.3480242
_ERF_A2 = -0.0958798
_ERF_A3 = 0.7478556
_INV_SQRT2 = 0.7071067811865476


def _gelu_exact(x):
    # torch nn.GELU() default (erf form) -- used by the plain-JAX reference.
    return jax.nn.gelu(x, approximate=False)


def _gelu_erf_kernel(x):
    """Exact-form GELU for the kernel: 0.5*x*(1+erf(x/sqrt(2))).

    erf via a rational approximation using only exp/abs/mul/add/div/select, so it
    lowers cleanly in Mosaic; its 2.5e-5 error is far below the bf16 matmul noise.
    """
    z = x * _INV_SQRT2
    a = jnp.abs(z)
    t = 1.0 / (1.0 + _ERF_P * a)
    poly = ((_ERF_A3 * t + _ERF_A2) * t + _ERF_A1) * t
    e = poly * jnp.exp(-a * a)
    erf = jnp.where(z >= 0.0, 1.0 - e, e - 1.0)
    return 0.5 * x * (1.0 + erf)


# ----------------------------- Pallas kernel ----------------------------------
def deeponet_kernel(x_ref, w1_ref, b1_ref, w2_ref, b2_ref, w3_ref, b3_ref,
                    sel_ref, out_ref):
    """One lane-tile of the fused DeepONet (feature-major layout).

    x_ref   : (BRANCH_IN+INPUT_DIM, tile) f32   -- [u | y] rows, feature-major
    w*_ref  : fused block-diagonal weights, transposed, bf16
    b*_ref  : fused biases as column vectors, f32
    sel_ref : (OUTPUT_DIM, HID*OUTPUT_DIM) f32  -- per-channel feature reducer
    out_ref : (OUTPUT_DIM, tile) f32            -- lane-dense output block
    """
    x = x_ref[...].astype(jnp.bfloat16)

    # layer 1: branch + all trunks in one block-diagonal matmul (bf16 MXU, f32 acc)
    h = jnp.dot(w1_ref[...], x, preferred_element_type=jnp.float32) + b1_ref[...]
    h = _gelu_erf_kernel(h).astype(jnp.bfloat16)
    # layer 2
    h = jnp.dot(w2_ref[...], h, preferred_element_type=jnp.float32) + b2_ref[...]
    h = _gelu_erf_kernel(h).astype(jnp.bfloat16)
    # layer 3 (no activation)
    h3 = jnp.dot(w3_ref[...], h, preferred_element_type=jnp.float32) + b3_ref[...]

    # rows [0:HID] = branch output B, rows [HID:HID*(1+K)] = trunk outputs T_k
    tile = h3.shape[-1]
    b = h3[:HID, :]                                        # (HID, tile) f32
    t = h3[HID:, :].reshape(OUTPUT_DIM, HID, tile)         # layout-preserving (HID=128)
    prod = (t * b[None]).reshape(OUTPUT_DIM * HID, tile)   # broadcast, no concat copy

    # per-channel reduction sum_j B_j * T_kj on the MXU via the selector matrix;
    # kept in f32 (MXU has huge slack at this size, avoids an extra cast pass).
    out_ref[...] = jnp.dot(sel_ref[...], prod, preferred_element_type=jnp.float32)


# ------------------------- parameter fusion (hoisted) ---------------------------
def fuse_params(params):
    """Block-diagonal fuse branch + trunks, transpose feature-major, cast to bf16.

    Built ONCE with numpy outside the jitted per-call path (review item: per-call
    device scatters/casts were a visible fraction of end-to-end latency).
    """
    K = OUTPUT_DIM
    d1, d2, d3 = PLANES
    p = {k: np.asarray(v, np.float32) for k, v in params.items()}

    W1 = np.zeros((BRANCH_IN + INPUT_DIM, d1 * (1 + K)), np.float32)
    W2 = np.zeros((d1 * (1 + K), d2 * (1 + K)), np.float32)
    W3 = np.zeros((d2 * (1 + K), d3 * (1 + K)), np.float32)
    b1 = np.zeros((d1 * (1 + K),), np.float32)
    b2 = np.zeros((d2 * (1 + K),), np.float32)
    b3 = np.zeros((d3 * (1 + K),), np.float32)

    W1[:BRANCH_IN, :d1] = p["wb1"]; b1[:d1] = p["bb1"][0]
    W2[:d1, :d2] = p["wb2"];        b2[:d2] = p["bb2"][0]
    W3[:d2, :d3] = p["wb3"];        b3[:d3] = p["bb3"][0]
    for k in range(K):
        W1[BRANCH_IN:, d1 * (1 + k):d1 * (2 + k)] = p["wt1"][k]
        b1[d1 * (1 + k):d1 * (2 + k)] = p["bt1"][k, 0]
        W2[d1 * (1 + k):d1 * (2 + k), d2 * (1 + k):d2 * (2 + k)] = p["wt2"][k]
        b2[d2 * (1 + k):d2 * (2 + k)] = p["bt2"][k, 0]
        W3[d2 * (1 + k):d2 * (2 + k), d3 * (1 + k):d3 * (2 + k)] = p["wt3"][k]
        b3[d3 * (1 + k):d3 * (2 + k)] = p["bt3"][k, 0]

    # block selector: sums each trunk's HID features on the MXU
    sel = np.zeros((K, d3 * K), np.float32)
    for k in range(K):
        sel[k, d3 * k:d3 * (k + 1)] = 1.0

    return dict(
        w1=jnp.asarray(W1.T, jnp.bfloat16), b1=jnp.asarray(b1[:, None], jnp.float32),
        w2=jnp.asarray(W2.T, jnp.bfloat16), b2=jnp.asarray(b2[:, None], jnp.float32),
        w3=jnp.asarray(W3.T, jnp.bfloat16), b3=jnp.asarray(b3[:, None], jnp.float32),
        sel=jnp.asarray(sel, jnp.float32),
    )


def _choose_tile(rows, max_tile):
    """Fattest lane tile up to max_tile while keeping >= 2 grid steps (so the
    'parallel' grid axis feeds both v7x TensorCores); multiple of 128 lanes."""
    half = -(-rows // 2)                 # ceil(rows / 2)
    half = -(-half // 128) * 128         # round up to lane multiple
    return int(max(128, min(max_tile, half)))


# ------------------------------ JAX wrapper ------------------------------------
def deeponet_forward(u_vars, y_var, fused, *, max_tile=2048):
    """Reproduces DeepONetMulti.forward(u_vars, y_var, size_set=True)."""
    batch = u_vars.shape[0]
    n_pts = y_var.shape[1]
    rows = batch * n_pts
    assert u_vars.reshape(batch, -1, BRANCH_IN).shape[1] == n_pts
    assert y_var.shape == (batch, n_pts, INPUT_DIM)

    tile = _choose_tile(rows, max_tile)
    n_tiles = pl.cdiv(rows, tile)
    rows_pad = n_tiles * tile

    # Feature-major input built directly (per-tensor transposes, no (rows, 5)
    # intermediate + HBM relayout). Zero-padded tail columns only carry
    # bias-driven junk through the MLP; they are sliced off below and the selector
    # never aggregates across columns.
    x_t = jnp.concatenate(
        [u_vars.reshape(rows, BRANCH_IN).T.astype(jnp.float32),
         y_var.reshape(rows, INPUT_DIM).T.astype(jnp.float32)], axis=0)
    x_t = jnp.pad(x_t, ((0, 0), (0, rows_pad - rows)))

    weights = [fused["w1"], fused["b1"], fused["w2"], fused["b2"],
               fused["w3"], fused["b3"], fused["sel"]]

    out_t = pl.pallas_call(
        deeponet_kernel,
        out_shape=jax.ShapeDtypeStruct((OUTPUT_DIM, rows_pad), jnp.float32),
        grid=(n_tiles,),
        in_specs=[pl.BlockSpec((BRANCH_IN + INPUT_DIM, tile), lambda i: (0, i))]
                 + [pl.BlockSpec(w.shape, lambda i: (0, 0)) for w in weights],
        out_specs=pl.BlockSpec((OUTPUT_DIM, tile), lambda i: (0, i)),
        compiler_params=pltpu.CompilerParams(
            dimension_semantics=("parallel",),
            # lifts v5e's 16 MB scoped default for fat tiles, and stays within the
            # <=40-48 MB guidance for v7x's 64 MiB physical VMEM per TensorCore.
            vmem_limit_bytes=48 * 1024 * 1024),
    )(x_t, *weights)

    # Final transpose only to match the torch (batch, n_pts, output_dim) layout;
    # drop it if the consumer can take (OUTPUT_DIM, rows) directly.
    return out_t[:, :rows].T.reshape(batch, n_pts, OUTPUT_DIM)


# ---------------- deterministic parameter construction ----------------
def _xavier_uniform(key, fan_in, fan_out):
    limit = (6.0 / (fan_in + fan_out)) ** 0.5
    return jax.random.uniform(key, (fan_in, fan_out), jnp.float32, -limit, limit)


def init_params(key):
    branch_planes = [BRANCH_IN] + PLANES              # [3, 32, 64, 128]
    trunk_planes = [INPUT_DIM] + PLANES               # [2, 32, 64, 128]
    keys = jax.random.split(key, 3 + 3 * OUTPUT_DIM)
    p = {}
    for li in range(3):                               # branch MLP, zero biases
        fi, fo = branch_planes[li], branch_planes[li + 1]
        p[f"wb{li+1}"] = _xavier_uniform(keys[li], fi, fo)
        p[f"bb{li+1}"] = jnp.zeros((1, fo), jnp.float32)
    for li in range(3):                               # trunk MLPs, stacked over OUTPUT_DIM
        fi, fo = trunk_planes[li], trunk_planes[li + 1]
        ws = [_xavier_uniform(keys[3 + k * 3 + li], fi, fo) for k in range(OUTPUT_DIM)]
        p[f"wt{li+1}"] = jnp.stack(ws, axis=0)
        p[f"bt{li+1}"] = jnp.zeros((OUTPUT_DIM, 1, fo), jnp.float32)
    return p


def reference_forward(u_vars, y_var, params):
    """Plain-JAX f32 reference mirroring the PyTorch forward (size_set=True)."""
    batch = u_vars.shape[0]
    u = u_vars.reshape(batch, -1, BRANCH_IN)
    b = _gelu_exact(u @ params["wb1"] + params["bb1"][0])
    b = _gelu_exact(b @ params["wb2"] + params["bb2"][0])
    b = b @ params["wb3"] + params["bb3"][0]
    outs = []
    for k in range(OUTPUT_DIM):
        t = _gelu_exact(y_var @ params["wt1"][k] + params["bt1"][k, 0])
        t = _gelu_exact(t @ params["wt2"][k] + params["bt2"][k, 0])
        t = t @ params["wt3"][k] + params["bt3"][k, 0]
        outs.append(jnp.sum(b * t, axis=-1))
    return jnp.stack(outs, axis=-1)


if __name__ == "__main__":
    key = jax.random.PRNGKey(0)
    k_u, k_y, k_p = jax.random.split(key, 3)

    batch, n_pts = 2, 384                 # rows = 768 -> tile 384, 2 grid steps, no padding
    u_vars = jax.random.normal(k_u, (batch, n_pts * BRANCH_IN), jnp.float32)   # (2, 1152)
    y_var = jax.random.normal(k_y, (batch, n_pts, INPUT_DIM), jnp.float32)     # (2, 384, 2)
    params = init_params(k_p)

    fused = fuse_params(params)           # hoisted: built once, reused every call

    fwd = jax.jit(functools.partial(deeponet_forward, max_tile=2048))
    out = jax.block_until_ready(fwd(u_vars, y_var, fused))
    assert out.shape == (batch, n_pts, OUTPUT_DIM)

    ref = jax.block_until_ready(reference_forward(u_vars, y_var, params))
    max_err = float(jnp.max(jnp.abs(out - ref)))
    assert jnp.allclose(out, ref, rtol=2e-2, atol=5e-2), (
        f"mismatch vs plain-JAX reference, max_abs_err={max_err}")

    print("KERNEL_OK")
</pallas_src>

<mosaic_0001>
module attributes {stable_mosaic.version = 11 : i64} {
  func.func @deeponet_kernel(%arg0: i32, %arg1: memref<5x384xf32, #tpu.memory_space<vmem>>, %arg2: memref<96x5xbf16, #tpu.memory_space<vmem>>, %arg3: memref<96x1xf32, #tpu.memory_space<vmem>>, %arg4: memref<192x96xbf16, #tpu.memory_space<vmem>>, %arg5: memref<192x1xf32, #tpu.memory_space<vmem>>, %arg6: memref<384x192xbf16, #tpu.memory_space<vmem>>, %arg7: memref<384x1xf32, #tpu.memory_space<vmem>>, %arg8: memref<2x256xf32, #tpu.memory_space<vmem>>, %arg9: memref<2x384xf32, #tpu.memory_space<vmem>>) attributes {dimension_semantics = [#tpu.dimension_semantics<parallel>], iteration_bounds = array<i64: 2>, scalar_prefetch = 0 : i64, scratch_operands = 0 : i64, tpu.core_type = #tpu.core_type<tc>, window_params = [{transform_indices = @transform_0, window_bounds = array<i64: 5, 384>}, {pipeline_mode = #tpu.pipeline_mode<synchronous>, transform_indices = @transform_1, window_bounds = array<i64: 96, 5>}, {pipeline_mode = #tpu.pipeline_mode<synchronous>, transform_indices = @transform_2, window_bounds = array<i64: 96, 1>}, {pipeline_mode = #tpu.pipeline_mode<synchronous>, transform_indices = @transform_3, window_bounds = array<i64: 192, 96>}, {pipeline_mode = #tpu.pipeline_mode<synchronous>, transform_indices = @transform_4, window_bounds = array<i64: 192, 1>}, {pipeline_mode = #tpu.pipeline_mode<synchronous>, transform_indices = @transform_5, window_bounds = array<i64: 384, 192>}, {pipeline_mode = #tpu.pipeline_mode<synchronous>, transform_indices = @transform_6, window_bounds = array<i64: 384, 1>}, {pipeline_mode = #tpu.pipeline_mode<synchronous>, transform_indices = @transform_7, window_bounds = array<i64: 2, 256>}, {transform_indices = @transform_8, window_bounds = array<i64: 2, 384>}]} {
    %c0 = arith.constant 0 : index
    %c0_0 = arith.constant 0 : index
    %0 = vector.load %arg1[%c0, %c0_0] : memref<5x384xf32, #tpu.memory_space<vmem>>, vector<5x384xf32>
    %1 = arith.truncf %0 : vector<5x384xf32> to vector<5x384xbf16>
    %c0_1 = arith.constant 0 : index
    %c0_2 = arith.constant 0 : index
    %2 = vector.load %arg2[%c0_1, %c0_2] : memref<96x5xbf16, #tpu.memory_space<vmem>>, vector<96x5xbf16>
    %cst = arith.constant dense<0.000000e+00> : vector<96x384xf32>
    %3 = tpu.matmul %2, %1, %cst {dimension_numbers = #tpu.dot_dimension_numbers<[1], [0], [0], [1], [0, 0, 1, 1], [], []>} : vector<96x5xbf16>, vector<5x384xbf16>, vector<96x384xf32> -> vector<96x384xf32>
    %c0_3 = arith.constant 0 : index
    %c0_4 = arith.constant 0 : index
    %4 = vector.load %arg3[%c0_3, %c0_4] : memref<96x1xf32, #tpu.memory_space<vmem>>, vector<96x1xf32>
    %5 = vector.broadcast %4 : vector<96x1xf32> to vector<96x384xf32>
    %6 = arith.addf %3, %5 : vector<96x384xf32>
    %cst_5 = arith.constant 0.707106769 : f32
    %7 = vector.broadcast %cst_5 : f32 to vector<96x384xf32>
    %8 = arith.mulf %6, %7 : vector<96x384xf32>
    %9 = math.absf %8 : vector<96x384xf32>
    %cst_6 = arith.constant 4.704700e-01 : f32
    %10 = vector.broadcast %cst_6 : f32 to vector<96x384xf32>
    %11 = arith.mulf %10, %9 : vector<96x384xf32>
    %cst_7 = arith.constant 1.000000e+00 : f32
    %12 = vector.broadcast %cst_7 : f32 to vector<96x384xf32>
    %13 = arith.addf %12, %11 : vector<96x384xf32>
    %cst_8 = arith.constant 1.000000e+00 : f32
    %14 = vector.broadcast %cst_8 : f32 to vector<96x384xf32>
    %15 = arith.divf %14, %13 : vector<96x384xf32>
    %cst_9 = arith.constant 0.747855603 : f32
    %16 = vector.broadcast %cst_9 : f32 to vector<96x384xf32>
    %17 = arith.mulf %16, %15 : vector<96x384xf32>
    %cst_10 = arith.constant -9.587980e-02 : f32
    %18 = vector.broadcast %cst_10 : f32 to vector<96x384xf32>
    %19 = arith.addf %17, %18 : vector<96x384xf32>
    %20 = arith.mulf %19, %15 : vector<96x384xf32>
    %cst_11 = arith.constant 0.348024189 : f32
    %21 = vector.broadcast %cst_11 : f32 to vector<96x384xf32>
    %22 = arith.addf %20, %21 : vector<96x384xf32>
    %23 = arith.mulf %22, %15 : vector<96x384xf32>
    %cst_12 = arith.constant 0.000000e+00 : f32
    %24 = vector.broadcast %cst_12 : f32 to vector<96x384xf32>
    %25 = arith.subf %24, %9 : vector<96x384xf32>
    %26 = arith.mulf %25, %9 : vector<96x384xf32>
    %27 = math.exp %26 : vector<96x384xf32>
    %28 = arith.mulf %23, %27 : vector<96x384xf32>
    %cst_13 = arith.constant 0.000000e+00 : f32
    %29 = vector.broadcast %cst_13 : f32 to vector<96x384xf32>
    %30 = arith.cmpf oge, %8, %29 : vector<96x384xf32>
    %cst_14 = arith.constant 1.000000e+00 : f32
    %31 = vector.broadcast %cst_14 : f32 to vector<96x384xf32>
    %32 = arith.subf %31, %28 : vector<96x384xf32>
    %cst_15 = arith.constant 1.000000e+00 : f32
    %33 = vector.broadcast %cst_15 : f32 to vector<96x384xf32>
    %34 = arith.subf %28, %33 : vector<96x384xf32>
    %35 = arith.select %30, %32, %34 : vector<96x384xi1>, vector<96x384xf32>
    %cst_16 = arith.constant 5.000000e-01 : f32
    %36 = vector.broadcast %cst_16 : f32 to vector<96x384xf32>
    %37 = arith.mulf %36, %6 : vector<96x384xf32>
    %cst_17 = arith.constant 1.000000e+00 : f32
    %38 = vector.broadcast %cst_17 : f32 to vector<96x384xf32>
    %39 = arith.addf %38, %35 : vector<96x384xf32>
    %40 = arith.mulf %37, %39 : vector<96x384xf32>
    %41 = arith.truncf %40 : vector<96x384xf32> to vector<96x384xbf16>
    %c0_18 = arith.constant 0 : index
    %c0_19 = arith.constant 0 : index
    %42 = vector.load %arg4[%c0_18, %c0_19] : memref<192x96xbf16, #tpu.memory_space<vmem>>, vector<192x96xbf16>
    %cst_20 = arith.constant dense<0.000000e+00> : vector<192x384xf32>
    %43 = tpu.matmul %42, %41, %cst_20 {dimension_numbers = #tpu.dot_dimension_numbers<[1], [0], [0], [1], [0, 0, 1, 1], [], []>} : vector<192x96xbf16>, vector<96x384xbf16>, vector<192x384xf32> -> vector<192x384xf32>
    %c0_21 = arith.constant 0 : index
    %c0_22 = arith.constant 0 : index
    %44 = vector.load %arg5[%c0_21, %c0_22] : memref<192x1xf32, #tpu.memory_space<vmem>>, vector<192x1xf32>
    %45 = vector.broadcast %44 : vector<192x1xf32> to vector<192x384xf32>
    %46 = arith.addf %43, %45 : vector<192x384xf32>
    %cst_23 = arith.constant 0.707106769 : f32
    %47 = vector.broadcast %cst_23 : f32 to vector<192x384xf32>
    %48 = arith.mulf %46, %47 : vector<192x384xf32>
    %49 = math.absf %48 : vector<192x384xf32>
    %cst_24 = arith.constant 4.704700e-01 : f32
    %50 = vector.broadcast %cst_24 : f32 to vector<192x384xf32>
    %51 = arith.mulf %50, %49 : vector<192x384xf32>
    %cst_25 = arith.constant 1.000000e+00 : f32
    %52 = vector.broadcast %cst_25 : f32 to vector<192x384xf32>
    %53 = arith.addf %52, %51 : vector<192x384xf32>
    %cst_26 = arith.constant 1.000000e+00 : f32
    %54 = vector.broadcast %cst_26 : f32 to vector<192x384xf32>
    %55 = arith.divf %54, %53 : vector<192x384xf32>
    %cst_27 = arith.constant 0.747855603 : f32
    %56 = vector.broadcast %cst_27 : f32 to vector<192x384xf32>
    %57 = arith.mulf %56, %55 : vector<192x384xf32>
    %cst_28 = arith.constant -9.587980e-02 : f32
    %58 = vector.broadcast %cst_28 : f32 to vector<192x384xf32>
    %59 = arith.addf %57, %58 : vector<192x384xf32>
    %60 = arith.mulf %59, %55 : vector<192x384xf32>
    %cst_29 = arith.constant 0.348024189 : f32
    %61 = vector.broadcast %cst_29 : f32 to vector<192x384xf32>
    %62 = arith.addf %60, %61 : vector<192x384xf32>
    %63 = arith.mulf %62, %55 : vector<192x384xf32>
    %cst_30 = arith.constant 0.000000e+00 : f32
    %64 = vector.broadcast %cst_30 : f32 to vector<192x384xf32>
    %65 = arith.subf %64, %49 : vector<192x384xf32>
    %66 = arith.mulf %65, %49 : vector<192x384xf32>
    %67 = math.exp %66 : vector<192x384xf32>
    %68 = arith.mulf %63, %67 : vector<192x384xf32>
    %cst_31 = arith.constant 0.000000e+00 : f32
    %69 = vector.broadcast %cst_31 : f32 to vector<192x384xf32>
    %70 = arith.cmpf oge, %48, %69 : vector<192x384xf32>
    %cst_32 = arith.constant 1.000000e+00 : f32
    %71 = vector.broadcast %cst_32 : f32 to vector<192x384xf32>
    %72 = arith.subf %71, %68 : vector<192x384xf32>
    %cst_33 = arith.constant 1.000000e+00 : f32
    %73 = vector.broadcast %cst_33 : f32 to vector<192x384xf32>
    %74 = arith.subf %68, %73 : vector<192x384xf32>
    %75 = arith.select %70, %72, %74 : vector<192x384xi1>, vector<192x384xf32>
    %cst_34 = arith.constant 5.000000e-01 : f32
    %76 = vector.broadcast %cst_34 : f32 to vector<192x384xf32>
    %77 = arith.mulf %76, %46 : vector<192x384xf32>
    %cst_35 = arith.constant 1.000000e+00 : f32
    %78 = vector.broadcast %cst_35 : f32 to vector<192x384xf32>
    %79 = arith.addf %78, %75 : vector<192x384xf32>
    %80 = arith.mulf %77, %79 : vector<192x384xf32>
    %81 = arith.truncf %80 : vector<192x384xf32> to vector<192x384xbf16>
    %c0_36 = arith.constant 0 : index
    %c0_37 = arith.constant 0 : index
    %82 = vector.load %arg6[%c0_36, %c0_37] : memref<384x192xbf16, #tpu.memory_space<vmem>>, vector<384x192xbf16>
    %cst_38 = arith.constant dense<0.000000e+00> : vector<384x384xf32>
    %83 = tpu.matmul %82, %81, %cst_38 {dimension_numbers = #tpu.dot_dimension_numbers<[1], [0], [0], [1], [0, 0, 1, 1], [], []>} : vector<384x192xbf16>, vector<192x384xbf16>, vector<384x384xf32> -> vector<384x384xf32>
    %c0_39 = arith.constant 0 : index
    %c0_40 = arith.constant 0 : index
    %84 = vector.load %arg7[%c0_39, %c0_40] : memref<384x1xf32, #tpu.memory_space<vmem>>, vector<384x1xf32>
    %85 = vector.broadcast %84 : vector<384x1xf32> to vector<384x384xf32>
    %86 = arith.addf %83, %85 : vector<384x384xf32>
    %87 = vector.extract_strided_slice %86 {offsets = [0, 0], sizes = [128, 384], strides = [1, 1]} : vector<384x384xf32> to vector<128x384xf32>
    %88 = vector.extract_strided_slice %86 {offsets = [128, 0], sizes = [256, 384], strides = [1, 1]} : vector<384x384xf32> to vector<256x384xf32>
    %89 = vector.shape_cast %88 : vector<256x384xf32> to vector<2x128x384xf32>
    %90 = vector.shape_cast %87 : vector<128x384xf32> to vector<1x128x384xf32>
    %91 = vector.broadcast %90 : vector<1x128x384xf32> to vector<2x128x384xf32>
    %92 = arith.mulf %89, %91 : vector<2x128x384xf32>
    %93 = vector.shape_cast %92 : vector<2x128x384xf32> to vector<256x384xf32>
    %c0_41 = arith.constant 0 : index
    %c0_42 = arith.constant 0 : index
    %94 = vector.load %arg8[%c0_41, %c0_42] : memref<2x256xf32, #tpu.memory_space<vmem>>, vector<2x256xf32>
    %cst_43 = arith.constant dense<0.000000e+00> : vector<2x384xf32>
    %95 = tpu.matmul %94, %93, %cst_43 {dimension_numbers = #tpu.dot_dimension_numbers<[1], [0], [0], [1], [0, 0, 1, 1], [], []>} : vector<2x256xf32>, vector<256x384xf32>, vector<2x384xf32> -> vector<2x384xf32>
    %c0_44 = arith.constant 0 : index
    %c0_45 = arith.constant 0 : index
    %96 = vector.load %arg9[%c0_44, %c0_45] : memref<2x384xf32, #tpu.memory_space<vmem>>, vector<2x384xf32>
    tpu.vector_store %arg9[%c0_44, %c0_45], %95 {strides = array<i32>} : memref<2x384xf32, #tpu.memory_space<vmem>>, vector<2x384xf32>,
    return
  }
  func.func @transform_0(%arg0: i32) -> (i32, i32) {
    %c0_i32 = arith.constant 0 : i32
    %c0_i32_0 = arith.constant 0 : i32
    return %c0_i32, %arg0 : i32, i32
  }
  func.func @transform_1(%arg0: i32) -> (i32, i32) {
    %c0_i32 = arith.constant 0 : i32
    %c0_i32_0 = arith.constant 0 : i32
    %c0_i32_1 = arith.constant 0 : i32
    return %c0_i32, %c0_i32_0 : i32, i32
  }
  func.func @transform_2(%arg0: i32) -> (i32, i32) {
    %c0_i32 = arith.constant 0 : i32
    %c0_i32_0 = arith.constant 0 : i32
    %c0_i32_1 = arith.constant 0 : i32
    return %c0_i32, %c0_i32_0 : i32, i32
  }
  func.func @transform_3(%arg0: i32) -> (i32, i32) {
    %c0_i32 = arith.constant 0 : i32
    %c0_i32_0 = arith.constant 0 : i32
    %c0_i32_1 = arith.constant 0 : i32
    return %c0_i32, %c0_i32_0 : i32, i32
  }
  func.func @transform_4(%arg0: i32) -> (i32, i32) {
    %c0_i32 = arith.constant 0 : i32
    %c0_i32_0 = arith.constant 0 : i32
    %c0_i32_1 = arith.constant 0 : i32
    return %c0_i32, %c0_i32_0 : i32, i32
  }
  func.func @transform_5(%arg0: i32) -> (i32, i32) {
    %c0_i32 = arith.constant 0 : i32
    %c0_i32_0 = arith.constant 0 : i32
    %c0_i32_1 = arith.constant 0 : i32
    return %c0_i32, %c0_i32_0 : i32, i32
  }
  func.func @transform_6(%arg0: i32) -> (i32, i32) {
    %c0_i32 = arith.constant 0 : i32
    %c0_i32_0 = arith.constant 0 : i32
    %c0_i32_1 = arith.constant 0 : i32
    return %c0_i32, %c0_i32_0 : i32, i32
  }
  func.func @transform_7(%arg0: i32) -> (i32, i32) {
    %c0_i32 = arith.constant 0 : i32
    %c0_i32_0 = arith.constant 0 : i32
    %c0_i32_1 = arith.constant 0 : i32
    return %c0_i32, %c0_i32_0 : i32, i32
  }
  func.func @transform_8(%arg0: i32) -> (i32, i32) {
    %c0_i32 = arith.constant 0 : i32
    %c0_i32_0 = arith.constant 0 : i32
    return %c0_i32, %arg0 : i32, i32
  }
}

</mosaic_0001>

<llo_original>
// kernel: deeponet_forward.1
$region0: #{deeponet_forward.1}
  #allocation0 [shape = 'u32[]', space=smem, size = 0x4, offset = 0x4, fixed_abs, tag = 'smem constant byte address 0x4 - core index']
  #allocation1 [shape = 'u32[144,128]{1,0:T(1,128)}', space=vmem, size = 0x12000, scoped, tag = 'internal scratch']
  %s0 = inlined_call_operand.vmem [shape: f32[5,768], index: 0, kind: input, shape index: {}]
  %s1 = inlined_call_operand.vmem [shape: bf16[96,5], index: 1, kind: input, shape index: {}]
  %s2 = inlined_call_operand.vmem [shape: f32[96,1], index: 2, kind: input, shape index: {}]
  %s3 = inlined_call_operand.vmem [shape: bf16[192,96], index: 3, kind: input, shape index: {}]
  %s4 = inlined_call_operand.vmem [shape: f32[192,1], index: 4, kind: input, shape index: {}]
  %s5 = inlined_call_operand.vmem [shape: bf16[384,192], index: 5, kind: input, shape index: {}]
  %s6 = inlined_call_operand.vmem [shape: f32[384,1], index: 6, kind: input, shape index: {}]
  %s7 = inlined_call_operand.vmem [shape: f32[2,256], index: 7, kind: input, shape index: {}]
  %s8 = inlined_call_operand.hbm [shape: f32[2,768], index: 8, kind: output, shape index: {}]
  %s9 = sld [smem:[#allocation0]]
  $region65: #{deeponet_forward.1} parent=0
    _
  %s11 = ssub.s32 1, %s9
  %s12 = scalar_select 0, %s11, %s9
  $region1: #{deeponet_forward.1} parent=0
    #allocation2 [shape = 'u8[6144]{0}', space=vmem, size = 0x1800, scoped, tag = 'output window, operand 0']
    #allocation3 [shape = 's32[2]{0}', space=sflag, size = 0x8, scoped, tag = 'scoped memory for deeponet_forward.1']
    %13 = vsyncpa [#allocation3], 0
    %s14 = scalar_lea.sflag [#allocation3], 1
    %15 = vsyncpa %s14, 0
    loop: start=0, step=1, limit=4
    $region2: #{deeponet_forward.1} parent=1 // loop_pre_header
      _
    $region3: #{deeponet_forward.1} parent=1 // loop_header
      %s17 = sphi 0, %s21
      %p18 = scmp.ge.s32.totalorder %s17, 4
      %s27 = sphi 0, %s29
      %s30 = sphi 0, %s27
      %s31 = sphi 0, %s30
      %s47 = sphi 0, %s31
      %s51 = sphi 0, %s51
      %s53 = sphi 0, %s51
      %s54 = sphi 0, %s53
      %s68 = sphi 0, %s54
      %s72 = sphi 0, %s72
      %s74 = sphi 0, %s72
      %s75 = sphi 0, %s74
      %s89 = sphi 0, %s75
      %s93 = sphi 0, %s93
      %s95 = sphi 0, %s93
      %s96 = sphi 0, %s95
      %s110 = sphi 0, %s96
      %s114 = sphi 0, %s114
      %s116 = sphi 0, %s114
      %s117 = sphi 0, %s116
      %s131 = sphi 0, %s117
      %s135 = sphi 0, %s135
      %s137 = sphi 0, %s135
      %s138 = sphi 0, %s137
      %s152 = sphi 0, %s138
      %s156 = sphi 0, %s156
      %s158 = sphi 0, %s156
      %s159 = sphi 0, %s158
      %s173 = sphi 0, %s159
      %s177 = sphi 0, %s177
      %s179 = sphi 0, %s177
      %s180 = sphi 0, %s179
      %s194 = sphi 0, %s180
      %s200 = sphi 0, %s202
      %s203 = sphi 0, %s200
      %s204 = sphi 0, %s203
      %s220 = sphi 0, %s204
    $region4: #{deeponet_forward.1} parent=1 // loop_header_branch
      %20 = sbr.rel (%p18) target = $region8
    $region5: #{deeponet_forward.1} parent=1 // loop_body
      %s22 = ssub.s32 %s17, 1
      %s23 = ssub.s32 %s17, 2
      %s24 = sadd.s32 %s17, 1
      %s25 = ssub.s32 %s17, %s24
      %p26 = scmp.eq.s32.totalorder %s25, 0
      %s28 = sadd.s32 %s27, 1
      %s29 = scalar_select %p26, %s27, %s28
      %p32 = pneg %p26
      %p33 = scmp.eq.s32.totalorder %s17, 1
      %p34 = por %p32, %p33
      %p35 = scmp.ne.s32.totalorder %s27, %s30
      %p36 = scmp.eq.s32.totalorder %s17, 0
      %p37 = por %p35, %p36
      %p38 = scmp.ne.s32.totalorder %s27, %s30
      %p39 = scmp.eq.s32.totalorder %s22, 1
      %p40 = por %p38, %p39
      %p41 = scmp.ne.s32.totalorder %s30, %s31
      %p42 = scmp.eq.s32.totalorder %s22, 0
      %p43 = por %p41, %p42
      %p44 = scmp.ne.s32.totalorder %s30, %s31
      %p45 = scmp.eq.s32.totalorder %s23, 1
      %p46 = por %p44, %p45
      %p48 = scmp.ne.s32.totalorder %s31, %s47
      %p49 = scmp.eq.s32.totalorder %s23, 0
      %p50 = por %p48, %p49
      %s52 = sadd.s32 %s51, 1
      %p55 = scmp.eq.s32.totalorder %s17, 1
      %p56 = scmp.ne.s32.totalorder %s51, %s53
      %p57 = scmp.eq.s32.totalorder %s17, 0
      %p58 = por %p56, %p57
      %p59 = scmp.ne.s32.totalorder %s51, %s53
      %p60 = scmp.eq.s32.totalorder %s22, 1
      %p61 = por %p59, %p60
      %p62 = scmp.ne.s32.totalorder %s53, %s54
      %p63 = scmp.eq.s32.totalorder %s22, 0
      %p64 = por %p62, %p63
      %p65 = scmp.ne.s32.totalorder %s53, %s54
      %p66 = scmp.eq.s32.totalorder %s23, 1
      %p67 = por %p65, %p66
      %p69 = scmp.ne.s32.totalorder %s54, %s68
      %p70 = scmp.eq.s32.totalorder %s23, 0
      %p71 = por %p69, %p70
      %s73 = sadd.s32 %s72, 1
      %p76 = scmp.eq.s32.totalorder %s17, 1
      %p77 = scmp.ne.s32.totalorder %s72, %s74
      %p78 = scmp.eq.s32.totalorder %s17, 0
      %p79 = por %p77, %p78
      %p80 = scmp.ne.s32.totalorder %s72, %s74
      %p81 = scmp.eq.s32.totalorder %s22, 1
      %p82 = por %p80, %p81
      %p83 = scmp.ne.s32.totalorder %s74, %s75
      %p84 = scmp.eq.s32.totalorder %s22, 0
      %p85 = por %p83, %p84
      %p86 = scmp.ne.s32.totalorder %s74, %s75
      %p87 = scmp.eq.s32.totalorder %s23, 1
      %p88 = por %p86, %p87
      %p90 = scmp.ne.s32.totalorder %s75, %s89
      %p91 = scmp.eq.s32.totalorder %s23, 0
      %p92 = por %p90, %p91
      %s94 = sadd.s32 %s93, 1
      %p97 = scmp.eq.s32.totalorder %s17, 1
      %p98 = scmp.ne.s32.totalorder %s93, %s95
      %p99 = scmp.eq.s32.totalorder %s17, 0
      %p100 = por %p98, %p99
      %p101 = scmp.ne.s32.totalorder %s93, %s95
      %p102 = scmp.eq.s32.totalorder %s22, 1
      %p103 = por %p101, %p102
      %p104 = scmp.ne.s32.totalorder %s95, %s96
      %p105 = scmp.eq.s32.totalorder %s22, 0
      %p106 = por %p104, %p105
      %p107 = scmp.ne.s32.totalorder %s95, %s96
      %p108 = scmp.eq.s32.totalorder %s23, 1
      %p109 = por %p107, %p108
      %p111 = scmp.ne.s32.totalorder %s96, %s110
      %p112 = scmp.eq.s32.totalorder %s23, 0
      %p113 = por %p111, %p112
      %s115 = sadd.s32 %s114, 1
      %p118 = scmp.eq.s32.totalorder %s17, 1
      %p119 = scmp.ne.s32.totalorder %s114, %s116
      %p120 = scmp.eq.s32.totalorder %s17, 0
      %p121 = por %p119, %p120
      %p122 = scmp.ne.s32.totalorder %s114, %s116
      %p123 = scmp.eq.s32.totalorder %s22, 1
      %p124 = por %p122, %p123
      %p125 = scmp.ne.s32.totalorder %s116, %s117
      %p126 = scmp.eq.s32.totalorder %s22, 0
      %p127 = por %p125, %p126
      %p128 = scmp.ne.s32.totalorder %s116, %s117
      %p129 = scmp.eq.s32.totalorder %s23, 1
      %p130 = por %p128, %p129
      %p132 = scmp.ne.s32.totalorder %s117, %s131
      %p133 = scmp.eq.s32.totalorder %s23, 0
      %p134 = por %p132, %p133
      %s136 = sadd.s32 %s135, 1
      %p139 = scmp.eq.s32.totalorder %s17, 1
      %p140 = scmp.ne.s32.totalorder %s135, %s137
      %p141 = scmp.eq.s32.totalorder %s17, 0
      %p142 = por %p140, %p141
      %p143 = scmp.ne.s32.totalorder %s135, %s137
      %p144 = scmp.eq.s32.totalorder %s22, 1
      %p145 = por %p143, %p144
      %p146 = scmp.ne.s32.totalorder %s137, %s138
      %p147 = scmp.eq.s32.totalorder %s22, 0
      %p148 = por %p146, %p147
      %p149 = scmp.ne.s32.totalorder %s137, %s138
      %p150 = scmp.eq.s32.totalorder %s23, 1
      %p151 = por %p149, %p150
      %p153 = scmp.ne.s32.totalorder %s138, %s152
      %p154 = scmp.eq.s32.totalorder %s23, 0
      %p155 = por %p153, %p154
      %s157 = sadd.s32 %s156, 1
      %p160 = scmp.eq.s32.totalorder %s17, 1
      %p161 = scmp.ne.s32.totalorder %s156, %s158
      %p162 = scmp.eq.s32.totalorder %s17, 0
      %p163 = por %p161, %p162
      %p164 = scmp.ne.s32.totalorder %s156, %s158
      %p165 = scmp.eq.s32.totalorder %s22, 1
      %p166 = por %p164, %p165
      %p167 = scmp.ne.s32.totalorder %s158, %s159
      %p168 = scmp.eq.s32.totalorder %s22, 0
      %p169 = por %p167, %p168
      %p170 = scmp.ne.s32.totalorder %s158, %s159
      %p171 = scmp.eq.s32.totalorder %s23, 1
      %p172 = por %p170, %p171
      %p174 = scmp.ne.s32.totalorder %s159, %s173
      %p175 = scmp.eq.s32.totalorder %s23, 0
      %p176 = por %p174, %p175
      %s178 = sadd.s32 %s177, 1
      %p181 = scmp.eq.s32.totalorder %s17, 1
      %p182 = scmp.ne.s32.totalorder %s177, %s179
      %p183 = scmp.eq.s32.totalorder %s17, 0
      %p184 = por %p182, %p183
      %p185 = scmp.ne.s32.totalorder %s177, %s179
      %p186 = scmp.eq.s32.totalorder %s22, 1
      %p187 = por %p185, %p186
      %p188 = scmp.ne.s32.totalorder %s179, %s180
      %p189 = scmp.eq.s32.totalorder %s22, 0
      %p190 = por %p188, %p189
      %p191 = scmp.ne.s32.totalorder %s179, %s180
      %p192 = scmp.eq.s32.totalorder %s23, 1
      %p193 = por %p191, %p192
      %p195 = scmp.ne.s32.totalorder %s180, %s194
      %p196 = scmp.eq.s32.totalorder %s23, 0
      %p197 = por %p195, %p196
      %s198 = ssub.s32 %s17, %s24
      %p199 = scmp.eq.s32.totalorder %s198, 0
      %s201 = sadd.s32 %s200, 1
      %s202 = scalar_select %p199, %s200, %s201
      %p205 = pneg %p199
      %p206 = scmp.eq.s32.totalorder %s17, 1
      %p207 = por %p205, %p206
      %p208 = scmp.ne.s32.totalorder %s200, %s203
      %p209 = scmp.eq.s32.totalorder %s17, 0
      %p210 = por %p208, %p209
      %p211 = scmp.ne.s32.totalorder %s200, %s203
      %p212 = scmp.eq.s32.totalorder %s22, 1
      %p213 = por %p211, %p212
      %p214 = scmp.ne.s32.totalorder %s203, %s204
      %p215 = scmp.eq.s32.totalorder %s22, 0
      %p216 = por %p214, %p215
      %p217 = scmp.ne.s32.totalorder %s203, %s204
      %p218 = scmp.eq.s32.totalorder %s23, 1
      %p219 = por %p217, %p218
      %p221 = scmp.ne.s32.totalorder %s204, %s220
      %p222 = scmp.eq.s32.totalorder %s23, 0
      %p223 = por %p221, %p222
      %p224 = scmp.le.s32.totalorder 1, %s17
      %p225 = scmp.lt.s32.totalorder %s17, 3
      %p226 = pnand %p224, %p225
      %p227 = pneg %p226
      // Predicated region
      $region9: #{deeponet_forward.1} parent=5 // pred_check
        _
      $region10: #{deeponet_forward.1} parent=5 // pred_check_branch
        %229 = sbr.rel (%p226) target = $region12
      $region11: #{deeponet_forward.1} parent=5 // pred_region
        %s230 = ssub.s32 %s17, 1
        // Predicated region
        $region13: #{deeponet_forward.1} parent=11 // pred_check
          %p231 = pneg %p64
        $region14: #{deeponet_forward.1} parent=11 // pred_check_branch
          %233 = sbr.rel (%p231) target = $region16
        $region15: #{deeponet_forward.1} parent=11 // pred_region
          _
        $region16: #{deeponet_forward.1} parent=11 // pred_fallthru
          _
        // Predicated region
        $region17: #{deeponet_forward.1} parent=11 // pred_check
          %p234 = pneg %p85
        $region18: #{deeponet_forward.1} parent=11 // pred_check_branch
          %236 = sbr.rel (%p234) target = $region20
        $region19: #{deeponet_forward.1} parent=11 // pred_region
          _
        $region20: #{deeponet_forward.1} parent=11 // pred_fallthru
          _
        // Predicated region
        $region21: #{deeponet_forward.1} parent=11 // pred_check
          %p237 = pneg %p106
        $region22: #{deeponet_forward.1} parent=11 // pred_check_branch
          %239 = sbr.rel (%p237) target = $region24
        $region23: #{deeponet_forward.1} parent=11 // pred_region
          _
        $region24: #{deeponet_forward.1} parent=11 // pred_fallthru
          _
        // Predicated region
        $region25: #{deeponet_forward.1} parent=11 // pred_check
          %p240 = pneg %p127
        $region26: #{deeponet_forward.1} parent=11 // pred_check_branch
          %242 = sbr.rel (%p240) target = $region28
        $region27: #{deeponet_forward.1} parent=11 // pred_region
          _
        $region28: #{deeponet_forward.1} parent=11 // pred_fallthru
          _
        // Predicated region
        $region29: #{deeponet_forward.1} parent=11 // pred_check
          %p243 = pneg %p148
        $region30: #{deeponet_forward.1} parent=11 // pred_check_branch
          %245 = sbr.rel (%p243) target = $region32
        $region31: #{deeponet_forward.1} parent=11 // pred_region
          _
        $region32: #{deeponet_forward.1} parent=11 // pred_fallthru
          _
        // Predicated region
        $region33: #{deeponet_forward.1} parent=11 // pred_check
          %p246 = pneg %p169
        $region34: #{deeponet_forward.1} parent=11 // pred_check_branch
          %248 = sbr.rel (%p246) target = $region36
        $region35: #{deeponet_forward.1} parent=11 // pred_region
          _
        $region36: #{deeponet_forward.1} parent=11 // pred_fallthru
          _
        // Predicated region
        $region37: #{deeponet_forward.1} parent=11 // pred_check
          %p249 = pneg %p190
        $region38: #{deeponet_forward.1} parent=11 // pred_check_branch
          %251 = sbr.rel (%p249) target = $region40
        $region39: #{deeponet_forward.1} parent=11 // pred_region
          _
        $region40: #{deeponet_forward.1} parent=11 // pred_fallthru
          _
      $region12: #{deeponet_forward.1} parent=5 // pred_fallthru
        _
      %p252 = scmp.lt.s32.totalorder %s17, 2
      // Predicated region
      $region41: #{deeponet_forward.1} parent=5 // pred_check
        %p253 = pneg %p252
      $region42: #{deeponet_forward.1} parent=5 // pred_check_branch
        %255 = sbr.rel (%p253) target = $region44
      $region43: #{deeponet_forward.1} parent=5 // pred_region
        // Predicated region
        $region45: #{deeponet_forward.1} parent=43 // pred_check
          %p256 = pneg %p37
        $region46: #{deeponet_forward.1} parent=43 // pred_check_branch
          %258 = sbr.rel (%p256) target = $region48
        $region47: #{deeponet_forward.1} parent=43 // pred_region
          %s259 = smul.u32 3, %s17
          %p260 = scmp.lt.s32.totalorder %s259, 5
          %s261 = scalar_select %p260, %s259, 5
          %s262 = smul.addr %s261, 8
          %s263 = scalar_lea.vmem %s0, %s262
          %s264 = smul.u32 3, %s17
        $region48: #{deeponet_forward.1} parent=43 // pred_fallthru
          _
      $region44: #{deeponet_forward.1} parent=5 // pred_fallthru
        _
      %p265 = scmp.le.s32.totalorder 1, %s17
      %p266 = scmp.lt.s32.totalorder %s17, 3
      %p267 = pnand %p265, %p266
      %p268 = pneg %p267
      // Predicated region
      $region49: #{deeponet_forward.1} parent=5 // pred_check
        _
      $region50: #{deeponet_forward.1} parent=5 // pred_check_branch
        %270 = sbr.rel (%p267) target = $region52
      $region51: #{deeponet_forward.1} parent=5 // pred_region
        %s271 = ssub.s32 %s17, 1
        %s272 = smul.u32 3, %s22
        %p273 = scmp.lt.s32.totalorder %s272, 5
        %s274 = scalar_select %p273, %s272, 5
        %s275 = smul.addr %s274, 8
        %s276 = scalar_lea.vmem %s0, %s275
        %p277 = pneg %p43
        %p278 = pneg %p40
        %p279 = pneg %p64
        %p280 = pneg %p61
        %p281 = pneg %p85
        %p282 = pneg %p82
        %p283 = pneg %p106
        %p284 = pneg %p103
        %p285 = pneg %p127
        %p286 = pneg %p124
        %p287 = pneg %p148
        %p288 = pneg %p145
        %p289 = pneg %p169
        %p290 = pneg %p166
        %p291 = pneg %p190
        %p292 = pneg %p187
        %p293 = pneg %p216
        %p294 = pneg %p213
        %s295 = sand.u32 %s203, 1
        %s296 = scalar_lea.sflag [#allocation3], %s295
        %s297 = sand.u32 %s203, 1
        %s298 = smul.addr %s297, 6
        %s299 = scalar_lea.vmem [#allocation2], %s298
        %s300 = smul.u32 3, %s22
        %p301 = scmp.lt.s32.totalorder %s300, 5
        %s302 = scalar_select %p301, %s300, 5
        %s303 = smul.addr %s302, 8
        %s304 = scalar_lea.vmem %s0, %s303
        %s305 = smul.u32 3, %s22
        %s306 = smul.u32 3, %s22
        %v308 = vld [vmem:[%s304] sm:$0x1f]
        %v309 = vld [vmem:[%s304 + $0x8] sm:$0x1f]
        %v310 = vld [vmem:[%s304 + $0x10] sm:$0x1f]
        %v311 = vpack.c.bf16 %v308, %v308
        %v312 = vpack.c.bf16 %v309, %v309
        %v313 = vpack.c.bf16 %v310, %v310
        %v314 = vld [vmem:[%s1] sm:$0xf]
        %v315 = vld [vmem:[%s1 + $0x4] sm:$0xf]
        %v316 = vld [vmem:[%s1 + $0x8] sm:$0xf]
        %v317 = vld [vmem:[%s1 + $0xc] sm:$0xf]
        %v318 = vld [vmem:[%s1 + $0x10] sm:$0xf]
        %v319 = vld [vmem:[%s1 + $0x14] sm:$0xf]
        %v320 = vld [vmem:[%s1 + $0x18] sm:$0xf]
        %v321 = vld [vmem:[%s1 + $0x1c] sm:$0xf]
        %v322 = vld [vmem:[%s1 + $0x20] sm:$0xf]
        %v323 = vld [vmem:[%s1 + $0x24] sm:$0xf]
        %v324 = vld [vmem:[%s1 + $0x28] sm:$0xf]
        %v325 = vld [vmem:[%s1 + $0x2c] sm:$0xf]
        %v326 = vld [vmem:[%s2] sm:$0xff]
        %v327 = vld [vmem:[%s2 + $0x8] sm:$0xff]
        %v328 = vld [vmem:[%s2 + $0x10] sm:$0xff]
        %v329 = vld [vmem:[%s2 + $0x18] sm:$0xff]
        %v330 = vld [vmem:[%s2 + $0x20] sm:$0xff]
        %v331 = vld [vmem:[%s2 + $0x28] sm:$0xff]
        %v332 = vld [vmem:[%s2 + $0x30] sm:$0xff]
        %v333 = vld [vmem:[%s2 + $0x38] sm:$0xff]
        %v334 = vld [vmem:[%s2 + $0x40] sm:$0xff]
        %v335 = vld [vmem:[%s2 + $0x48] sm:$0xff]
        %v336 = vld [vmem:[%s2 + $0x50] sm:$0xff]
        %v337 = vld [vmem:[%s2 + $0x58] sm:$0xff]
        %339 = vset.pattern.permute.xlu0 0
        %340 = vperm.xlu0 %339, %v326
        %v341 = vpop.permute.xlu0 %340
        %344 = vset.pattern.permute.xlu0 0
        %345 = vperm.xlu0 %344, %v327
        %v346 = vpop.permute.xlu0 %345
        %349 = vset.pattern.permute.xlu0 0
        %350 = vperm.xlu0 %349, %v328
        %v351 = vpop.permute.xlu0 %350
        %354 = vset.pattern.permute.xlu0 0
        %355 = vperm.xlu0 %354, %v329
        %v356 = vpop.permute.xlu0 %355
        %359 = vset.pattern.permute.xlu0 0
        %360 = vperm.xlu0 %359, %v330
        %v361 = vpop.permute.xlu0 %360
        %364 = vset.pattern.permute.xlu0 0
        %365 = vperm.xlu0 %364, %v331
        %v366 = vpop.permute.xlu0 %365
        %369 = vset.pattern.permute.xlu0 0
        %370 = vperm.xlu0 %369, %v332
        %v371 = vpop.permute.xlu0 %370
        %374 = vset.pattern.permute.xlu0 0
        %375 = vperm.xlu0 %374, %v333
        %v376 = vpop.permute.xlu0 %375
        %379 = vset.pattern.permute.xlu0 0
        %380 = vperm.xlu0 %379, %v334
        %v381 = vpop.permute.xlu0 %380
        %384 = vset.pattern.permute.xlu0 0
        %385 = vperm.xlu0 %384, %v335
        %v386 = vpop.permute.xlu0 %385
        %389 = vset.pattern.permute.xlu0 0
        %390 = vperm.xlu0 %389, %v336
        %v391 = vpop.permute.xlu0 %390
        %394 = vset.pattern.permute.xlu0 0
        %395 = vperm.xlu0 %394, %v337
        %v396 = vpop.permute.xlu0 %395
        %v410 = vunpack.c.l.b16 %v314
        %v411 = vunpack.c.l.b16 %v315
        %v412 = vunpack.c.l.b16 %v316
        %v413 = vunpack.c.l.b16 %v317
        %v414 = vunpack.c.l.b16 %v318
        %v415 = vunpack.c.l.b16 %v319
        %v416 = vunpack.c.l.b16 %v320
        %v417 = vunpack.c.l.b16 %v321
        %v418 = vunpack.c.l.b16 %v322
        %v419 = vunpack.c.l.b16 %v323
        %v420 = vunpack.c.l.b16 %v324
        %v421 = vunpack.c.l.b16 %v325
        %v422 = vpack.c.b16 %v411, %v410
        %v423 = vpack.c.b16 %v413, %v412
        %v424 = vpack.c.b16 %v415, %v414
        %v425 = vpack.c.b16 %v417, %v416
        %v426 = vpack.c.b16 %v419, %v418
        %v427 = vpack.c.b16 %v421, %v420
        %vm428 = vcmask 39936
        %v430 = vsel %vm428, %v422, 0
        %v433 = vsel %vm428, %v423, 0
        %v436 = vsel %vm428, %v424, 0
        %v439 = vsel %vm428, %v425, 0
        %v442 = vsel %vm428, %v426, 0
        %v445 = vsel %vm428, %v427, 0
        %vm447 = vcmask 1041408
        %vm448 = vcmask 1042432
        %v449 = vsel %vm447, 4294967295, 65535
        %v450 = vsel %vm448, %v449, 0
        %v452 = vand.u32 %v311, %v450
        %v455 = vand.u32 %v312, %v450
        %v458 = vand.u32 %v313, %v450
        %460 = vmatprep.subr.bf16.mxu0 %v455
        %461 = vmatpush1.bf16.msra.mxu0 %v452
        %462 = vmatprep.subr.bf16.mxu0 0
        %463 = vmatpush1.bf16.msra.mxu0 0
        %464 = vmatprep.subr.bf16.mxu0 0
        %465 = vmatpush1.bf16.msra.mxu0 0
        %466 = vmatprep.subr.bf16.mxu0 0
        %467 = vmatpush1.bf16.msra.mxu0 0
        %468 = vmatprep.subr.bf16.mxu0 0
        %469 = vmatpush1.bf16.msra.mxu0 0
        %470 = vmatprep.subr.bf16.mxu0 0
        %471 = vmatpush1.bf16.msra.mxu0 0
        %472 = vmatprep.subr.bf16.mxu0 0
        %473 = vmatpush1.bf16.msra.mxu0 0
        %474 = vmatprep.subr.bf16.mxu0 0
        %475 = vmatpush1.bf16.msra.mxu0 0
        %476 = vmatprep.subr.bf16.mxu0 0
        %477 = vmatpush1.bf16.msra.mxu0 0
        %478 = vmatprep.subr.bf16.mxu0 0
        %479 = vmatpush1.bf16.msra.mxu0 0
        %480 = vmatprep.subr.bf16.mxu0 0
        %481 = vmatpush1.bf16.msra.mxu0 0
        %482 = vmatprep.subr.bf16.mxu0 0
        %483 = vmatpush1.bf16.msra.mxu0 0
        %484 = vmatprep.subr.bf16.mxu0 0
        %485 = vmatpush1.bf16.msra.mxu0 0
        %486 = vmatprep.subr.bf16.mxu0 0
        %487 = vmatpush1.bf16.msra.mxu0 0
        %488 = vmatprep.subr.bf16.mxu0 0
        %489 = vmatpush1.bf16.msra.mxu0 0
        %490 = vmatprep.subr.bf16.mxu0 0
        %491 = vmatpush1.bf16.msra.mxu0 0
        %492 = vmatprep.mubr.bf16.mxu0 0
        %493 = vmatmul.mubr.bf16.gmra.mrb[0].mxu0 %v430
        %v494 = vpop.f32.mrb[0].mxu0
        %v495 = vadd.f32 %v341, %v494
        %v496 = vpop.f32.mrb[0].mxu0
        %v497 = vadd.f32 %v341, %v496
        %v498 = vpop.f32.mrb[0].mxu0
        %v499 = vadd.f32 %v346, %v498
        %v500 = vpop.f32.mrb[0].mxu0
        %v501 = vadd.f32 %v346, %v500
        %502 = vmatprep.mubr.bf16.mxu0 0
        %503 = vmatmul.mubr.bf16.gmra.mrb[0].mxu0 %v433
        %v504 = vpop.f32.mrb[0].mxu0
        %v505 = vadd.f32 %v351, %v504
        %v506 = vpop.f32.mrb[0].mxu0
        %v507 = vadd.f32 %v351, %v506
        %v508 = vpop.f32.mrb[0].mxu0
        %v509 = vadd.f32 %v356, %v508
        %v510 = vpop.f32.mrb[0].mxu0
        %v511 = vadd.f32 %v356, %v510
        %512 = vmatprep.mubr.bf16.mxu0 0
        %513 = vmatmul.mubr.bf16.gmra.mrb[0].mxu0 %v436
        %v514 = vpop.f32.mrb[0].mxu0
        %v515 = vadd.f32 %v361, %v514
        %v516 = vpop.f32.mrb[0].mxu0
        %v517 = vadd.f32 %v361, %v516
        %v518 = vpop.f32.mrb[0].mxu0
        %v519 = vadd.f32 %v366, %v518
        %v520 = vpop.f32.mrb[0].mxu0
        %v521 = vadd.f32 %v366, %v520
        %522 = vmatprep.mubr.bf16.mxu0 0
        %523 = vmatmul.mubr.bf16.gmra.mrb[0].mxu0 %v439
        %v524 = vpop.f32.mrb[0].mxu0
        %v525 = vadd.f32 %v371, %v524
        %v526 = vpop.f32.mrb[0].mxu0
        %v527 = vadd.f32 %v371, %v526
        %v528 = vpop.f32.mrb[0].mxu0
        %v529 = vadd.f32 %v376, %v528
        %v530 = vpop.f32.mrb[0].mxu0
        %v531 = vadd.f32 %v376, %v530
        %532 = vmatprep.mubr.bf16.mxu0 0
        %533 = vmatmul.mubr.bf16.gmra.mrb[0].mxu0 %v442
        %v534 = vpop.f32.mrb[0].mxu0
        %v535 = vadd.f32 %v381, %v534
        %v536 = vpop.f32.mrb[0].mxu0
        %v537 = vadd.f32 %v381, %v536
        %v538 = vpop.f32.mrb[0].mxu0
        %v539 = vadd.f32 %v386, %v538
        %v540 = vpop.f32.mrb[0].mxu0
        %v541 = vadd.f32 %v386, %v540
        %542 = vmatprep.mubr.bf16.mxu0 0
        %543 = vmatmul.mubr.bf16.gmra.mrb[0].mxu0 %v445
        %v544 = vpop.f32.mrb[0].mxu0
        %v545 = vadd.f32 %v391, %v544
        %v546 = vpop.f32.mrb[0].mxu0
        %v547 = vadd.f32 %v391, %v546
        %v548 = vpop.f32.mrb[0].mxu0
        %v549 = vadd.f32 %v396, %v548
        %v550 = vpop.f32.mrb[0].mxu0
        %v551 = vadd.f32 %v396, %v550
        %552 = vdwg.mxu0
        %553 = vmatprep.subr.bf16.mxu0 0
        %554 = vmatpush1.bf16.msra.mxu0 %v458
        %555 = vmatprep.subr.bf16.mxu0 0
        %556 = vmatpush1.bf16.msra.mxu0 0
        %557 = vmatprep.subr.bf16.mxu0 0
        %558 = vmatpush1.bf16.msra.mxu0 0
        %559 = vmatprep.subr.bf16.mxu0 0
        %560 = vmatpush1.bf16.msra.mxu0 0
        %561 = vmatprep.subr.bf16.mxu0 0
        %562 = vmatpush1.bf16.msra.mxu0 0
        %563 = vmatprep.subr.bf16.mxu0 0
        %564 = vmatpush1.bf16.msra.mxu0 0
        %565 = vmatprep.subr.bf16.mxu0 0
        %566 = vmatpush1.bf16.msra.mxu0 0
        %567 = vmatprep.subr.bf16.mxu0 0
        %568 = vmatpush1.bf16.msra.mxu0 0
        %569 = vmatprep.subr.bf16.mxu0 0
        %570 = vmatpush1.bf16.msra.mxu0 0
        %571 = vmatprep.subr.bf16.mxu0 0
        %572 = vmatpush1.bf16.msra.mxu0 0
        %573 = vmatprep.subr.bf16.mxu0 0
        %574 = vmatpush1.bf16.msra.mxu0 0
        %575 = vmatprep.subr.bf16.mxu0 0
        %576 = vmatpush1.bf16.msra.mxu0 0
        %577 = vmatprep.subr.bf16.mxu0 0
        %578 = vmatpush1.bf16.msra.mxu0 0
        %579 = vmatprep.subr.bf16.mxu0 0
        %580 = vmatpush1.bf16.msra.mxu0 0
        %581 = vmatprep.subr.bf16.mxu0 0
        %582 = vmatpush1.bf16.msra.mxu0 0
        %583 = vmatprep.subr.bf16.mxu0 0
        %584 = vmatpush1.bf16.msra.mxu0 0
        %585 = vmatprep.mubr.bf16.mxu0 0
        %586 = vmatmul.mubr.bf16.gmra.mrb[0].mxu0 %v430
        %v587 = vpop.f32.mrb[0].mxu0
        %v588 = vadd.f32 %v341, %v587
        %v589 = vpop.f32.mrb[0].mxu0
        %v590 = vpop.f32.mrb[0].mxu0
        %v591 = vadd.f32 %v346, %v590
        %v592 = vpop.f32.mrb[0].mxu0
        %593 = vmatprep.mubr.bf16.mxu0 0
        %594 = vmatmul.mubr.bf16.gmra.mrb[0].mxu0 %v433
        %v595 = vpop.f32.mrb[0].mxu0
        %v596 = vadd.f32 %v351, %v595
        %v597 = vpop.f32.mrb[0].mxu0
        %v598 = vpop.f32.mrb[0].mxu0
        %v599 = vadd.f32 %v356, %v598
        %v600 = vpop.f32.mrb[0].mxu0
        %601 = vmatprep.mubr.bf16.mxu0 0
        %602 = vmatmul.mubr.bf16.gmra.mrb[0].mxu0 %v436
        %v603 = vpop.f32.mrb[0].mxu0
        %v604 = vadd.f32 %v361, %v603
        %v605 = vpop.f32.mrb[0].mxu0
        %v606 = vpop.f32.mrb[0].mxu0
        %v607 = vadd.f32 %v366, %v606
        %v608 = vpop.f32.mrb[0].mxu0
        %609 = vmatprep.mubr.bf16.mxu0 0
        %610 = vmatmul.mubr.bf16.gmra.mrb[0].mxu0 %v439
        %v611 = vpop.f32.mrb[0].mxu0
        %v612 = vadd.f32 %v371, %v611
        %v613 = vpop.f32.mrb[0].mxu0
        %v614 = vpop.f32.mrb[0].mxu0
        %v615 = vadd.f32 %v376, %v614
        %v616 = vpop.f32.mrb[0].mxu0
        %617 = vmatprep.mubr.bf16.mxu0 0
        %618 = vmatmul.mubr.bf16.gmra.mrb[0].mxu0 %v442
        %v619 = vpop.f32.mrb[0].mxu0
        %v620 = vadd.f32 %v381, %v619
        %v621 = vpop.f32.mrb[0].mxu0
        %v622 = vpop.f32.mrb[0].mxu0
        %v623 = vadd.f32 %v386, %v622
        %v624 = vpop.f32.mrb[0].mxu0
        %625 = vmatprep.mubr.bf16.mxu0 0
        %626 = vmatmul.mubr.bf16.gmra.mrb[0].mxu0 %v445
        %v627 = vpop.f32.mrb[0].mxu0
        %v628 = vadd.f32 %v391, %v627
        %v629 = vpop.f32.mrb[0].mxu0
        %v630 = vpop.f32.mrb[0].mxu0
        %v631 = vadd.f32 %v396, %v630
        %v632 = vpop.f32.mrb[0].mxu0
        %633 = vdwg.mxu0
        %v634 = vmul.f32 %v495, 0.70710677
        %v635 = vmul.f32 %v497, 0.70710677
        %v636 = vmul.f32 %v588, 0.70710677
        %v637 = vmul.f32 %v499, 0.70710677
        %v638 = vmul.f32 %v501, 0.70710677
        %v639 = vmul.f32 %v591, 0.70710677
        %v640 = vmul.f32 %v505, 0.70710677
        %v641 = vmul.f32 %v507, 0.70710677
        %v642 = vmul.f32 %v596, 0.70710677
        %v643 = vmul.f32 %v509, 0.70710677
        %v644 = vmul.f32 %v511, 0.70710677
        %v645 = vmul.f32 %v599, 0.70710677
        %v646 = vmul.f32 %v515, 0.70710677
        %v647 = vmul.f32 %v517, 0.70710677
        %v648 = vmul.f32 %v604, 0.70710677
        %v649 = vmul.f32 %v519, 0.70710677
        %v650 = vmul.f32 %v521, 0.70710677
        %v651 = vmul.f32 %v607, 0.70710677
        %v652 = vmul.f32 %v525, 0.70710677
        %v653 = vmul.f32 %v527, 0.70710677
        %v654 = vmul.f32 %v612, 0.70710677
        %v655 = vmul.f32 %v529, 0.70710677
        %v656 = vmul.f32 %v531, 0.70710677
        %v657 = vmul.f32 %v615, 0.70710677
        %v658 = vmul.f32 %v535, 0.70710677
        %v659 = vmul.f32 %v537, 0.70710677
        %v660 = vmul.f32 %v620, 0.70710677
        %v661 = vmul.f32 %v539, 0.70710677
        %v662 = vmul.f32 %v541, 0.70710677
        %v663 = vmul.f32 %v623, 0.70710677
        %v664 = vmul.f32 %v545, 0.70710677
        %v665 = vmul.f32 %v547, 0.70710677
        %v666 = vmul.f32 %v628, 0.70710677
        %v667 = vmul.f32 %v549, 0.70710677
        %v668 = vmul.f32 %v551, 0.70710677
        %v669 = vmul.f32 %v631, 0.70710677
        %v670 = vand.u32 2147483647, %v634
        %v671 = vand.u32 2147483647, %v635
        %v672 = vand.u32 2147483647, %v636
        %v673 = vand.u32 2147483647, %v637
        %v674 = vand.u32 2147483647, %v638
        %v675 = vand.u32 2147483647, %v639
        %v676 = vand.u32 2147483647, %v640
        %v677 = vand.u32 2147483647, %v641
        %v678 = vand.u32 2147483647, %v642
        %v679 = vand.u32 2147483647, %v643
        %v680 = vand.u32 2147483647, %v644
        %v681 = vand.u32 2147483647, %v645
        %v682 = vand.u32 2147483647, %v646
        %v683 = vand.u32 2147483647, %v647
        %v684 = vand.u32 2147483647, %v648
        %v685 = vand.u32 2147483647, %v649
        %v686 = vand.u32 2147483647, %v650
        %v687 = vand.u32 2147483647, %v651
        %v688 = vand.u32 2147483647, %v652
        %v689 = vand.u32 2147483647, %v653
        %v690 = vand.u32 2147483647, %v654
        %v691 = vand.u32 2147483647, %v655
        %v692 = vand.u32 2147483647, %v656
        %v693 = vand.u32 2147483647, %v657
        %v694 = vand.u32 2147483647, %v658
        %v695 = vand.u32 2147483647, %v659
        %v696 = vand.u32 2147483647, %v660
        %v697 = vand.u32 2147483647, %v661
        %v698 = vand.u32 2147483647, %v662
        %v699 = vand.u32 2147483647, %v663
        %v700 = vand.u32 2147483647, %v664
        %v701 = vand.u32 2147483647, %v665
        %v702 = vand.u32 2147483647, %v666
        %v703 = vand.u32 2147483647, %v667
        %v704 = vand.u32 2147483647, %v668
        %v705 = vand.u32 2147483647, %v669
        %v706 = vmul.f32 %v670, 0.47047
        %v707 = vmul.f32 %v671, 0.47047
        %v708 = vmul.f32 %v672, 0.47047
        %v709 = vmul.f32 %v673, 0.47047
        %v710 = vmul.f32 %v674, 0.47047
        %v711 = vmul.f32 %v675, 0.47047
        %v712 = vmul.f32 %v676, 0.47047
        %v713 = vmul.f32 %v677, 0.47047
        %v714 = vmul.f32 %v678, 0.47047
        %v715 = vmul.f32 %v679, 0.47047
        %v716 = vmul.f32 %v680, 0.47047
        %v717 = vmul.f32 %v681, 0.47047
        %v718 = vmul.f32 %v682, 0.47047
        %v719 = vmul.f32 %v683, 0.47047
        %v720 = vmul.f32 %v684, 0.47047
        %v721 = vmul.f32 %v685, 0.47047
        %v722 = vmul.f32 %v686, 0.47047
        %v723 = vmul.f32 %v687, 0.47047
        %v724 = vmul.f32 %v688, 0.47047
        %v725 = vmul.f32 %v689, 0.47047
        %v726 = vmul.f32 %v690, 0.47047
        %v727 = vmul.f32 %v691, 0.47047
        %v728 = vmul.f32 %v692, 0.47047
        %v729 = vmul.f32 %v693, 0.47047
        %v730 = vmul.f32 %v694, 0.47047
        %v731 = vmul.f32 %v695, 0.47047
        %v732 = vmul.f32 %v696, 0.47047
        %v733 = vmul.f32 %v697, 0.47047
        %v734 = vmul.f32 %v698, 0.47047
        %v735 = vmul.f32 %v699, 0.47047
        %v736 = vmul.f32 %v700, 0.47047
        %v737 = vmul.f32 %v701, 0.47047
        %v738 = vmul.f32 %v702, 0.47047
        %v739 = vmul.f32 %v703, 0.47047
        %v740 = vmul.f32 %v704, 0.47047
        %v741 = vmul.f32 %v705, 0.47047
        %v742 = vadd.f32 %v706, 1.0
        %v743 = vadd.f32 %v707, 1.0
        %v744 = vadd.f32 %v708, 1.0
        %v745 = vadd.f32 %v709, 1.0
        %v746 = vadd.f32 %v710, 1.0
        %v747 = vadd.f32 %v711, 1.0
        %v748 = vadd.f32 %v712, 1.0
        %v749 = vadd.f32 %v713, 1.0
        %v750 = vadd.f32 %v714, 1.0
        %v751 = vadd.f32 %v715, 1.0
        %v752 = vadd.f32 %v716, 1.0
        %v753 = vadd.f32 %v717, 1.0
        %v754 = vadd.f32 %v718, 1.0
        %v755 = vadd.f32 %v719, 1.0
        %v756 = vadd.f32 %v720, 1.0
        %v757 = vadd.f32 %v721, 1.0
        %v758 = vadd.f32 %v722, 1.0
        %v759 = vadd.f32 %v723, 1.0
        %v760 = vadd.f32 %v724, 1.0
        %v761 = vadd.f32 %v725, 1.0
        %v762 = vadd.f32 %v726, 1.0
        %v763 = vadd.f32 %v727, 1.0
        %v764 = vadd.f32 %v728, 1.0
        %v765 = vadd.f32 %v729, 1.0
        %v766 = vadd.f32 %v730, 1.0
        %v767 = vadd.f32 %v731, 1.0
        %v768 = vadd.f32 %v732, 1.0
        %v769 = vadd.f32 %v733, 1.0
        %v770 = vadd.f32 %v734, 1.0
        %v771 = vadd.f32 %v735, 1.0
        %v772 = vadd.f32 %v736, 1.0
        %v773 = vadd.f32 %v737, 1.0
        %v774 = vadd.f32 %v738, 1.0
        %v775 = vadd.f32 %v739, 1.0
        %v776 = vadd.f32 %v740, 1.0
        %v777 = vadd.f32 %v741, 1.0
        %v778 = vrcp.pop %v742
        %v779 = vmul.f32 1.0, %v778
        %v780 = vrcp.pop %v743
        %v781 = vmul.f32 1.0, %v780
        %v782 = vrcp.pop %v744
        %v783 = vmul.f32 1.0, %v782
        %v784 = vrcp.pop %v745
        %v785 = vmul.f32 1.0, %v784
        %v786 = vrcp.pop %v746
        %v787 = vmul.f32 1.0, %v786
        %v788 = vrcp.pop %v747
        %v789 = vmul.f32 1.0, %v788
        %v790 = vrcp.pop %v748
        %v791 = vmul.f32 1.0, %v790
        %v792 = vrcp.pop %v749
        %v793 = vmul.f32 1.0, %v792
        %v794 = vrcp.pop %v750
        %v795 = vmul.f32 1.0, %v794
        %v796 = vrcp.pop %v751
        %v797 = vmul.f32 1.0, %v796
        %v798 = vrcp.pop %v752
        %v799 = vmul.f32 1.0, %v798
        %v800 = vrcp.pop %v753
        %v801 = vmul.f32 1.0, %v800
        %v802 = vrcp.pop %v754
        %v803 = vmul.f32 1.0, %v802
        %v804 = vrcp.pop %v755
        %v805 = vmul.f32 1.0, %v804
        %v806 = vrcp.pop %v756
        %v807 = vmul.f32 1.0, %v806
        %v808 = vrcp.pop %v757
        %v809 = vmul.f32 1.0, %v808
        %v810 = vrcp.pop %v758
        %v811 = vmul.f32 1.0, %v810
        %v812 = vrcp.pop %v759
        %v813 = vmul.f32 1.0, %v812
        %v814 = vrcp.pop %v760
        %v815 = vmul.f32 1.0, %v814
        %v816 = vrcp.pop %v761
        %v817 = vmul.f32 1.0, %v816
        %v818 = vrcp.pop %v762
        %v819 = vmul.f32 1.0, %v818
        %v820 = vrcp.pop %v763
        %v821 = vmul.f32 1.0, %v820
        %v822 = vrcp.pop %v764
        %v823 = vmul.f32 1.0, %v822
        %v824 = vrcp.pop %v765
        %v825 = vmul.f32 1.0, %v824
        %v826 = vrcp.pop %v766
        %v827 = vmul.f32 1.0, %v826
        %v828 = vrcp.pop %v767
        %v829 = vmul.f32 1.0, %v828
        %v830 = vrcp.pop %v768
        %v831 = vmul.f32 1.0, %v830
        %v832 = vrcp.pop %v769
        %v833 = vmul.f32 1.0, %v832
        %v834 = vrcp.pop %v770
        %v835 = vmul.f32 1.0, %v834
        %v836 = vrcp.pop %v771
        %v837 = vmul.f32 1.0, %v836
        %v838 = vrcp.pop %v772
        %v839 = vmul.f32 1.0, %v838
        %v840 = vrcp.pop %v773
        %v841 = vmul.f32 1.0, %v840
        %v842 = vrcp.pop %v774
        %v843 = vmul.f32 1.0, %v842
        %v844 = vrcp.pop %v775
        %v845 = vmul.f32 1.0, %v844
        %v846 = vrcp.pop %v776
        %v847 = vmul.f32 1.0, %v846
        %v848 = vrcp.pop %v777
        %v849 = vmul.f32 1.0, %v848
        %v850 = vmul.f32 %v779, 0.7478556
        %v851 = vmul.f32 %v781, 0.7478556
        %v852 = vmul.f32 %v783, 0.7478556
        %v853 = vmul.f32 %v785, 0.7478556
        %v854 = vmul.f32 %v787, 0.7478556
        %v855 = vmul.f32 %v789, 0.7478556
        %v856 = vmul.f32 %v791, 0.7478556
        %v857 = vmul.f32 %v793, 0.7478556
        %v858 = vmul.f32 %v795, 0.7478556
        %v859 = vmul.f32 %v797, 0.7478556
        %v860 = vmul.f32 %v799, 0.7478556
        %v861 = vmul.f32 %v801, 0.7478556
        %v862 = vmul.f32 %v803, 0.7478556
        %v863 = vmul.f32 %v805, 0.7478556
        %v864 = vmul.f32 %v807, 0.7478556
        %v865 = vmul.f32 %v809, 0.7478556
        %v866 = vmul.f32 %v811, 0.7478556
        %v867 = vmul.f32 %v813, 0.7478556
        %v868 = vmul.f32 %v815, 0.7478556
        %v869 = vmul.f32 %v817, 0.7478556
        %v870 = vmul.f32 %v819, 0.7478556
        %v871 = vmul.f32 %v821, 0.7478556
        %v872 = vmul.f32 %v823, 0.7478556
        %v873 = vmul.f32 %v825, 0.7478556
        %v874 = vmul.f32 %v827, 0.7478556
        %v875 = vmul.f32 %v829, 0.7478556
        %v876 = vmul.f32 %v831, 0.7478556
        %v877 = vmul.f32 %v833, 0.7478556
        %v878 = vmul.f32 %v835, 0.7478556
        %v879 = vmul.f32 %v837, 0.7478556
        %v880 = vmul.f32 %v839, 0.7478556
        %v881 = vmul.f32 %v841, 0.7478556
        %v882 = vmul.f32 %v843, 0.7478556
        %v883 = vmul.f32 %v845, 0.7478556
        %v884 = vmul.f32 %v847, 0.7478556
        %v885 = vmul.f32 %v849, 0.7478556
        %v886 = vadd.f32 %v850, -0.0958798
        %v887 = vadd.f32 %v851, -0.0958798
        %v888 = vadd.f32 %v852, -0.0958798
        %v889 = vadd.f32 %v853, -0.0958798
        %v890 = vadd.f32 %v854, -0.0958798
        %v891 = vadd.f32 %v855, -0.0958798
        %v892 = vadd.f32 %v856, -0.0958798
        %v893 = vadd.f32 %v857, -0.0958798
        %v894 = vadd.f32 %v858, -0.0958798
        %v895 = vadd.f32 %v859, -0.0958798
        %v896 = vadd.f32 %v860, -0.0958798
        %v897 = vadd.f32 %v861, -0.0958798
        %v898 = vadd.f32 %v862, -0.0958798
        %v899 = vadd.f32 %v863, -0.0958798
        %v900 = vadd.f32 %v864, -0.0958798
        %v901 = vadd.f32 %v865, -0.0958798
        %v902 = vadd.f32 %v866, -0.0958798
        %v903 = vadd.f32 %v867, -0.0958798
        %v904 = vadd.f32 %v868, -0.0958798
        %v905 = vadd.f32 %v869, -0.0958798
        %v906 = vadd.f32 %v870, -0.0958798
        %v907 = vadd.f32 %v871, -0.0958798
        %v908 = vadd.f32 %v872, -0.0958798
        %v909 = vadd.f32 %v873, -0.0958798
        %v910 = vadd.f32 %v874, -0.0958798
        %v911 = vadd.f32 %v875, -0.0958798
        %v912 = vadd.f32 %v876, -0.0958798
        %v913 = vadd.f32 %v877, -0.0958798
        %v914 = vadd.f32 %v878, -0.0958798
        %v915 = vadd.f32 %v879, -0.0958798
        %v916 = vadd.f32 %v880, -0.0958798
        %v917 = vadd.f32 %v881, -0.0958798
        %v918 = vadd.f32 %v882, -0.0958798
        %v919 = vadd.f32 %v883, -0.0958798
        %v920 = vadd.f32 %v884, -0.0958798
        %v921 = vadd.f32 %v885, -0.0958798
        %v922 = vmul.f32 %v886, %v779
        %v923 = vmul.f32 %v887, %v781
        %v924 = vmul.f32 %v888, %v783
        %v925 = vmul.f32 %v889, %v785
        %v926 = vmul.f32 %v890, %v787
        %v927 = vmul.f32 %v891, %v789
        %v928 = vmul.f32 %v892, %v791
        %v929 = vmul.f32 %v893, %v793
        %v930 = vmul.f32 %v894, %v795
        %v931 = vmul.f32 %v895, %v797
        %v932 = vmul.f32 %v896, %v799
        %v933 = vmul.f32 %v897, %v801
        %v934 = vmul.f32 %v898, %v803
        %v935 = vmul.f32 %v899, %v805
        %v936 = vmul.f32 %v900, %v807
        %v937 = vmul.f32 %v901, %v809
        %v938 = vmul.f32 %v902, %v811
        %v939 = vmul.f32 %v903, %v813
        %v940 = vmul.f32 %v904, %v815
        %v941 = vmul.f32 %v905, %v817
        %v942 = vmul.f32 %v906, %v819
        %v943 = vmul.f32 %v907, %v821
        %v944 = vmul.f32 %v908, %v823
        %v945 = vmul.f32 %v909, %v825
        %v946 = vmul.f32 %v910, %v827
        %v947 = vmul.f32 %v911, %v829
        %v948 = vmul.f32 %v912, %v831
        %v949 = vmul.f32 %v913, %v833
        %v950 = vmul.f32 %v914, %v835
        %v951 = vmul.f32 %v915, %v837
        %v952 = vmul.f32 %v916, %v839
        %v953 = vmul.f32 %v917, %v841
        %v954 = vmul.f32 %v918, %v843
        %v955 = vmul.f32 %v919, %v845
        %v956 = vmul.f32 %v920, %v847
        %v957 = vmul.f32 %v921, %v849
        %v958 = vadd.f32 %v922, 0.3480242
        %v959 = vadd.f32 %v923, 0.3480242
        %v960 = vadd.f32 %v924, 0.3480242
        %v961 = vadd.f32 %v925, 0.3480242
        %v962 = vadd.f32 %v926, 0.3480242
        %v963 = vadd.f32 %v927, 0.3480242
        %v964 = vadd.f32 %v928, 0.3480242
        %v965 = vadd.f32 %v929, 0.3480242
        %v966 = vadd.f32 %v930, 0.3480242
        %v967 = vadd.f32 %v931, 0.3480242
        %v968 = vadd.f32 %v932, 0.3480242
        %v969 = vadd.f32 %v933, 0.3480242
        %v970 = vadd.f32 %v934, 0.3480242
        %v971 = vadd.f32 %v935, 0.3480242
        %v972 = vadd.f32 %v936, 0.3480242
        %v973 = vadd.f32 %v937, 0.3480242
        %v974 = vadd.f32 %v938, 0.3480242
        %v975 = vadd.f32 %v939, 0.3480242
        %v976 = vadd.f32 %v940, 0.3480242
        %v977 = vadd.f32 %v941, 0.3480242
        %v978 = vadd.f32 %v942, 0.3480242
        %v979 = vadd.f32 %v943, 0.3480242
        %v980 = vadd.f32 %v944, 0.3480242
        %v981 = vadd.f32 %v945, 0.3480242
        %v982 = vadd.f32 %v946, 0.3480242
        %v983 = vadd.f32 %v947, 0.3480242
        %v984 = vadd.f32 %v948, 0.3480242
        %v985 = vadd.f32 %v949, 0.3480242
        %v986 = vadd.f32 %v950, 0.3480242
        %v987 = vadd.f32 %v951, 0.3480242
        %v988 = vadd.f32 %v952, 0.3480242
        %v989 = vadd.f32 %v953, 0.3480242
        %v990 = vadd.f32 %v954, 0.3480242
        %v991 = vadd.f32 %v955, 0.3480242
        %v992 = vadd.f32 %v956, 0.3480242
        %v993 = vadd.f32 %v957, 0.3480242
        %v994 = vmul.f32 %v958, %v779
        %v995 = vmul.f32 %v959, %v781
        %v996 = vmul.f32 %v960, %v783
        %v997 = vmul.f32 %v961, %v785
        %v998 = vmul.f32 %v962, %v787
        %v999 = vmul.f32 %v963, %v789
        %v1000 = vmul.f32 %v964, %v791
        %v1001 = vmul.f32 %v965, %v793
        %v1002 = vmul.f32 %v966, %v795
        %v1003 = vmul.f32 %v967, %v797
        %v1004 = vmul.f32 %v968, %v799
        %v1005 = vmul.f32 %v969, %v801
        %v1006 = vmul.f32 %v970, %v803
        %v1007 = vmul.f32 %v971, %v805
        %v1008 = vmul.f32 %v972, %v807
        %v1009 = vmul.f32 %v973, %v809
        %v1010 = vmul.f32 %v974, %v811
        %v1011 = vmul.f32 %v975, %v813
        %v1012 = vmul.f32 %v976, %v815
        %v1013 = vmul.f32 %v977, %v817
        %v1014 = vmul.f32 %v978, %v819
        %v1015 = vmul.f32 %v979, %v821
        %v1016 = vmul.f32 %v980, %v823
        %v1017 = vmul.f32 %v981, %v825
        %v1018 = vmul.f32 %v982, %v827
        %v1019 = vmul.f32 %v983, %v829
        %v1020 = vmul.f32 %v984, %v831
        %v1021 = vmul.f32 %v985, %v833
        %v1022 = vmul.f32 %v986, %v835
        %v1023 = vmul.f32 %v987, %v837
        %v1024 = vmul.f32 %v988, %v839
        %v1025 = vmul.f32 %v989, %v841
        %v1026 = vmul.f32 %v990, %v843
        %v1027 = vmul.f32 %v991, %v845
        %v1028 = vmul.f32 %v992, %v847
        %v1029 = vmul.f32 %v993, %v849
        %v1030 = vsub.f32 0.0, %v670
        %v1031 = vsub.f32 0.0, %v671
        %v1032 = vsub.f32 0.0, %v672
        %v1033 = vsub.f32 0.0, %v673
        %v1034 = vsub.f32 0.0, %v674
        %v1035 = vsub.f32 0.0, %v675
        %v1036 = vsub.f32 0.0, %v676
        %v1037 = vsub.f32 0.0, %v677
        %v1038 = vsub.f32 0.0, %v678
        %v1039 = vsub.f32 0.0, %v679
        %v1040 = vsub.f32 0.0, %v680
        %v1041 = vsub.f32 0.0, %v681
        %v1042 = vsub.f32 0.0, %v682
        %v1043 = vsub.f32 0.0, %v683
        %v1044 = vsub.f32 0.0, %v684
        %v1045 = vsub.f32 0.0, %v685
        %v1046 = vsub.f32 0.0, %v686
        %v1047 = vsub.f32 0.0, %v687
        %v1048 = vsub.f32 0.0, %v688
        %v1049 = vsub.f32 0.0, %v689
        %v1050 = vsub.f32 0.0, %v690
        %v1051 = vsub.f32 0.0, %v691
        %v1052 = vsub.f32 0.0, %v692
        %v1053 = vsub.f32 0.0, %v693
        %v1054 = vsub.f32 0.0, %v694
        %v1055 = vsub.f32 0.0, %v695
        %v1056 = vsub.f32 0.0, %v696
        %v1057 = vsub.f32 0.0, %v697
        %v1058 = vsub.f32 0.0, %v698
        %v1059 = vsub.f32 0.0, %v699
        %v1060 = vsub.f32 0.0, %v700
        %v1061 = vsub.f32 0.0, %v701
        %v1062 = vsub.f32 0.0, %v702
        %v1063 = vsub.f32 0.0, %v703
        %v1064 = vsub.f32 0.0, %v704
        %v1065 = vsub.f32 0.0, %v705
        %v1066 = vmul.f32 %v1030, %v670
        %v1067 = vmul.f32 %v1031, %v671
        %v1068 = vmul.f32 %v1032, %v672
        %v1069 = vmul.f32 %v1033, %v673
        %v1070 = vmul.f32 %v1034, %v674
        %v1071 = vmul.f32 %v1035, %v675
        %v1072 = vmul.f32 %v1036, %v676
        %v1073 = vmul.f32 %v1037, %v677
        %v1074 = vmul.f32 %v1038, %v678
        %v1075 = vmul.f32 %v1039, %v679
        %v1076 = vmul.f32 %v1040, %v680
        %v1077 = vmul.f32 %v1041, %v681
        %v1078 = vmul.f32 %v1042, %v682
        %v1079 = vmul.f32 %v1043, %v683
        %v1080 = vmul.f32 %v1044, %v684
        %v1081 = vmul.f32 %v1045, %v685
        %v1082 = vmul.f32 %v1046, %v686
        %v1083 = vmul.f32 %v1047, %v687
        %v1084 = vmul.f32 %v1048, %v688
        %v1085 = vmul.f32 %v1049, %v689
        %v1086 = vmul.f32 %v1050, %v690
        %v1087 = vmul.f32 %v1051, %v691
        %v1088 = vmul.f32 %v1052, %v692
        %v1089 = vmul.f32 %v1053, %v693
        %v1090 = vmul.f32 %v1054, %v694
        %v1091 = vmul.f32 %v1055, %v695
        %v1092 = vmul.f32 %v1056, %v696
        %v1093 = vmul.f32 %v1057, %v697
        %v1094 = vmul.f32 %v1058, %v698
        %v1095 = vmul.f32 %v1059, %v699
        %v1096 = vmul.f32 %v1060, %v700
        %v1097 = vmul.f32 %v1061, %v701
        %v1098 = vmul.f32 %v1062, %v702
        %v1099 = vmul.f32 %v1063, %v703
        %v1100 = vmul.f32 %v1064, %v704
        %v1101 = vmul.f32 %v1065, %v705
        %v1102 = vmul.f32 %v1066, 1.442695
        %v1103 = vpow.pop %v1102
        %v1104 = vmul.f32 %v1067, 1.442695
        %v1105 = vpow.pop %v1104
        %v1106 = vmul.f32 %v1068, 1.442695
        %v1107 = vpow.pop %v1106
        %v1108 = vmul.f32 %v1069, 1.442695
        %v1109 = vpow.pop %v1108
        %v1110 = vmul.f32 %v1070, 1.442695
        %v1111 = vpow.pop %v1110
        %v1112 = vmul.f32 %v1071, 1.442695
        %v1113 = vpow.pop %v1112
        %v1114 = vmul.f32 %v1072, 1.442695
        %v1115 = vpow.pop %v1114
        %v1116 = vmul.f32 %v1073, 1.442695
        %v1117 = vpow.pop %v1116
        %v1118 = vmul.f32 %v1074, 1.442695
        %v1119 = vpow.pop %v1118
        %v1120 = vmul.f32 %v1075, 1.442695
        %v1121 = vpow.pop %v1120
        %v1122 = vmul.f32 %v1076, 1.442695
        %v1123 = vpow.pop %v1122
        %v1124 = vmul.f32 %v1077, 1.442695
        %v1125 = vpow.pop %v1124
        %v1126 = vmul.f32 %v1078, 1.442695
        %v1127 = vpow.pop %v1126
        %v1128 = vmul.f32 %v1079, 1.442695
        %v1129 = vpow.pop %v1128
        %v1130 = vmul.f32 %v1080, 1.442695
        %v1131 = vpow.pop %v1130
        %v1132 = vmul.f32 %v1081, 1.442695
        %v1133 = vpow.pop %v1132
        %v1134 = vmul.f32 %v1082, 1.442695
        %v1135 = vpow.pop %v1134
        %v1136 = vmul.f32 %v1083, 1.442695
        %v1137 = vpow.pop %v1136
        %v1138 = vmul.f32 %v1084, 1.442695
        %v1139 = vpow.pop %v1138
        %v1140 = vmul.f32 %v1085, 1.442695
        %v1141 = vpow.pop %v1140
        %v1142 = vmul.f32 %v1086, 1.442695
        %v1143 = vpow.pop %v1142
        %v1144 = vmul.f32 %v1087, 1.442695
        %v1145 = vpow.pop %v1144
        %v1146 = vmul.f32 %v1088, 1.442695
        %v1147 = vpow.pop %v1146
        %v1148 = vmul.f32 %v1089, 1.442695
        %v1149 = vpow.pop %v1148
        %v1150 = vmul.f32 %v1090, 1.442695
        %v1151 = vpow.pop %v1150
        %v1152 = vmul.f32 %v1091, 1.442695
        %v1153 = vpow.pop %v1152
        %v1154 = vmul.f32 %v1092, 1.442695
        %v1155 = vpow.pop %v1154
        %v1156 = vmul.f32 %v1093, 1.442695
        %v1157 = vpow.pop %v1156
        %v1158 = vmul.f32 %v1094, 1.442695
        %v1159 = vpow.pop %v1158
        %v1160 = vmul.f32 %v1095, 1.442695
        %v1161 = vpow.pop %v1160
        %v1162 = vmul.f32 %v1096, 1.442695
        %v1163 = vpow.pop %v1162
        %v1164 = vmul.f32 %v1097, 1.442695
        %v1165 = vpow.pop %v1164
        %v1166 = vmul.f32 %v1098, 1.442695
        %v1167 = vpow.pop %v1166
        %v1168 = vmul.f32 %v1099, 1.442695
        %v1169 = vpow.pop %v1168
        %v1170 = vmul.f32 %v1100, 1.442695
        %v1171 = vpow.pop %v1170
        %v1172 = vmul.f32 %v1101, 1.442695
        %v1173 = vpow.pop %v1172
        %v1174 = vmul.f32 %v994, %v1103
        %v1175 = vmul.f32 %v995, %v1105
        %v1176 = vmul.f32 %v996, %v1107
        %v1177 = vmul.f32 %v997, %v1109
        %v1178 = vmul.f32 %v998, %v1111
        %v1179 = vmul.f32 %v999, %v1113
        %v1180 = vmul.f32 %v1000, %v1115
        %v1181 = vmul.f32 %v1001, %v1117
        %v1182 = vmul.f32 %v1002, %v1119
        %v1183 = vmul.f32 %v1003, %v1121
        %v1184 = vmul.f32 %v1004, %v1123
        %v1185 = vmul.f32 %v1005, %v1125
        %v1186 = vmul.f32 %v1006, %v1127
        %v1187 = vmul.f32 %v1007, %v1129
        %v1188 = vmul.f32 %v1008, %v1131
        %v1189 = vmul.f32 %v1009, %v1133
        %v1190 = vmul.f32 %v1010, %v1135
        %v1191 = vmul.f32 %v1011, %v1137
        %v1192 = vmul.f32 %v1012, %v1139
        %v1193 = vmul.f32 %v1013, %v1141
        %v1194 = vmul.f32 %v1014, %v1143
        %v1195 = vmul.f32 %v1015, %v1145
        %v1196 = vmul.f32 %v1016, %v1147
        %v1197 = vmul.f32 %v1017, %v1149
        %v1198 = vmul.f32 %v1018, %v1151
        %v1199 = vmul.f32 %v1019, %v1153
        %v1200 = vmul.f32 %v1020, %v1155
        %v1201 = vmul.f32 %v1021, %v1157
        %v1202 = vmul.f32 %v1022, %v1159
        %v1203 = vmul.f32 %v1023, %v1161
        %v1204 = vmul.f32 %v1024, %v1163
        %v1205 = vmul.f32 %v1025, %v1165
        %v1206 = vmul.f32 %v1026, %v1167
        %v1207 = vmul.f32 %v1027, %v1169
        %v1208 = vmul.f32 %v1028, %v1171
        %v1209 = vmul.f32 %v1029, %v1173
        %vm1210 = vcmp.ge.f32.partialorder %v634, 0.0
        %vm1211 = vcmp.ge.f32.partialorder %v635, 0.0
        %vm1212 = vcmp.ge.f32.partialorder %v636, 0.0
        %vm1213 = vcmp.ge.f32.partialorder %v637, 0.0
        %vm1214 = vcmp.ge.f32.partialorder %v638, 0.0
        %vm1215 = vcmp.ge.f32.partialorder %v639, 0.0
        %vm1216 = vcmp.ge.f32.partialorder %v640, 0.0
        %vm1217 = vcmp.ge.f32.partialorder %v641, 0.0
        %vm1218 = vcmp.ge.f32.partialorder %v642, 0.0
        %vm1219 = vcmp.ge.f32.partialorder %v643, 0.0
        %vm1220 = vcmp.ge.f32.partialorder %v644, 0.0
        %vm1221 = vcmp.ge.f32.partialorder %v645, 0.0
        %vm1222 = vcmp.ge.f32.partialorder %v646, 0.0
        %vm1223 = vcmp.ge.f32.partialorder %v647, 0.0
        %vm1224 = vcmp.ge.f32.partialorder %v648, 0.0
        %vm1225 = vcmp.ge.f32.partialorder %v649, 0.0
        %vm1226 = vcmp.ge.f32.partialorder %v650, 0.0
        %vm1227 = vcmp.ge.f32.partialorder %v651, 0.0
        %vm1228 = vcmp.ge.f32.partialorder %v652, 0.0
        %vm1229 = vcmp.ge.f32.partialorder %v653, 0.0
        %vm1230 = vcmp.ge.f32.partialorder %v654, 0.0
        %vm1231 = vcmp.ge.f32.partialorder %v655, 0.0
        %vm1232 = vcmp.ge.f32.partialorder %v656, 0.0
        %vm1233 = vcmp.ge.f32.partialorder %v657, 0.0
        %vm1234 = vcmp.ge.f32.partialorder %v658, 0.0
        %vm1235 = vcmp.ge.f32.partialorder %v659, 0.0
        %vm1236 = vcmp.ge.f32.partialorder %v660, 0.0
        %vm1237 = vcmp.ge.f32.partialorder %v661, 0.0
        %vm1238 = vcmp.ge.f32.partialorder %v662, 0.0
        %vm1239 = vcmp.ge.f32.partialorder %v663, 0.0
        %vm1240 = vcmp.ge.f32.partialorder %v664, 0.0
        %vm1241 = vcmp.ge.f32.partialorder %v665, 0.0
        %vm1242 = vcmp.ge.f32.partialorder %v666, 0.0
        %vm1243 = vcmp.ge.f32.partialorder %v667, 0.0
        %vm1244 = vcmp.ge.f32.partialorder %v668, 0.0
        %vm1245 = vcmp.ge.f32.partialorder %v669, 0.0
        %v1246 = vsub.f32 1.0, %v1174
        %v1247 = vsub.f32 1.0, %v1175
        %v1248 = vsub.f32 1.0, %v1176
        %v1249 = vsub.f32 1.0, %v1177
        %v1250 = vsub.f32 1.0, %v1178
        %v1251 = vsub.f32 1.0, %v1179
        %v1252 = vsub.f32 1.0, %v1180
        %v1253 = vsub.f32 1.0, %v1181
        %v1254 = vsub.f32 1.0, %v1182
        %v1255 = vsub.f32 1.0, %v1183
        %v1256 = vsub.f32 1.0, %v1184
        %v1257 = vsub.f32 1.0, %v1185
        %v1258 = vsub.f32 1.0, %v1186
        %v1259 = vsub.f32 1.0, %v1187
        %v1260 = vsub.f32 1.0, %v1188
        %v1261 = vsub.f32 1.0, %v1189
        %v1262 = vsub.f32 1.0, %v1190
        %v1263 = vsub.f32 1.0, %v1191
        %v1264 = vsub.f32 1.0, %v1192
        %v1265 = vsub.f32 1.0, %v1193
        %v1266 = vsub.f32 1.0, %v1194
        %v1267 = vsub.f32 1.0, %v1195
        %v1268 = vsub.f32 1.0, %v1196
        %v1269 = vsub.f32 1.0, %v1197
        %v1270 = vsub.f32 1.0, %v1198
        %v1271 = vsub.f32 1.0, %v1199
        %v1272 = vsub.f32 1.0, %v1200
        %v1273 = vsub.f32 1.0, %v1201
        %v1274 = vsub.f32 1.0, %v1202
        %v1275 = vsub.f32 1.0, %v1203
        %v1276 = vsub.f32 1.0, %v1204
        %v1277 = vsub.f32 1.0, %v1205
        %v1278 = vsub.f32 1.0, %v1206
        %v1279 = vsub.f32 1.0, %v1207
        %v1280 = vsub.f32 1.0, %v1208
        %v1281 = vsub.f32 1.0, %v1209
        %v1282 = vsub.f32 %v1174, 1.0
        %v1283 = vsub.f32 %v1175, 1.0
        %v1284 = vsub.f32 %v1176, 1.0
        %v1285 = vsub.f32 %v1177, 1.0
        %v1286 = vsub.f32 %v1178, 1.0
        %v1287 = vsub.f32 %v1179, 1.0
        %v1288 = vsub.f32 %v1180, 1.0
        %v1289 = vsub.f32 %v1181, 1.0
        %v1290 = vsub.f32 %v1182, 1.0
        %v1291 = vsub.f32 %v1183, 1.0
        %v1292 = vsub.f32 %v1184, 1.0
        %v1293 = vsub.f32 %v1185, 1.0
        %v1294 = vsub.f32 %v1186, 1.0
        %v1295 = vsub.f32 %v1187, 1.0
        %v1296 = vsub.f32 %v1188, 1.0
        %v1297 = vsub.f32 %v1189, 1.0
        %v1298 = vsub.f32 %v1190, 1.0
        %v1299 = vsub.f32 %v1191, 1.0
        %v1300 = vsub.f32 %v1192, 1.0
        %v1301 = vsub.f32 %v1193, 1.0
        %v1302 = vsub.f32 %v1194, 1.0
        %v1303 = vsub.f32 %v1195, 1.0
        %v1304 = vsub.f32 %v1196, 1.0
        %v1305 = vsub.f32 %v1197, 1.0
        %v1306 = vsub.f32 %v1198, 1.0
        %v1307 = vsub.f32 %v1199, 1.0
        %v1308 = vsub.f32 %v1200, 1.0
        %v1309 = vsub.f32 %v1201, 1.0
        %v1310 = vsub.f32 %v1202, 1.0
        %v1311 = vsub.f32 %v1203, 1.0
        %v1312 = vsub.f32 %v1204, 1.0
        %v1313 = vsub.f32 %v1205, 1.0
        %v1314 = vsub.f32 %v1206, 1.0
        %v1315 = vsub.f32 %v1207, 1.0
        %v1316 = vsub.f32 %v1208, 1.0
        %v1317 = vsub.f32 %v1209, 1.0
        %v1318 = vsel %vm1210, %v1246, %v1282
        %v1319 = vsel %vm1211, %v1247, %v1283
        %v1320 = vsel %vm1212, %v1248, %v1284
        %v1321 = vsel %vm1213, %v1249, %v1285
        %v1322 = vsel %vm1214, %v1250, %v1286
        %v1323 = vsel %vm1215, %v1251, %v1287
        %v1324 = vsel %vm1216, %v1252, %v1288
        %v1325 = vsel %vm1217, %v1253, %v1289
        %v1326 = vsel %vm1218, %v1254, %v1290
        %v1327 = vsel %vm1219, %v1255, %v1291
        %v1328 = vsel %vm1220, %v1256, %v1292
        %v1329 = vsel %vm1221, %v1257, %v1293
        %v1330 = vsel %vm1222, %v1258, %v1294
        %v1331 = vsel %vm1223, %v1259, %v1295
        %v1332 = vsel %vm1224, %v1260, %v1296
        %v1333 = vsel %vm1225, %v1261, %v1297
        %v1334 = vsel %vm1226, %v1262, %v1298
        %v1335 = vsel %vm1227, %v1263, %v1299
        %v1336 = vsel %vm1228, %v1264, %v1300
        %v1337 = vsel %vm1229, %v1265, %v1301
        %v1338 = vsel %vm1230, %v1266, %v1302
        %v1339 = vsel %vm1231, %v1267, %v1303
        %v1340 = vsel %vm1232, %v1268, %v1304
        %v1341 = vsel %vm1233, %v1269, %v1305
        %v1342 = vsel %vm1234, %v1270, %v1306
        %v1343 = vsel %vm1235, %v1271, %v1307
        %v1344 = vsel %vm1236, %v1272, %v1308
        %v1345 = vsel %vm1237, %v1273, %v1309
        %v1346 = vsel %vm1238, %v1274, %v1310
        %v1347 = vsel %vm1239, %v1275, %v1311
        %v1348 = vsel %vm1240, %v1276, %v1312
        %v1349 = vsel %vm1241, %v1277, %v1313
        %v1350 = vsel %vm1242, %v1278, %v1314
        %v1351 = vsel %vm1243, %v1279, %v1315
        %v1352 = vsel %vm1244, %v1280, %v1316
        %v1353 = vsel %vm1245, %v1281, %v1317
        %v1354 = vmul.f32 %v495, 0.5
        %v1355 = vmul.f32 %v497, 0.5
        %v1356 = vmul.f32 %v588, 0.5
        %v1357 = vmul.f32 %v499, 0.5
        %v1358 = vmul.f32 %v501, 0.5
        %v1359 = vmul.f32 %v591, 0.5
        %v1360 = vmul.f32 %v505, 0.5
        %v1361 = vmul.f32 %v507, 0.5
        %v1362 = vmul.f32 %v596, 0.5
        %v1363 = vmul.f32 %v509, 0.5
        %v1364 = vmul.f32 %v511, 0.5
        %v1365 = vmul.f32 %v599, 0.5
        %v1366 = vmul.f32 %v515, 0.5
        %v1367 = vmul.f32 %v517, 0.5
        %v1368 = vmul.f32 %v604, 0.5
        %v1369 = vmul.f32 %v519, 0.5
        %v1370 = vmul.f32 %v521, 0.5
        %v1371 = vmul.f32 %v607, 0.5
        %v1372 = vmul.f32 %v525, 0.5
        %v1373 = vmul.f32 %v527, 0.5
        %v1374 = vmul.f32 %v612, 0.5
        %v1375 = vmul.f32 %v529, 0.5
        %v1376 = vmul.f32 %v531, 0.5
        %v1377 = vmul.f32 %v615, 0.5
        %v1378 = vmul.f32 %v535, 0.5
        %v1379 = vmul.f32 %v537, 0.5
        %v1380 = vmul.f32 %v620, 0.5
        %v1381 = vmul.f32 %v539, 0.5
        %v1382 = vmul.f32 %v541, 0.5
        %v1383 = vmul.f32 %v623, 0.5
        %v1384 = vmul.f32 %v545, 0.5
        %v1385 = vmul.f32 %v547, 0.5
        %v1386 = vmul.f32 %v628, 0.5
        %v1387 = vmul.f32 %v549, 0.5
        %v1388 = vmul.f32 %v551, 0.5
        %v1389 = vmul.f32 %v631, 0.5
        %v1390 = vadd.f32 %v1318, 1.0
        %v1391 = vadd.f32 %v1319, 1.0
        %v1392 = vadd.f32 %v1320, 1.0
        %v1393 = vadd.f32 %v1321, 1.0
        %v1394 = vadd.f32 %v1322, 1.0
        %v1395 = vadd.f32 %v1323, 1.0
        %v1396 = vadd.f32 %v1324, 1.0
        %v1397 = vadd.f32 %v1325, 1.0
        %v1398 = vadd.f32 %v1326, 1.0
        %v1399 = vadd.f32 %v1327, 1.0
        %v1400 = vadd.f32 %v1328, 1.0
        %v1401 = vadd.f32 %v1329, 1.0
        %v1402 = vadd.f32 %v1330, 1.0
        %v1403 = vadd.f32 %v1331, 1.0
        %v1404 = vadd.f32 %v1332, 1.0
        %v1405 = vadd.f32 %v1333, 1.0
        %v1406 = vadd.f32 %v1334, 1.0
        %v1407 = vadd.f32 %v1335, 1.0
        %v1408 = vadd.f32 %v1336, 1.0
        %v1409 = vadd.f32 %v1337, 1.0
        %v1410 = vadd.f32 %v1338, 1.0
        %v1411 = vadd.f32 %v1339, 1.0
        %v1412 = vadd.f32 %v1340, 1.0
        %v1413 = vadd.f32 %v1341, 1.0
        %v1414 = vadd.f32 %v1342, 1.0
        %v1415 = vadd.f32 %v1343, 1.0
        %v1416 = vadd.f32 %v1344, 1.0
        %v1417 = vadd.f32 %v1345, 1.0
        %v1418 = vadd.f32 %v1346, 1.0
        %v1419 = vadd.f32 %v1347, 1.0
        %v1420 = vadd.f32 %v1348, 1.0
        %v1421 = vadd.f32 %v1349, 1.0
        %v1422 = vadd.f32 %v1350, 1.0
        %v1423 = vadd.f32 %v1351, 1.0
        %v1424 = vadd.f32 %v1352, 1.0
        %v1425 = vadd.f32 %v1353, 1.0
        %v1426 = vmul.f32 %v1354, %v1390
        %v1427 = vmul.f32 %v1355, %v1391
        %v1428 = vmul.f32 %v1356, %v1392
        %v1429 = vmul.f32 %v1357, %v1393
        %v1430 = vmul.f32 %v1358, %v1394
        %v1431 = vmul.f32 %v1359, %v1395
        %v1432 = vmul.f32 %v1360, %v1396
        %v1433 = vmul.f32 %v1361, %v1397
        %v1434 = vmul.f32 %v1362, %v1398
        %v1435 = vmul.f32 %v1363, %v1399
        %v1436 = vmul.f32 %v1364, %v1400
        %v1437 = vmul.f32 %v1365, %v1401
        %v1438 = vmul.f32 %v1366, %v1402
        %v1439 = vmul.f32 %v1367, %v1403
        %v1440 = vmul.f32 %v1368, %v1404
        %v1441 = vmul.f32 %v1369, %v1405
        %v1442 = vmul.f32 %v1370, %v1406
        %v1443 = vmul.f32 %v1371, %v1407
        %v1444 = vmul.f32 %v1372, %v1408
        %v1445 = vmul.f32 %v1373, %v1409
        %v1446 = vmul.f32 %v1374, %v1410
        %v1447 = vmul.f32 %v1375, %v1411
        %v1448 = vmul.f32 %v1376, %v1412
        %v1449 = vmul.f32 %v1377, %v1413
        %v1450 = vmul.f32 %v1378, %v1414
        %v1451 = vmul.f32 %v1379, %v1415
        %v1452 = vmul.f32 %v1380, %v1416
        %v1453 = vmul.f32 %v1381, %v1417
        %v1454 = vmul.f32 %v1382, %v1418
        %v1455 = vmul.f32 %v1383, %v1419
        %v1456 = vmul.f32 %v1384, %v1420
        %v1457 = vmul.f32 %v1385, %v1421
        %v1458 = vmul.f32 %v1386, %v1422
        %v1459 = vmul.f32 %v1387, %v1423
        %v1460 = vmul.f32 %v1388, %v1424
        %v1461 = vmul.f32 %v1389, %v1425
        %v1462 = vpack.c.bf16 %v1429, %v1426
        %v1463 = vpack.c.bf16 %v1430, %v1427
        %v1464 = vpack.c.bf16 %v1431, %v1428
        %v1465 = vpack.c.bf16 %v1435, %v1432
        %v1466 = vpack.c.bf16 %v1436, %v1433
        %v1467 = vpack.c.bf16 %v1437, %v1434
        %v1468 = vpack.c.bf16 %v1441, %v1438
        %v1469 = vpack.c.bf16 %v1442, %v1439
        %v1470 = vpack.c.bf16 %v1443, %v1440
        %v1471 = vpack.c.bf16 %v1447, %v1444
        %v1472 = vpack.c.bf16 %v1448, %v1445
        %v1473 = vpack.c.bf16 %v1449, %v1446
        %v1474 = vpack.c.bf16 %v1453, %v1450
        %v1475 = vpack.c.bf16 %v1454, %v1451
        %v1476 = vpack.c.bf16 %v1455, %v1452
        %v1477 = vpack.c.bf16 %v1459, %v1456
        %v1478 = vpack.c.bf16 %v1460, %v1457
        %v1479 = vpack.c.bf16 %v1461, %v1458
        %v1480 = vld [vmem:[%s3] sm:$0xf]
        %v1481 = vld [vmem:[%s3 + $0x4] sm:$0xf]
        %v1482 = vld [vmem:[%s3 + $0x8] sm:$0xf]
        %v1483 = vld [vmem:[%s3 + $0xc] sm:$0xf]
        %v1484 = vld [vmem:[%s3 + $0x10] sm:$0xf]
        %v1485 = vld [vmem:[%s3 + $0x14] sm:$0xf]
        %v1486 = vld [vmem:[%s3 + $0x18] sm:$0xf]
        %v1487 = vld [vmem:[%s3 + $0x1c] sm:$0xf]
        %v1488 = vld [vmem:[%s3 + $0x20] sm:$0xf]
        %v1489 = vld [vmem:[%s3 + $0x24] sm:$0xf]
        %v1490 = vld [vmem:[%s3 + $0x28] sm:$0xf]
        %v1491 = vld [vmem:[%s3 + $0x2c] sm:$0xf]
        %v1492 = vld [vmem:[%s3 + $0x30] sm:$0xf]
        %v1493 = vld [vmem:[%s3 + $0x34] sm:$0xf]
        %v1494 = vld [vmem:[%s3 + $0x38] sm:$0xf]
        %v1495 = vld [vmem:[%s3 + $0x3c] sm:$0xf]
        %v1496 = vld [vmem:[%s3 + $0x40] sm:$0xf]
        %v1497 = vld [vmem:[%s3 + $0x44] sm:$0xf]
        %v1498 = vld [vmem:[%s3 + $0x48] sm:$0xf]
        %v1499 = vld [vmem:[%s3 + $0x4c] sm:$0xf]
        %v1500 = vld [vmem:[%s3 + $0x50] sm:$0xf]
        %v1501 = vld [vmem:[%s3 + $0x54] sm:$0xf]
        %v1502 = vld [vmem:[%s3 + $0x58] sm:$0xf]
        %v1503 = vld [vmem:[%s3 + $0x5c] sm:$0xf]
        %v1504 = vld [vmem:[%s4] sm:$0xff]
        %v1505 = vld [vmem:[%s4 + $0x8] sm:$0xff]
        %v1506 = vld [vmem:[%s4 + $0x10] sm:$0xff]
        %v1507 = vld [vmem:[%s4 + $0x18] sm:$0xff]
        %v1508 = vld [vmem:[%s4 + $0x20] sm:$0xff]
        %v1509 = vld [vmem:[%s4 + $0x28] sm:$0xff]
        %v1510 = vld [vmem:[%s4 + $0x30] sm:$0xff]
        %v1511 = vld [vmem:[%s4 + $0x38] sm:$0xff]
        %v1512 = vld [vmem:[%s4 + $0x40] sm:$0xff]
        %v1513 = vld [vmem:[%s4 + $0x48] sm:$0xff]
        %v1514 = vld [vmem:[%s4 + $0x50] sm:$0xff]
        %v1515 = vld [vmem:[%s4 + $0x58] sm:$0xff]
        %v1516 = vld [vmem:[%s4 + $0x60] sm:$0xff]
        %v1517 = vld [vmem:[%s4 + $0x68] sm:$0xff]
        %v1518 = vld [vmem:[%s4 + $0x70] sm:$0xff]
        %v1519 = vld [vmem:[%s4 + $0x78] sm:$0xff]
        %v1520 = vld [vmem:[%s4 + $0x80] sm:$0xff]
        %v1521 = vld [vmem:[%s4 + $0x88] sm:$0xff]
        %v1522 = vld [vmem:[%s4 + $0x90] sm:$0xff]
        %v1523 = vld [vmem:[%s4 + $0x98] sm:$0xff]
        %v1524 = vld [vmem:[%s4 + $0xa0] sm:$0xff]
        %v1525 = vld [vmem:[%s4 + $0xa8] sm:$0xff]
        %v1526 = vld [vmem:[%s4 + $0xb0] sm:$0xff]
        %v1527 = vld [vmem:[%s4 + $0xb8] sm:$0xff]
        %1529 = vset.pattern.permute.xlu0 0
        %1530 = vperm.xlu0 %1529, %v1504
        %v1531 = vpop.permute.xlu0 %1530
        %1534 = vset.pattern.permute.xlu0 0
        %1535 = vperm.xlu0 %1534, %v1505
        %v1536 = vpop.permute.xlu0 %1535
        %1539 = vset.pattern.permute.xlu0 0
        %1540 = vperm.xlu0 %1539, %v1506
        %v1541 = vpop.permute.xlu0 %1540
        %1544 = vset.pattern.permute.xlu0 0
        %1545 = vperm.xlu0 %1544, %v1507
        %v1546 = vpop.permute.xlu0 %1545
        %1549 = vset.pattern.permute.xlu0 0
        %1550 = vperm.xlu0 %1549, %v1508
        %v1551 = vpop.permute.xlu0 %1550
        %1554 = vset.pattern.permute.xlu0 0
        %1555 = vperm.xlu0 %1554, %v1509
        %v1556 = vpop.permute.xlu0 %1555
        %1559 = vset.pattern.permute.xlu0 0
        %1560 = vperm.xlu0 %1559, %v1510
        %v1561 = vpop.permute.xlu0 %1560
        %1564 = vset.pattern.permute.xlu0 0
        %1565 = vperm.xlu0 %1564, %v1511
        %v1566 = vpop.permute.xlu0 %1565
        %1569 = vset.pattern.permute.xlu0 0
        %1570 = vperm.xlu0 %1569, %v1512
        %v1571 = vpop.permute.xlu0 %1570
        %1574 = vset.pattern.permute.xlu0 0
        %1575 = vperm.xlu0 %1574, %v1513
        %v1576 = vpop.permute.xlu0 %1575
        %1579 = vset.pattern.permute.xlu0 0
        %1580 = vperm.xlu0 %1579, %v1514
        %v1581 = vpop.permute.xlu0 %1580
        %1584 = vset.pattern.permute.xlu0 0
        %1585 = vperm.xlu0 %1584, %v1515
        %v1586 = vpop.permute.xlu0 %1585
        %1589 = vset.pattern.permute.xlu0 0
        %1590 = vperm.xlu0 %1589, %v1516
        %v1591 = vpop.permute.xlu0 %1590
        %1594 = vset.pattern.permute.xlu0 0
        %1595 = vperm.xlu0 %1594, %v1517
        %v1596 = vpop.permute.xlu0 %1595
        %1599 = vset.pattern.permute.xlu0 0
        %1600 = vperm.xlu0 %1599, %v1518
        %v1601 = vpop.permute.xlu0 %1600
        %1604 = vset.pattern.permute.xlu0 0
        %1605 = vperm.xlu0 %1604, %v1519
        %v1606 = vpop.permute.xlu0 %1605
        %1609 = vset.pattern.permute.xlu0 0
        %1610 = vperm.xlu0 %1609, %v1520
        %v1611 = vpop.permute.xlu0 %1610
        %1614 = vset.pattern.permute.xlu0 0
        %1615 = vperm.xlu0 %1614, %v1521
        %v1616 = vpop.permute.xlu0 %1615
        %1619 = vset.pattern.permute.xlu0 0
        %1620 = vperm.xlu0 %1619, %v1522
        %v1621 = vpop.permute.xlu0 %1620
        %1624 = vset.pattern.permute.xlu0 0
        %1625 = vperm.xlu0 %1624, %v1523
        %v1626 = vpop.permute.xlu0 %1625
        %1629 = vset.pattern.permute.xlu0 0
        %1630 = vperm.xlu0 %1629, %v1524
        %v1631 = vpop.permute.xlu0 %1630
        %1634 = vset.pattern.permute.xlu0 0
        %1635 = vperm.xlu0 %1634, %v1525
        %v1636 = vpop.permute.xlu0 %1635
        %1639 = vset.pattern.permute.xlu0 0
        %1640 = vperm.xlu0 %1639, %v1526
        %v1641 = vpop.permute.xlu0 %1640
        %1644 = vset.pattern.permute.xlu0 0
        %1645 = vperm.xlu0 %1644, %v1527
        %v1646 = vpop.permute.xlu0 %1645
        %v1672 = vunpack.c.l.b16 %v1480
        %v1673 = vunpack.c.l.b16 %v1481
        %v1674 = vunpack.c.l.b16 %v1482
        %v1675 = vunpack.c.l.b16 %v1483
        %v1676 = vunpack.c.l.b16 %v1484
        %v1677 = vunpack.c.l.b16 %v1485
        %v1678 = vunpack.c.l.b16 %v1486
        %v1679 = vunpack.c.l.b16 %v1487
        %v1680 = vunpack.c.l.b16 %v1488
        %v1681 = vunpack.c.l.b16 %v1489
        %v1682 = vunpack.c.l.b16 %v1490
        %v1683 = vunpack.c.l.b16 %v1491
        %v1684 = vunpack.c.l.b16 %v1492
        %v1685 = vunpack.c.l.b16 %v1493
        %v1686 = vunpack.c.l.b16 %v1494
        %v1687 = vunpack.c.l.b16 %v1495
        %v1688 = vunpack.c.l.b16 %v1496
        %v1689 = vunpack.c.l.b16 %v1497
        %v1690 = vunpack.c.l.b16 %v1498
        %v1691 = vunpack.c.l.b16 %v1499
        %v1692 = vunpack.c.l.b16 %v1500
        %v1693 = vunpack.c.l.b16 %v1501
        %v1694 = vunpack.c.l.b16 %v1502
        %v1695 = vunpack.c.l.b16 %v1503
        %v1696 = vpack.c.b16 %v1673, %v1672
        %v1697 = vpack.c.b16 %v1675, %v1674
        %v1698 = vpack.c.b16 %v1677, %v1676
        %v1699 = vpack.c.b16 %v1679, %v1678
        %v1700 = vpack.c.b16 %v1681, %v1680
        %v1701 = vpack.c.b16 %v1683, %v1682
        %v1702 = vpack.c.b16 %v1685, %v1684
        %v1703 = vpack.c.b16 %v1687, %v1686
        %v1704 = vpack.c.b16 %v1689, %v1688
        %v1705 = vpack.c.b16 %v1691, %v1690
        %v1706 = vpack.c.b16 %v1693, %v1692
        %v1707 = vpack.c.b16 %v1695, %v1694
        %vm1708 = vcmask 785408
        %v1710 = vsel %vm1708, %v1696, 0
        %v1713 = vsel %vm1708, %v1697, 0
        %v1716 = vsel %vm1708, %v1698, 0
        %v1719 = vsel %vm1708, %v1699, 0
        %v1722 = vsel %vm1708, %v1700, 0
        %v1725 = vsel %vm1708, %v1701, 0
        %v1728 = vsel %vm1708, %v1702, 0
        %v1731 = vsel %vm1708, %v1703, 0
        %v1734 = vsel %vm1708, %v1704, 0
        %v1737 = vsel %vm1708, %v1705, 0
        %v1740 = vsel %vm1708, %v1706, 0
        %v1743 = vsel %vm1708, %v1707, 0
        %1745 = vmatprep.subr.bf16.mxu0 %v1463
        %1746 = vmatpush1.bf16.msra.mxu0 %v1462
        %1747 = vmatprep.subr.bf16.mxu0 %v1466
        %1748 = vmatpush1.bf16.msra.mxu0 %v1465
        %1749 = vmatprep.subr.bf16.mxu0 %v1469
        %1750 = vmatpush1.bf16.msra.mxu0 %v1468
        %1751 = vmatprep.subr.bf16.mxu0 %v1472
        %1752 = vmatpush1.bf16.msra.mxu0 %v1471
        %1753 = vmatprep.subr.bf16.mxu0 %v1475
        %1754 = vmatpush1.bf16.msra.mxu0 %v1474
        %1755 = vmatprep.subr.bf16.mxu0 %v1478
        %1756 = vmatpush1.bf16.msra.mxu0 %v1477
        %1757 = vmatprep.subr.bf16.mxu0 0
        %1758 = vmatpush1.bf16.msra.mxu0 0
        %1759 = vmatprep.subr.bf16.mxu0 0
        %1760 = vmatpush1.bf16.msra.mxu0 0
        %1761 = vmatprep.subr.bf16.mxu0 0
        %1762 = vmatpush1.bf16.msra.mxu0 0
        %1763 = vmatprep.subr.bf16.mxu0 0
        %1764 = vmatpush1.bf16.msra.mxu0 0
        %1765 = vmatprep.subr.bf16.mxu0 0
        %1766 = vmatpush1.bf16.msra.mxu0 0
        %1767 = vmatprep.subr.bf16.mxu0 0
        %1768 = vmatpush1.bf16.msra.mxu0 0
        %1769 = vmatprep.subr.bf16.mxu0 0
        %1770 = vmatpush1.bf16.msra.mxu0 0
        %1771 = vmatprep.subr.bf16.mxu0 0
        %1772 = vmatpush1.bf16.msra.mxu0 0
        %1773 = vmatprep.subr.bf16.mxu0 0
        %1774 = vmatpush1.bf16.msra.mxu0 0
        %1775 = vmatprep.subr.bf16.mxu0 0
        %1776 = vmatpush1.bf16.msra.mxu0 0
        %1777 = vmatprep.mubr.bf16.mxu0 0
        %1778 = vmatmul.mubr.bf16.gmra.mrb[0].mxu0 %v1710
        %v1779 = vpop.f32.mrb[0].mxu0
        %v1780 = vadd.f32 %v1531, %v1779
        %v1781 = vpop.f32.mrb[0].mxu0
        %v1782 = vadd.f32 %v1531, %v1781
        %v1783 = vpop.f32.mrb[0].mxu0
        %v1784 = vadd.f32 %v1536, %v1783
        %v1785 = vpop.f32.mrb[0].mxu0
        %v1786 = vadd.f32 %v1536, %v1785
        %1787 = vmatprep.mubr.bf16.mxu0 0
        %1788 = vmatmul.mubr.bf16.gmra.mrb[0].mxu0 %v1713
        %v1789 = vpop.f32.mrb[0].mxu0
        %v1790 = vadd.f32 %v1541, %v1789
        %v1791 = vpop.f32.mrb[0].mxu0
        %v1792 = vadd.f32 %v1541, %v1791
        %v1793 = vpop.f32.mrb[0].mxu0
        %v1794 = vadd.f32 %v1546, %v1793
        %v1795 = vpop.f32.mrb[0].mxu0
        %v1796 = vadd.f32 %v1546, %v1795
        %1797 = vmatprep.mubr.bf16.mxu0 0
        %1798 = vmatmul.mubr.bf16.gmra.mrb[0].mxu0 %v1716
        %v1799 = vpop.f32.mrb[0].mxu0
        %v1800 = vadd.f32 %v1551, %v1799
        %v1801 = vpop.f32.mrb[0].mxu0
        %v1802 = vadd.f32 %v1551, %v1801
        %v1803 = vpop.f32.mrb[0].mxu0
        %v1804 = vadd.f32 %v1556, %v1803
        %v1805 = vpop.f32.mrb[0].mxu0
        %v1806 = vadd.f32 %v1556, %v1805
        %1807 = vmatprep.mubr.bf16.mxu0 0
        %1808 = vmatmul.mubr.bf16.gmra.mrb[0].mxu0 %v1719
        %v1809 = vpop.f32.mrb[0].mxu0
        %v1810 = vadd.f32 %v1561, %v1809
        %v1811 = vpop.f32.mrb[0].mxu0
        %v1812 = vadd.f32 %v1561, %v1811
        %v1813 = vpop.f32.mrb[0].mxu0
        %v1814 = vadd.f32 %v1566, %v1813
        %v1815 = vpop.f32.mrb[0].mxu0
        %v1816 = vadd.f32 %v1566, %v1815
        %1817 = vmatprep.mubr.bf16.mxu0 0
        %1818 = vmatmul.mubr.bf16.gmra.mrb[0].mxu0 %v1722
        %v1819 = vpop.f32.mrb[0].mxu0
        %v1820 = vadd.f32 %v1571, %v1819
        %v1821 = vpop.f32.mrb[0].mxu0
        %v1822 = vadd.f32 %v1571, %v1821
        %v1823 = vpop.f32.mrb[0].mxu0
        %v1824 = vadd.f32 %v1576, %v1823
        %v1825 = vpop.f32.mrb[0].mxu0
        %v1826 = vadd.f32 %v1576, %v1825
        %1827 = vmatprep.mubr.bf16.mxu0 0
        %1828 = vmatmul.mubr.bf16.gmra.mrb[0].mxu0 %v1725
        %v1829 = vpop.f32.mrb[0].mxu0
        %v1830 = vadd.f32 %v1581, %v1829
        %v1831 = vpop.f32.mrb[0].mxu0
        %v1832 = vadd.f32 %v1581, %v1831
        %v1833 = vpop.f32.mrb[0].mxu0
        %v1834 = vadd.f32 %v1586, %v1833
        %v1835 = vpop.f32.mrb[0].mxu0
        %v1836 = vadd.f32 %v1586, %v1835
        %1837 = vmatprep.mubr.bf16.mxu0 0
        %1838 = vmatmul.mubr.bf16.gmra.mrb[0].mxu0 %v1728
        %v1839 = vpop.f32.mrb[0].mxu0
        %v1840 = vadd.f32 %v1591, %v1839
        %v1841 = vpop.f32.mrb[0].mxu0
        %v1842 = vadd.f32 %v1591, %v1841
        %v1843 = vpop.f32.mrb[0].mxu0
        %v1844 = vadd.f32 %v1596, %v1843
        %v1845 = vpop.f32.mrb[0].mxu0
        %v1846 = vadd.f32 %v1596, %v1845
        %1847 = vmatprep.mubr.bf16.mxu0 0
        %1848 = vmatmul.mubr.bf16.gmra.mrb[0].mxu0 %v1731
        %v1849 = vpop.f32.mrb[0].mxu0
        %v1850 = vadd.f32 %v1601, %v1849
        %v1851 = vpop.f32.mrb[0].mxu0
        %v1852 = vadd.f32 %v1601, %v1851
        %v1853 = vpop.f32.mrb[0].mxu0
        %v1854 = vadd.f32 %v1606, %v1853
        %v1855 = vpop.f32.mrb[0].mxu0
        %v1856 = vadd.f32 %v1606, %v1855
        %1857 = vmatprep.mubr.bf16.mxu0 0
        %1858 = vmatmul.mubr.bf16.gmra.mrb[0].mxu0 %v1734
        %v1859 = vpop.f32.mrb[0].mxu0
        %v1860 = vadd.f32 %v1611, %v1859
        %v1861 = vpop.f32.mrb[0].mxu0
        %v1862 = vadd.f32 %v1611, %v1861
        %v1863 = vpop.f32.mrb[0].mxu0
        %v1864 = vadd.f32 %v1616, %v1863
        %v1865 = vpop.f32.mrb[0].mxu0
        %v1866 = vadd.f32 %v1616, %v1865
        %1867 = vmatprep.mubr.bf16.mxu0 0
        %1868 = vmatmul.mubr.bf16.gmra.mrb[0].mxu0 %v1737
        %v1869 = vpop.f32.mrb[0].mxu0
        %v1870 = vadd.f32 %v1621, %v1869
        %v1871 = vpop.f32.mrb[0].mxu0
        %v1872 = vadd.f32 %v1621, %v1871
        %v1873 = vpop.f32.mrb[0].mxu0
        %v1874 = vadd.f32 %v1626, %v1873
        %v1875 = vpop.f32.mrb[0].mxu0
        %v1876 = vadd.f32 %v1626, %v1875
        %1877 = vmatprep.mubr.bf16.mxu0 0
        %1878 = vmatmul.mubr.bf16.gmra.mrb[0].mxu0 %v1740
        %v1879 = vpop.f32.mrb[0].mxu0
        %v1880 = vadd.f32 %v1631, %v1879
        %v1881 = vpop.f32.mrb[0].mxu0
        %v1882 = vadd.f32 %v1631, %v1881
        %v1883 = vpop.f32.mrb[0].mxu0
        %v1884 = vadd.f32 %v1636, %v1883
        %v1885 = vpop.f32.mrb[0].mxu0
        %v1886 = vadd.f32 %v1636, %v1885
        %1887 = vmatprep.mubr.bf16.mxu0 0
        %1888 = vmatmul.mubr.bf16.gmra.mrb[0].mxu0 %v1743
        %v1889 = vpop.f32.mrb[0].mxu0
        %v1890 = vadd.f32 %v1641, %v1889
        %v1891 = vpop.f32.mrb[0].mxu0
        %v1892 = vadd.f32 %v1641, %v1891
        %v1893 = vpop.f32.mrb[0].mxu0
        %v1894 = vadd.f32 %v1646, %v1893
        %v1895 = vpop.f32.mrb[0].mxu0
        %v1896 = vadd.f32 %v1646, %v1895
        %1897 = vdwg.mxu0
        %1898 = vmatprep.subr.bf16.mxu0 0
        %1899 = vmatpush1.bf16.msra.mxu0 %v1464
        %1900 = vmatprep.subr.bf16.mxu0 0
        %1901 = vmatpush1.bf16.msra.mxu0 %v1467
        %1902 = vmatprep.subr.bf16.mxu0 0
        %1903 = vmatpush1.bf16.msra.mxu0 %v1470
        %1904 = vmatprep.subr.bf16.mxu0 0
        %1905 = vmatpush1.bf16.msra.mxu0 %v1473
        %1906 = vmatprep.subr.bf16.mxu0 0
        %1907 = vmatpush1.bf16.msra.mxu0 %v1476
        %1908 = vmatprep.subr.bf16.mxu0 0
        %1909 = vmatpush1.bf16.msra.mxu0 %v1479
        %1910 = vmatprep.subr.bf16.mxu0 0
        %1911 = vmatpush1.bf16.msra.mxu0 0
        %1912 = vmatprep.subr.bf16.mxu0 0
        %1913 = vmatpush1.bf16.msra.mxu0 0
        %1914 = vmatprep.subr.bf16.mxu0 0
        %1915 = vmatpush1.bf16.msra.mxu0 0
        %1916 = vmatprep.subr.bf16.mxu0 0
        %1917 = vmatpush1.bf16.msra.mxu0 0
        %1918 = vmatprep.subr.bf16.mxu0 0
        %1919 = vmatpush1.bf16.msra.mxu0 0
        %1920 = vmatprep.subr.bf16.mxu0 0
        %1921 = vmatpush1.bf16.msra.mxu0 0
        %1922 = vmatprep.subr.bf16.mxu0 0
        %1923 = vmatpush1.bf16.msra.mxu0 0
        %1924 = vmatprep.subr.bf16.mxu0 0
        %1925 = vmatpush1.bf16.msra.mxu0 0
        %1926 = vmatprep.subr.bf16.mxu0 0
        %1927 = vmatpush1.bf16.msra.mxu0 0
        %1928 = vmatprep.subr.bf16.mxu0 0
        %1929 = vmatpush1.bf16.msra.mxu0 0
        %1930 = vmatprep.mubr.bf16.mxu0 0
        %1931 = vmatmul.mubr.bf16.gmra.mrb[0].mxu0 %v1710
        %v1932 = vpop.f32.mrb[0].mxu0
        %v1933 = vadd.f32 %v1531, %v1932
        %v1934 = vpop.f32.mrb[0].mxu0
        %v1935 = vpop.f32.mrb[0].mxu0
        %v1936 = vadd.f32 %v1536, %v1935
        %v1937 = vpop.f32.mrb[0].mxu0
        %1938 = vmatprep.mubr.bf16.mxu0 0
        %1939 = vmatmul.mubr.bf16.gmra.mrb[0].mxu0 %v1713
        %v1940 = vpop.f32.mrb[0].mxu0
        %v1941 = vadd.f32 %v1541, %v1940
        %v1942 = vpop.f32.mrb[0].mxu0
        %v1943 = vpop.f32.mrb[0].mxu0
        %v1944 = vadd.f32 %v1546, %v1943
        %v1945 = vpop.f32.mrb[0].mxu0
        %1946 = vmatprep.mubr.bf16.mxu0 0
        %1947 = vmatmul.mubr.bf16.gmra.mrb[0].mxu0 %v1716
        %v1948 = vpop.f32.mrb[0].mxu0
        %v1949 = vadd.f32 %v1551, %v1948
        %v1950 = vpop.f32.mrb[0].mxu0
        %v1951 = vpop.f32.mrb[0].mxu0
        %v1952 = vadd.f32 %v1556, %v1951
        %v1953 = vpop.f32.mrb[0].mxu0
        %1954 = vmatprep.mubr.bf16.mxu0 0
        %1955 = vmatmul.mubr.bf16.gmra.mrb[0].mxu0 %v1719
        %v1956 = vpop.f32.mrb[0].mxu0
        %v1957 = vadd.f32 %v1561, %v1956
        %v1958 = vpop.f32.mrb[0].mxu0
        %v1959 = vpop.f32.mrb[0].mxu0
        %v1960 = vadd.f32 %v1566, %v1959
        %v1961 = vpop.f32.mrb[0].mxu0
        %1962 = vmatprep.mubr.bf16.mxu0 0
        %1963 = vmatmul.mubr.bf16.gmra.mrb[0].mxu0 %v1722
        %v1964 = vpop.f32.mrb[0].mxu0
        %v1965 = vadd.f32 %v1571, %v1964
        %v1966 = vpop.f32.mrb[0].mxu0
        %v1967 = vpop.f32.mrb[0].mxu0
        %v1968 = vadd.f32 %v1576, %v1967
        %v1969 = vpop.f32.mrb[0].mxu0
        %1970 = vmatprep.mubr.bf16.mxu0 0
        %1971 = vmatmul.mubr.bf16.gmra.mrb[0].mxu0 %v1725
        %v1972 = vpop.f32.mrb[0].mxu0
        %v1973 = vadd.f32 %v1581, %v1972
        %v1974 = vpop.f32.mrb[0].mxu0
        %v1975 = vpop.f32.mrb[0].mxu0
        %v1976 = vadd.f32 %v1586, %v1975
        %v1977 = vpop.f32.mrb[0].mxu0
        %1978 = vmatprep.mubr.bf16.mxu0 0
        %1979 = vmatmul.mubr.bf16.gmra.mrb[0].mxu0 %v1728
        %v1980 = vpop.f32.mrb[0].mxu0
        %v1981 = vadd.f32 %v1591, %v1980
        %v1982 = vpop.f32.mrb[0].mxu0
        %v1983 = vpop.f32.mrb[0].mxu0
        %v1984 = vadd.f32 %v1596, %v1983
        %v1985 = vpop.f32.mrb[0].mxu0
        %1986 = vmatprep.mubr.bf16.mxu0 0
        %1987 = vmatmul.mubr.bf16.gmra.mrb[0].mxu0 %v1731
        %v1988 = vpop.f32.mrb[0].mxu0
        %v1989 = vadd.f32 %v1601, %v1988
        %v1990 = vpop.f32.mrb[0].mxu0
        %v1991 = vpop.f32.mrb[0].mxu0
        %v1992 = vadd.f32 %v1606, %v1991
        %v1993 = vpop.f32.mrb[0].mxu0
        %1994 = vmatprep.mubr.bf16.mxu0 0
        %1995 = vmatmul.mubr.bf16.gmra.mrb[0].mxu0 %v1734
        %v1996 = vpop.f32.mrb[0].mxu0
        %v1997 = vadd.f32 %v1611, %v1996
        %v1998 = vpop.f32.mrb[0].mxu0
        %v1999 = vpop.f32.mrb[0].mxu0
        %v2000 = vadd.f32 %v1616, %v1999
        %v2001 = vpop.f32.mrb[0].mxu0
        %2002 = vmatprep.mubr.bf16.mxu0 0
        %2003 = vmatmul.mubr.bf16.gmra.mrb[0].mxu0 %v1737
        %v2004 = vpop.f32.mrb[0].mxu0
        %v2005 = vadd.f32 %v1621, %v2004
        %v2006 = vpop.f32.mrb[0].mxu0
        %v2007 = vpop.f32.mrb[0].mxu0
        %v2008 = vadd.f32 %v1626, %v2007
        %v2009 = vpop.f32.mrb[0].mxu0
        %2010 = vmatprep.mubr.bf16.mxu0 0
        %2011 = vmatmul.mubr.bf16.gmra.mrb[0].mxu0 %v1740
        %v2012 = vpop.f32.mrb[0].mxu0
        %v2013 = vadd.f32 %v1631, %v2012
        %v2014 = vpop.f32.mrb[0].mxu0
        %v2015 = vpop.f32.mrb[0].mxu0
        %v2016 = vadd.f32 %v1636, %v2015
        %v2017 = vpop.f32.mrb[0].mxu0
        %2018 = vmatprep.mubr.bf16.mxu0 0
        %2019 = vmatmul.mubr.bf16.gmra.mrb[0].mxu0 %v1743
        %v2020 = vpop.f32.mrb[0].mxu0
        %v2021 = vadd.f32 %v1641, %v2020
        %v2022 = vpop.f32.mrb[0].mxu0
        %v2023 = vpop.f32.mrb[0].mxu0
        %v2024 = vadd.f32 %v1646, %v2023
        %v2025 = vpop.f32.mrb[0].mxu0
        %2026 = vdwg.mxu0
        %v2027 = vmul.f32 %v1780, 0.70710677
        %v2028 = vmul.f32 %v1782, 0.70710677
        %v2029 = vmul.f32 %v1933, 0.70710677
        %v2030 = vmul.f32 %v1784, 0.70710677
        %v2031 = vmul.f32 %v1786, 0.70710677
        %v2032 = vmul.f32 %v1936, 0.70710677
        %v2033 = vmul.f32 %v1790, 0.70710677
        %v2034 = vmul.f32 %v1792, 0.70710677
        %v2035 = vmul.f32 %v1941, 0.70710677
        %v2036 = vmul.f32 %v1794, 0.70710677
        %v2037 = vmul.f32 %v1796, 0.70710677
        %v2038 = vmul.f32 %v1944, 0.70710677
        %v2039 = vmul.f32 %v1800, 0.70710677
        %v2040 = vmul.f32 %v1802, 0.70710677
        %v2041 = vmul.f32 %v1949, 0.70710677
        %v2042 = vmul.f32 %v1804, 0.70710677
        %v2043 = vmul.f32 %v1806, 0.70710677
        %v2044 = vmul.f32 %v1952, 0.70710677
        %v2045 = vmul.f32 %v1810, 0.70710677
        %v2046 = vmul.f32 %v1812, 0.70710677
        %v2047 = vmul.f32 %v1957, 0.70710677
        %v2048 = vmul.f32 %v1814, 0.70710677
        %v2049 = vmul.f32 %v1816, 0.70710677
        %v2050 = vmul.f32 %v1960, 0.70710677
        %v2051 = vmul.f32 %v1820, 0.70710677
        %v2052 = vmul.f32 %v1822, 0.70710677
        %v2053 = vmul.f32 %v1965, 0.70710677
        %v2054 = vmul.f32 %v1824, 0.70710677
        %v2055 = vmul.f32 %v1826, 0.70710677
        %v2056 = vmul.f32 %v1968, 0.70710677
        %v2057 = vmul.f32 %v1830, 0.70710677
        %v2058 = vmul.f32 %v1832, 0.70710677
        %v2059 = vmul.f32 %v1973, 0.70710677
        %v2060 = vmul.f32 %v1834, 0.70710677
        %v2061 = vmul.f32 %v1836, 0.70710677
        %v2062 = vmul.f32 %v1976, 0.70710677
        %v2063 = vmul.f32 %v1840, 0.70710677
        %v2064 = vmul.f32 %v1842, 0.70710677
        %v2065 = vmul.f32 %v1981, 0.70710677
        %v2066 = vmul.f32 %v1844, 0.70710677
        %v2067 = vmul.f32 %v1846, 0.70710677
        %v2068 = vmul.f32 %v1984, 0.70710677
        %v2069 = vmul.f32 %v1850, 0.70710677
        %v2070 = vmul.f32 %v1852, 0.70710677
        %v2071 = vmul.f32 %v1989, 0.70710677
        %v2072 = vmul.f32 %v1854, 0.70710677
        %v2073 = vmul.f32 %v1856, 0.70710677
        %v2074 = vmul.f32 %v1992, 0.70710677
        %v2075 = vmul.f32 %v1860, 0.70710677
        %v2076 = vmul.f32 %v1862, 0.70710677
        %v2077 = vmul.f32 %v1997, 0.70710677
        %v2078 = vmul.f32 %v1864, 0.70710677
        %v2079 = vmul.f32 %v1866, 0.70710677
        %v2080 = vmul.f32 %v2000, 0.70710677
        %v2081 = vmul.f32 %v1870, 0.70710677
        %v2082 = vmul.f32 %v1872, 0.70710677
        %v2083 = vmul.f32 %v2005, 0.70710677
        %v2084 = vmul.f32 %v1874, 0.70710677
        %v2085 = vmul.f32 %v1876, 0.70710677
        %v2086 = vmul.f32 %v2008, 0.70710677
        %v2087 = vmul.f32 %v1880, 0.70710677
        %v2088 = vmul.f32 %v1882, 0.70710677
        %v2089 = vmul.f32 %v2013, 0.70710677
        %v2090 = vmul.f32 %v1884, 0.70710677
        %v2091 = vmul.f32 %v1886, 0.70710677
        %v2092 = vmul.f32 %v2016, 0.70710677
        %v2093 = vmul.f32 %v1890, 0.70710677
        %v2094 = vmul.f32 %v1892, 0.70710677
        %v2095 = vmul.f32 %v2021, 0.70710677
        %v2096 = vmul.f32 %v1894, 0.70710677
        %v2097 = vmul.f32 %v1896, 0.70710677
        %v2098 = vmul.f32 %v2024, 0.70710677
        %v2099 = vand.u32 2147483647, %v2027
        %v2100 = vand.u32 2147483647, %v2028
        %v2101 = vand.u32 2147483647, %v2029
        %v2102 = vand.u32 2147483647, %v2030
        %v2103 = vand.u32 2147483647, %v2031
        %v2104 = vand.u32 2147483647, %v2032
        %v2105 = vand.u32 2147483647, %v2033
        %v2106 = vand.u32 2147483647, %v2034
        %v2107 = vand.u32 2147483647, %v2035
        %v2108 = vand.u32 2147483647, %v2036
        %v2109 = vand.u32 2147483647, %v2037
        %v2110 = vand.u32 2147483647, %v2038
        %v2111 = vand.u32 2147483647, %v2039
        %v2112 = vand.u32 2147483647, %v2040
        %v2113 = vand.u32 2147483647, %v2041
        %v2114 = vand.u32 2147483647, %v2042
        %v2115 = vand.u32 2147483647, %v2043
        %v2116 = vand.u32 2147483647, %v2044
        %v2117 = vand.u32 2147483647, %v2045
        %v2118 = vand.u32 2147483647, %v2046
        %v2119 = vand.u32 2147483647, %v2047
        %v2120 = vand.u32 2147483647, %v2048
        %v2121 = vand.u32 2147483647, %v2049
        %v2122 = vand.u32 2147483647, %v2050
        %v2123 = vand.u32 2147483647, %v2051
        %v2124 = vand.u32 2147483647, %v2052
        %v2125 = vand.u32 2147483647, %v2053
        %v2126 = vand.u32 2147483647, %v2054
        %v2127 = vand.u32 2147483647, %v2055
        %v2128 = vand.u32 2147483647, %v2056
        %v2129 = vand.u32 2147483647, %v2057
        %v2130 = vand.u32 2147483647, %v2058
        %v2131 = vand.u32 2147483647, %v2059
        %v2132 = vand.u32 2147483647, %v2060
        %v2133 = vand.u32 2147483647, %v2061
        %v2134 = vand.u32 2147483647, %v2062
        %v2135 = vand.u32 2147483647, %v2063
        %v2136 = vand.u32 2147483647, %v2064
        %v2137 = vand.u32 2147483647, %v2065
        %v2138 = vand.u32 2147483647, %v2066
        %v2139 = vand.u32 2147483647, %v2067
        %v2140 = vand.u32 2147483647, %v2068
        %v2141 = vand.u32 2147483647, %v2069
        %v2142 = vand.u32 2147483647, %v2070
        %v2143 = vand.u32 2147483647, %v2071
        %v2144 = vand.u32 2147483647, %v2072
        %v2145 = vand.u32 2147483647, %v2073
        %v2146 = vand.u32 2147483647, %v2074
        %v2147 = vand.u32 2147483647, %v2075
        %v2148 = vand.u32 2147483647, %v2076
        %v2149 = vand.u32 2147483647, %v2077
        %v2150 = vand.u32 2147483647, %v2078
        %v2151 = vand.u32 2147483647, %v2079
        %v2152 = vand.u32 2147483647, %v2080
        %v2153 = vand.u32 2147483647, %v2081
        %v2154 = vand.u32 2147483647, %v2082
        %v2155 = vand.u32 2147483647, %v2083
        %v2156 = vand.u32 2147483647, %v2084
        %v2157 = vand.u32 2147483647, %v2085
        %v2158 = vand.u32 2147483647, %v2086
        %v2159 = vand.u32 2147483647, %v2087
        %v2160 = vand.u32 2147483647, %v2088
        %v2161 = vand.u32 2147483647, %v2089
        %v2162 = vand.u32 2147483647, %v2090
        %v2163 = vand.u32 2147483647, %v2091
        %v2164 = vand.u32 2147483647, %v2092
        %v2165 = vand.u32 2147483647, %v2093
        %v2166 = vand.u32 2147483647, %v2094
        %v2167 = vand.u32 2147483647, %v2095
        %v2168 = vand.u32 2147483647, %v2096
        %v2169 = vand.u32 2147483647, %v2097
        %v2170 = vand.u32 2147483647, %v2098
        %v2171 = vmul.f32 %v2099, 0.47047
        %v2172 = vmul.f32 %v2100, 0.47047
        %v2173 = vmul.f32 %v2101, 0.47047
        %v2174 = vmul.f32 %v2102, 0.47047
        %v2175 = vmul.f32 %v2103, 0.47047
        %v2176 = vmul.f32 %v2104, 0.47047
        %v2177 = vmul.f32 %v2105, 0.47047
        %v2178 = vmul.f32 %v2106, 0.47047
        %v2179 = vmul.f32 %v2107, 0.47047
        %v2180 = vmul.f32 %v2108, 0.47047
        %v2181 = vmul.f32 %v2109, 0.47047
        %v2182 = vmul.f32 %v2110, 0.47047
        %v2183 = vmul.f32 %v2111, 0.47047
        %v2184 = vmul.f32 %v2112, 0.47047
        %v2185 = vmul.f32 %v2113, 0.47047
        %v2186 = vmul.f32 %v2114, 0.47047
        %v2187 = vmul.f32 %v2115, 0.47047
        %v2188 = vmul.f32 %v2116, 0.47047
        %v2189 = vmul.f32 %v2117, 0.47047
        %v2190 = vmul.f32 %v2118, 0.47047
        %v2191 = vmul.f32 %v2119, 0.47047
        %v2192 = vmul.f32 %v2120, 0.47047
        %v2193 = vmul.f32 %v2121, 0.47047
        %v2194 = vmul.f32 %v2122, 0.47047
        %v2195 = vmul.f32 %v2123, 0.47047
        %v2196 = vmul.f32 %v2124, 0.47047
        %v2197 = vmul.f32 %v2125, 0.47047
        %v2198 = vmul.f32 %v2126, 0.47047
        %v2199 = vmul.f32 %v2127, 0.47047
        %v2200 = vmul.f32 %v2128, 0.47047
        %v2201 = vmul.f32 %v2129, 0.47047
        %v2202 = vmul.f32 %v2130, 0.47047
        %v2203 = vmul.f32 %v2131, 0.47047
        %v2204 = vmul.f32 %v2132, 0.47047
        %v2205 = vmul.f32 %v2133, 0.47047
        %v2206 = vmul.f32 %v2134, 0.47047
        %v2207 = vmul.f32 %v2135, 0.47047
        %v2208 = vmul.f32 %v2136, 0.47047
        %v2209 = vmul.f32 %v2137, 0.47047
        %v2210 = vmul.f32 %v2138, 0.47047
        %v2211 = vmul.f32 %v2139, 0.47047
        %v2212 = vmul.f32 %v2140, 0.47047
        %v2213 = vmul.f32 %v2141, 0.47047
        %v2214 = vmul.f32 %v2142, 0.47047
        %v2215 = vmul.f32 %v2143, 0.47047
        %v2216 = vmul.f32 %v2144, 0.47047
        %v2217 = vmul.f32 %v2145, 0.47047
        %v2218 = vmul.f32 %v2146, 0.47047
        %v2219 = vmul.f32 %v2147, 0.47047
        %v2220 = vmul.f32 %v2148, 0.47047
        %v2221 = vmul.f32 %v2149, 0.47047
        %v2222 = vmul.f32 %v2150, 0.47047
        %v2223 = vmul.f32 %v2151, 0.47047
        %v2224 = vmul.f32 %v2152, 0.47047
        %v2225 = vmul.f32 %v2153, 0.47047
        %v2226 = vmul.f32 %v2154, 0.47047
        %v2227 = vmul.f32 %v2155, 0.47047
        %v2228 = vmul.f32 %v2156, 0.47047
        %v2229 = vmul.f32 %v2157, 0.47047
        %v2230 = vmul.f32 %v2158, 0.47047
        %v2231 = vmul.f32 %v2159, 0.47047
        %v2232 = vmul.f32 %v2160, 0.47047
        %v2233 = vmul.f32 %v2161, 0.47047
        %v2234 = vmul.f32 %v2162, 0.47047
        %v2235 = vmul.f32 %v2163, 0.47047
        %v2236 = vmul.f32 %v2164, 0.47047
        %v2237 = vmul.f32 %v2165, 0.47047
        %v2238 = vmul.f32 %v2166, 0.47047
        %v2239 = vmul.f32 %v2167, 0.47047
        %v2240 = vmul.f32 %v2168, 0.47047
        %v2241 = vmul.f32 %v2169, 0.47047
        %v2242 = vmul.f32 %v2170, 0.47047
        %v2243 = vadd.f32 %v2171, 1.0
        %v2244 = vadd.f32 %v2172, 1.0
        %v2245 = vadd.f32 %v2173, 1.0
        %v2246 = vadd.f32 %v2174, 1.0
        %v2247 = vadd.f32 %v2175, 1.0
        %v2248 = vadd.f32 %v2176, 1.0
        %v2249 = vadd.f32 %v2177, 1.0
        %v2250 = vadd.f32 %v2178, 1.0
        %v2251 = vadd.f32 %v2179, 1.0
        %v2252 = vadd.f32 %v2180, 1.0
        %v2253 = vadd.f32 %v2181, 1.0
        %v2254 = vadd.f32 %v2182, 1.0
        %v2255 = vadd.f32 %v2183, 1.0
        %v2256 = vadd.f32 %v2184, 1.0
        %v2257 = vadd.f32 %v2185, 1.0
        %v2258 = vadd.f32 %v2186, 1.0
        %v2259 = vadd.f32 %v2187, 1.0
        %v2260 = vadd.f32 %v2188, 1.0
        %v2261 = vadd.f32 %v2189, 1.0
        %v2262 = vadd.f32 %v2190, 1.0
        %v2263 = vadd.f32 %v2191, 1.0
        %v2264 = vadd.f32 %v2192, 1.0
        %v2265 = vadd.f32 %v2193, 1.0
        %v2266 = vadd.f32 %v2194, 1.0
        %v2267 = vadd.f32 %v2195, 1.0
        %v2268 = vadd.f32 %v2196, 1.0
        %v2269 = vadd.f32 %v2197, 1.0
        %v2270 = vadd.f32 %v2198, 1.0
        %v2271 = vadd.f32 %v2199, 1.0
        %v2272 = vadd.f32 %v2200, 1.0
        %v2273 = vadd.f32 %v2201, 1.0
        %v2274 = vadd.f32 %v2202, 1.0
        %v2275 = vadd.f32 %v2203, 1.0
        %v2276 = vadd.f32 %v2204, 1.0
        %v2277 = vadd.f32 %v2205, 1.0
        %v2278 = vadd.f32 %v2206, 1.0
        %v2279 = vadd.f32 %v2207, 1.0
        %v2280 = vadd.f32 %v2208, 1.0
        %v2281 = vadd.f32 %v2209, 1.0
        %v2282 = vadd.f32 %v2210, 1.0
        %v2283 = vadd.f32 %v2211, 1.0
        %v2284 = vadd.f32 %v2212, 1.0
        %v2285 = vadd.f32 %v2213, 1.0
        %v2286 = vadd.f32 %v2214, 1.0
        %v2287 = vadd.f32 %v2215, 1.0
        %v2288 = vadd.f32 %v2216, 1.0
        %v2289 = vadd.f32 %v2217, 1.0
        %v2290 = vadd.f32 %v2218, 1.0
        %v2291 = vadd.f32 %v2219, 1.0
        %v2292 = vadd.f32 %v2220, 1.0
        %v2293 = vadd.f32 %v2221, 1.0
        %v2294 = vadd.f32 %v2222, 1.0
        %v2295 = vadd.f32 %v2223, 1.0
        %v2296 = vadd.f32 %v2224, 1.0
        %v2297 = vadd.f32 %v2225, 1.0
        %v2298 = vadd.f32 %v2226, 1.0
        %v2299 = vadd.f32 %v2227, 1.0
        %v2300 = vadd.f32 %v2228, 1.0
        %v2301 = vadd.f32 %v2229, 1.0
        %v2302 = vadd.f32 %v2230, 1.0
        %v2303 = vadd.f32 %v2231, 1.0
        %v2304 = vadd.f32 %v2232, 1.0
        %v2305 = vadd.f32 %v2233, 1.0
        %v2306 = vadd.f32 %v2234, 1.0
        %v2307 = vadd.f32 %v2235, 1.0
        %v2308 = vadd.f32 %v2236, 1.0
        %v2309 = vadd.f32 %v2237, 1.0
        %v2310 = vadd.f32 %v2238, 1.0
        %v2311 = vadd.f32 %v2239, 1.0
        %v2312 = vadd.f32 %v2240, 1.0
        %v2313 = vadd.f32 %v2241, 1.0
        %v2314 = vadd.f32 %v2242, 1.0
        %v2315 = vrcp.pop %v2243
        %v2316 = vmul.f32 1.0, %v2315
        %v2317 = vrcp.pop %v2244
        %v2318 = vmul.f32 1.0, %v2317
        %v2319 = vrcp.pop %v2245
        %v2320 = vmul.f32 1.0, %v2319
        %v2321 = vrcp.pop %v2246
        %v2322 = vmul.f32 1.0, %v2321
        %v2323 = vrcp.pop %v2247
        %v2324 = vmul.f32 1.0, %v2323
        %v2325 = vrcp.pop %v2248
        %v2326 = vmul.f32 1.0, %v2325
        %v2327 = vrcp.pop %v2249
        %v2328 = vmul.f32 1.0, %v2327
        %v2329 = vrcp.pop %v2250
        %v2330 = vmul.f32 1.0, %v2329
        %v2331 = vrcp.pop %v2251
        %v2332 = vmul.f32 1.0, %v2331
        %v2333 = vrcp.pop %v2252
        %v2334 = vmul.f32 1.0, %v2333
        %v2335 = vrcp.pop %v2253
        %v2336 = vmul.f32 1.0, %v2335
        %v2337 = vrcp.pop %v2254
        %v2338 = vmul.f32 1.0, %v2337
        %v2339 = vrcp.pop %v2255
        %v2340 = vmul.f32 1.0, %v2339
        %v2341 = vrcp.pop %v2256
        %v2342 = vmul.f32 1.0, %v2341
        %v2343 = vrcp.pop %v2257
        %v2344 = vmul.f32 1.0, %v2343
        %v2345 = vrcp.pop %v2258
        %v2346 = vmul.f32 1.0, %v2345
        %v2347 = vrcp.pop %v2259
        %v2348 = vmul.f32 1.0, %v2347
        %v2349 = vrcp.pop %v2260
        %v2350 = vmul.f32 1.0, %v2349
        %v2351 = vrcp.pop %v2261
        %v2352 = vmul.f32 1.0, %v2351
        %v2353 = vrcp.pop %v2262
        %v2354 = vmul.f32 1.0, %v2353
        %v2355 = vrcp.pop %v2263
        %v2356 = vmul.f32 1.0, %v2355
        %v2357 = vrcp.pop %v2264
        %v2358 = vmul.f32 1.0, %v2357
        %v2359 = vrcp.pop %v2265
        %v2360 = vmul.f32 1.0, %v2359
        %v2361 = vrcp.pop %v2266
        %v2362 = vmul.f32 1.0, %v2361
        %v2363 = vrcp.pop %v2267
        %v2364 = vmul.f32 1.0, %v2363
        %v2365 = vrcp.pop %v2268
        %v2366 = vmul.f32 1.0, %v2365
        %v2367 = vrcp.pop %v2269
        %v2368 = vmul.f32 1.0, %v2367
        %v2369 = vrcp.pop %v2270
        %v2370 = vmul.f32 1.0, %v2369
        %v2371 = vrcp.pop %v2271
        %v2372 = vmul.f32 1.0, %v2371
        %v2373 = vrcp.pop %v2272
        %v2374 = vmul.f32 1.0, %v2373
        %v2375 = vrcp.pop %v2273
        %v2376 = vmul.f32 1.0, %v2375
        %v2377 = vrcp.pop %v2274
        %v2378 = vmul.f32 1.0, %v2377
        %v2379 = vrcp.pop %v2275
        %v2380 = vmul.f32 1.0, %v2379
        %v2381 = vrcp.pop %v2276
        %v2382 = vmul.f32 1.0, %v2381
        %v2383 = vrcp.pop %v2277
        %v2384 = vmul.f32 1.0, %v2383
        %v2385 = vrcp.pop %v2278
        %v2386 = vmul.f32 1.0, %v2385
        %v2387 = vrcp.pop %v2279
        %v2388 = vmul.f32 1.0, %v2387
        %v2389 = vrcp.pop %v2280
        %v2390 = vmul.f32 1.0, %v2389
        %v2391 = vrcp.pop %v2281
        %v2392 = vmul.f32 1.0, %v2391
        %v2393 = vrcp.pop %v2282
        %v2394 = vmul.f32 1.0, %v2393
        %v2395 = vrcp.pop %v2283
        %v2396 = vmul.f32 1.0, %v2395
        %v2397 = vrcp.pop %v2284
        %v2398 = vmul.f32 1.0, %v2397
        %v2399 = vrcp.pop %v2285
        %v2400 = vmul.f32 1.0, %v2399
        %v2401 = vrcp.pop %v2286
        %v2402 = vmul.f32 1.0, %v2401
        %v2403 = vrcp.pop %v2287
        %v2404 = vmul.f32 1.0, %v2403
        %v2405 = vrcp.pop %v2288
        %v2406 = vmul.f32 1.0, %v2405
        %v2407 = vrcp.pop %v2289
        %v2408 = vmul.f32 1.0, %v2407
        %v2409 = vrcp.pop %v2290
        %v2410 = vmul.f32 1.0, %v2409
        %v2411 = vrcp.pop %v2291
        %v2412 = vmul.f32 1.0, %v2411
        %v2413 = vrcp.pop %v2292
        %v2414 = vmul.f32 1.0, %v2413
        %v2415 = vrcp.pop %v2293
        %v2416 = vmul.f32 1.0, %v2415
        %v2417 = vrcp.pop %v2294
        %v2418 = vmul.f32 1.0, %v2417
        %v2419 = vrcp.pop %v2295
        %v2420 = vmul.f32 1.0, %v2419
        %v2421 = vrcp.pop %v2296
        %v2422 = vmul.f32 1.0, %v2421
        %v2423 = vrcp.pop %v2297
        %v2424 = vmul.f32 1.0, %v2423
        %v2425 = vrcp.pop %v2298
        %v2426 = vmul.f32 1.0, %v2425
        %v2427 = vrcp.pop %v2299
        %v2428 = vmul.f32 1.0, %v2427
        %v2429 = vrcp.pop %v2300
        %v2430 = vmul.f32 1.0, %v2429
        %v2431 = vrcp.pop %v2301
        %v2432 = vmul.f32 1.0, %v2431
        %v2433 = vrcp.pop %v2302
        %v2434 = vmul.f32 1.0, %v2433
        %v2435 = vrcp.pop %v2303
        %v2436 = vmul.f32 1.0, %v2435
        %v2437 = vrcp.pop %v2304
        %v2438 = vmul.f32 1.0, %v2437
        %v2439 = vrcp.pop %v2305
        %v2440 = vmul.f32 1.0, %v2439
        %v2441 = vrcp.pop %v2306
        %v2442 = vmul.f32 1.0, %v2441
        %v2443 = vrcp.pop %v2307
        %v2444 = vmul.f32 1.0, %v2443
        %v2445 = vrcp.pop %v2308
        %v2446 = vmul.f32 1.0, %v2445
        %v2447 = vrcp.pop %v2309
        %v2448 = vmul.f32 1.0, %v2447
        %v2449 = vrcp.pop %v2310
        %v2450 = vmul.f32 1.0, %v2449
        %v2451 = vrcp.pop %v2311
        %v2452 = vmul.f32 1.0, %v2451
        %v2453 = vrcp.pop %v2312
        %v2454 = vmul.f32 1.0, %v2453
        %v2455 = vrcp.pop %v2313
        %v2456 = vmul.f32 1.0, %v2455
        %v2457 = vrcp.pop %v2314
        %v2458 = vmul.f32 1.0, %v2457
        %v2459 = vmul.f32 %v2316, 0.7478556
        %v2460 = vmul.f32 %v2318, 0.7478556
        %v2461 = vmul.f32 %v2320, 0.7478556
        %v2462 = vmul.f32 %v2322, 0.7478556
        %v2463 = vmul.f32 %v2324, 0.7478556
        %v2464 = vmul.f32 %v2326, 0.7478556
        %v2465 = vmul.f32 %v2328, 0.7478556
        %v2466 = vmul.f32 %v2330, 0.7478556
        %v2467 = vmul.f32 %v2332, 0.7478556
        %v2468 = vmul.f32 %v2334, 0.7478556
        %v2469 = vmul.f32 %v2336, 0.7478556
        %v2470 = vmul.f32 %v2338, 0.7478556
        %v2471 = vmul.f32 %v2340, 0.7478556
        %v2472 = vmul.f32 %v2342, 0.7478556
        %v2473 = vmul.f32 %v2344, 0.7478556
        %v2474 = vmul.f32 %v2346, 0.7478556
        %v2475 = vmul.f32 %v2348, 0.7478556
        %v2476 = vmul.f32 %v2350, 0.7478556
        %v2477 = vmul.f32 %v2352, 0.7478556
        %v2478 = vmul.f32 %v2354, 0.7478556
        %v2479 = vmul.f32 %v2356, 0.7478556
        %v2480 = vmul.f32 %v2358, 0.7478556
        %v2481 = vmul.f32 %v2360, 0.7478556
        %v2482 = vmul.f32 %v2362, 0.7478556
        %v2483 = vmul.f32 %v2364, 0.7478556
        %v2484 = vmul.f32 %v2366, 0.7478556
        %v2485 = vmul.f32 %v2368, 0.7478556
        %v2486 = vmul.f32 %v2370, 0.7478556
        %v2487 = vmul.f32 %v2372, 0.7478556
        %v2488 = vmul.f32 %v2374, 0.7478556
        %v2489 = vmul.f32 %v2376, 0.7478556
        %v2490 = vmul.f32 %v2378, 0.7478556
        %v2491 = vmul.f32 %v2380, 0.7478556
        %v2492 = vmul.f32 %v2382, 0.7478556
        %v2493 = vmul.f32 %v2384, 0.7478556
        %v2494 = vmul.f32 %v2386, 0.7478556
        %v2495 = vmul.f32 %v2388, 0.7478556
        %v2496 = vmul.f32 %v2390, 0.7478556
        %v2497 = vmul.f32 %v2392, 0.7478556
        %v2498 = vmul.f32 %v2394, 0.7478556
        %v2499 = vmul.f32 %v2396, 0.7478556
        %v2500 = vmul.f32 %v2398, 0.7478556
        %v2501 = vmul.f32 %v2400, 0.7478556
        %v2502 = vmul.f32 %v2402, 0.7478556
        %v2503 = vmul.f32 %v2404, 0.7478556
        %v2504 = vmul.f32 %v2406, 0.7478556
        %v2505 = vmul.f32 %v2408, 0.7478556
        %v2506 = vmul.f32 %v2410, 0.7478556
        %v2507 = vmul.f32 %v2412, 0.7478556
        %v2508 = vmul.f32 %v2414, 0.7478556
        %v2509 = vmul.f32 %v2416, 0.7478556
        %v2510 = vmul.f32 %v2418, 0.7478556
        %v2511 = vmul.f32 %v2420, 0.7478556
        %v2512 = vmul.f32 %v2422, 0.7478556
        %v2513 = vmul.f32 %v2424, 0.7478556
        %v2514 = vmul.f32 %v2426, 0.7478556
        %v2515 = vmul.f32 %v2428, 0.7478556
        %v2516 = vmul.f32 %v2430, 0.7478556
        %v2517 = vmul.f32 %v2432, 0.7478556
        %v2518 = vmul.f32 %v2434, 0.7478556
        %v2519 = vmul.f32 %v2436, 0.7478556
        %v2520 = vmul.f32 %v2438, 0.7478556
        %v2521 = vmul.f32 %v2440, 0.7478556
        %v2522 = vmul.f32 %v2442, 0.7478556
        %v2523 = vmul.f32 %v2444, 0.7478556
        %v2524 = vmul.f32 %v2446, 0.7478556
        %v2525 = vmul.f32 %v2448, 0.7478556
        %v2526 = vmul.f32 %v2450, 0.7478556
        %v2527 = vmul.f32 %v2452, 0.7478556
        %v2528 = vmul.f32 %v2454, 0.7478556
        %v2529 = vmul.f32 %v2456, 0.7478556
        %v2530 = vmul.f32 %v2458, 0.7478556
        %v2531 = vadd.f32 %v2459, -0.0958798
        %v2532 = vadd.f32 %v2460, -0.0958798
        %v2533 = vadd.f32 %v2461, -0.0958798
        %v2534 = vadd.f32 %v2462, -0.0958798
        %v2535 = vadd.f32 %v2463, -0.0958798
        %v2536 = vadd.f32 %v2464, -0.0958798
        %v2537 = vadd.f32 %v2465, -0.0958798
        %v2538 = vadd.f32 %v2466, -0.0958798
        %v2539 = vadd.f32 %v2467, -0.0958798
        %v2540 = vadd.f32 %v2468, -0.0958798
        %v2541 = vadd.f32 %v2469, -0.0958798
        %v2542 = vadd.f32 %v2470, -0.0958798
        %v2543 = vadd.f32 %v2471, -0.0958798
        %v2544 = vadd.f32 %v2472, -0.0958798
        %v2545 = vadd.f32 %v2473, -0.0958798
        %v2546 = vadd.f32 %v2474, -0.0958798
        %v2547 = vadd.f32 %v2475, -0.0958798
        %v2548 = vadd.f32 %v2476, -0.0958798
        %v2549 = vadd.f32 %v2477, -0.0958798
        %v2550 = vadd.f32 %v2478, -0.0958798
        %v2551 = vadd.f32 %v2479, -0.0958798
        %v2552 = vadd.f32 %v2480, -0.0958798
        %v2553 = vadd.f32 %v2481, -0.0958798
        %v2554 = vadd.f32 %v2482, -0.0958798
        %v2555 = vadd.f32 %v2483, -0.0958798
        %v2556 = vadd.f32 %v2484, -0.0958798
        %v2557 = vadd.f32 %v2485, -0.0958798
        %v2558 = vadd.f32 %v2486, -0.0958798
        %v2559 = vadd.f32 %v2487, -0.0958798
        %v2560 = vadd.f32 %v2488, -0.0958798
        %v2561 = vadd.f32 %v2489, -0.0958798
        %v2562 = vadd.f32 %v2490, -0.0958798
        %v2563 = vadd.f32 %v2491, -0.0958798
        %v2564 = vadd.f32 %v2492, -0.0958798
        %v2565 = vadd.f32 %v2493, -0.0958798
        %v2566 = vadd.f32 %v2494, -0.0958798
        %v2567 = vadd.f32 %v2495, -0.0958798
        %v2568 = vadd.f32 %v2496, -0.0958798
        %v2569 = vadd.f32 %v2497, -0.0958798
        %v2570 = vadd.f32 %v2498, -0.0958798
        %v2571 = vadd.f32 %v2499, -0.0958798
        %v2572 = vadd.f32 %v2500, -0.0958798
        %v2573 = vadd.f32 %v2501, -0.0958798
        %v2574 = vadd.f32 %v2502, -0.0958798
        %v2575 = vadd.f32 %v2503, -0.0958798
        %v2576 = vadd.f32 %v2504, -0.0958798
        %v2577 = vadd.f32 %v2505, -0.0958798
        %v2578 = vadd.f32 %v2506, -0.0958798
        %v2579 = vadd.f32 %v2507, -0.0958798
        %v2580 = vadd.f32 %v2508, -0.0958798
        %v2581 = vadd.f32 %v2509, -0.0958798
        %v2582 = vadd.f32 %v2510, -0.0958798
        %v2583 = vadd.f32 %v2511, -0.0958798
        %v2584 = vadd.f32 %v2512, -0.0958798
        %v2585 = vadd.f32 %v2513, -0.0958798
        %v2586 = vadd.f32 %v2514, -0.0958798
        %v2587 = vadd.f32 %v2515, -0.0958798
        %v2588 = vadd.f32 %v2516, -0.0958798
        %v2589 = vadd.f32 %v2517, -0.0958798
        %v2590 = vadd.f32 %v2518, -0.0958798
        %v2591 = vadd.f32 %v2519, -0.0958798
        %v2592 = vadd.f32 %v2520, -0.0958798
        %v2593 = vadd.f32 %v2521, -0.0958798
        %v2594 = vadd.f32 %v2522, -0.0958798
        %v2595 = vadd.f32 %v2523, -0.0958798
        %v2596 = vadd.f32 %v2524, -0.0958798
        %v2597 = vadd.f32 %v2525, -0.0958798
        %v2598 = vadd.f32 %v2526, -0.0958798
        %v2599 = vadd.f32 %v2527, -0.0958798
        %v2600 = vadd.f32 %v2528, -0.0958798
        %v2601 = vadd.f32 %v2529, -0.0958798
        %v2602 = vadd.f32 %v2530, -0.0958798
        %v2603 = vmul.f32 %v2531, %v2316
        %v2604 = vmul.f32 %v2532, %v2318
        %v2605 = vmul.f32 %v2533, %v2320
        %v2606 = vmul.f32 %v2534, %v2322
        %v2607 = vmul.f32 %v2535, %v2324
        %v2608 = vmul.f32 %v2536, %v2326
        %v2609 = vmul.f32 %v2537, %v2328
        %v2610 = vmul.f32 %v2538, %v2330
        %v2611 = vmul.f32 %v2539, %v2332
        %v2612 = vmul.f32 %v2540, %v2334
        %v2613 = vmul.f32 %v2541, %v2336
        %v2614 = vmul.f32 %v2542, %v2338
        %v2615 = vmul.f32 %v2543, %v2340
        %v2616 = vmul.f32 %v2544, %v2342
        %v2617 = vmul.f32 %v2545, %v2344
        %v2618 = vmul.f32 %v2546, %v2346
        %v2619 = vmul.f32 %v2547, %v2348
        %v2620 = vmul.f32 %v2548, %v2350
        %v2621 = vmul.f32 %v2549, %v2352
        %v2622 = vmul.f32 %v2550, %v2354
        %v2623 = vmul.f32 %v2551, %v2356
        %v2624 = vmul.f32 %v2552, %v2358
        %v2625 = vmul.f32 %v2553, %v2360
        %v2626 = vmul.f32 %v2554, %v2362
        %v2627 = vmul.f32 %v2555, %v2364
        %v2628 = vmul.f32 %v2556, %v2366
        %v2629 = vmul.f32 %v2557, %v2368
        %v2630 = vmul.f32 %v2558, %v2370
        %v2631 = vmul.f32 %v2559, %v2372
        %v2632 = vmul.f32 %v2560, %v2374
        %v2633 = vmul.f32 %v2561, %v2376
        %v2634 = vmul.f32 %v2562, %v2378
        %v2635 = vmul.f32 %v2563, %v2380
        %v2636 = vmul.f32 %v2564, %v2382
        %v2637 = vmul.f32 %v2565, %v2384
        %v2638 = vmul.f32 %v2566, %v2386
        %v2639 = vmul.f32 %v2567, %v2388
        %v2640 = vmul.f32 %v2568, %v2390
        %v2641 = vmul.f32 %v2569, %v2392
        %v2642 = vmul.f32 %v2570, %v2394
        %v2643 = vmul.f32 %v2571, %v2396
        %v2644 = vmul.f32 %v2572, %v2398
        %v2645 = vmul.f32 %v2573, %v2400
        %v2646 = vmul.f32 %v2574, %v2402
        %v2647 = vmul.f32 %v2575, %v2404
        %v2648 = vmul.f32 %v2576, %v2406
        %v2649 = vmul.f32 %v2577, %v2408
        %v2650 = vmul.f32 %v2578, %v2410
        %v2651 = vmul.f32 %v2579, %v2412
        %v2652 = vmul.f32 %v2580, %v2414
        %v2653 = vmul.f32 %v2581, %v2416
        %v2654 = vmul.f32 %v2582, %v2418
        %v2655 = vmul.f32 %v2583, %v2420
        %v2656 = vmul.f32 %v2584, %v2422
        %v2657 = vmul.f32 %v2585, %v2424
        %v2658 = vmul.f32 %v2586, %v2426
        %v2659 = vmul.f32 %v2587, %v2428
        %v2660 = vmul.f32 %v2588, %v2430
        %v2661 = vmul.f32 %v2589, %v2432
        %v2662 = vmul.f32 %v2590, %v2434
        %v2663 = vmul.f32 %v2591, %v2436
        %v2664 = vmul.f32 %v2592, %v2438
        %v2665 = vmul.f32 %v2593, %v2440
        %v2666 = vmul.f32 %v2594, %v2442
        %v2667 = vmul.f32 %v2595, %v2444
        %v2668 = vmul.f32 %v2596, %v2446
        %v2669 = vmul.f32 %v2597, %v2448
        %v2670 = vmul.f32 %v2598, %v2450
        %v2671 = vmul.f32 %v2599, %v2452
        %v2672 = vmul.f32 %v2600, %v2454
        %v2673 = vmul.f32 %v2601, %v2456
        %v2674 = vmul.f32 %v2602, %v2458
        %v2675 = vadd.f32 %v2603, 0.3480242
        %v2676 = vadd.f32 %v2604, 0.3480242
        %v2677 = vadd.f32 %v2605, 0.3480242
        %v2678 = vadd.f32 %v2606, 0.3480242
        %v2679 = vadd.f32 %v2607, 0.3480242
        %v2680 = vadd.f32 %v2608, 0.3480242
        %v2681 = vadd.f32 %v2609, 0.3480242
        %v2682 = vadd.f32 %v2610, 0.3480242
        %v2683 = vadd.f32 %v2611, 0.3480242
        %v2684 = vadd.f32 %v2612, 0.3480242
        %v2685 = vadd.f32 %v2613, 0.3480242
        %v2686 = vadd.f32 %v2614, 0.3480242
        %v2687 = vadd.f32 %v2615, 0.3480242
        %v2688 = vadd.f32 %v2616, 0.3480242
        %v2689 = vadd.f32 %v2617, 0.3480242
        %v2690 = vadd.f32 %v2618, 0.3480242
        %v2691 = vadd.f32 %v2619, 0.3480242
        %v2692 = vadd.f32 %v2620, 0.3480242
        %v2693 = vadd.f32 %v2621, 0.3480242
        %v2694 = vadd.f32 %v2622, 0.3480242
        %v2695 = vadd.f32 %v2623, 0.3480242
        %v2696 = vadd.f32 %v2624, 0.3480242
        %v2697 = vadd.f32 %v2625, 0.3480242
        %v2698 = vadd.f32 %v2626, 0.3480242
        %v2699 = vadd.f32 %v2627, 0.3480242
        %v2700 = vadd.f32 %v2628, 0.3480242
        %v2701 = vadd.f32 %v2629, 0.3480242
        %v2702 = vadd.f32 %v2630, 0.3480242
        %v2703 = vadd.f32 %v2631, 0.3480242
        %v2704 = vadd.f32 %v2632, 0.3480242
        %v2705 = vadd.f32 %v2633, 0.3480242
        %v2706 = vadd.f32 %v2634, 0.3480242
        %v2707 = vadd.f32 %v2635, 0.3480242
        %v2708 = vadd.f32 %v2636, 0.3480242
        %v2709 = vadd.f32 %v2637, 0.3480242
        %v2710 = vadd.f32 %v2638, 0.3480242
        %v2711 = vadd.f32 %v2639, 0.3480242
        %v2712 = vadd.f32 %v2640, 0.3480242
        %v2713 = vadd.f32 %v2641, 0.3480242
        %v2714 = vadd.f32 %v2642, 0.3480242
        %v2715 = vadd.f32 %v2643, 0.3480242
        %v2716 = vadd.f32 %v2644, 0.3480242
        %v2717 = vadd.f32 %v2645, 0.3480242
        %v2718 = vadd.f32 %v2646, 0.3480242
        %v2719 = vadd.f32 %v2647, 0.3480242
        %v2720 = vadd.f32 %v2648, 0.3480242
        %v2721 = vadd.f32 %v2649, 0.3480242
        %v2722 = vadd.f32 %v2650, 0.3480242
        %v2723 = vadd.f32 %v2651, 0.3480242
        %v2724 = vadd.f32 %v2652, 0.3480242
        %v2725 = vadd.f32 %v2653, 0.3480242
        %v2726 = vadd.f32 %v2654, 0.3480242
        %v2727 = vadd.f32 %v2655, 0.3480242
        %v2728 = vadd.f32 %v2656, 0.3480242
        %v2729 = vadd.f32 %v2657, 0.3480242
        %v2730 = vadd.f32 %v2658, 0.3480242
        %v2731 = vadd.f32 %v2659, 0.3480242
        %v2732 = vadd.f32 %v2660, 0.3480242
        %v2733 = vadd.f32 %v2661, 0.3480242
        %v2734 = vadd.f32 %v2662, 0.3480242
        %v2735 = vadd.f32 %v2663, 0.3480242
        %v2736 = vadd.f32 %v2664, 0.3480242
        %v2737 = vadd.f32 %v2665, 0.3480242
        %v2738 = vadd.f32 %v2666, 0.3480242
        %v2739 = vadd.f32 %v2667, 0.3480242
        %v2740 = vadd.f32 %v2668, 0.3480242
        %v2741 = vadd.f32 %v2669, 0.3480242
        %v2742 = vadd.f32 %v2670, 0.3480242
        %v2743 = vadd.f32 %v2671, 0.3480242
        %v2744 = vadd.f32 %v2672, 0.3480242
        %v2745 = vadd.f32 %v2673, 0.3480242
        %v2746 = vadd.f32 %v2674, 0.3480242
        %v2747 = vmul.f32 %v2675, %v2316
        %v2748 = vmul.f32 %v2676, %v2318
        %v2749 = vmul.f32 %v2677, %v2320
        %v2750 = vmul.f32 %v2678, %v2322
        %v2751 = vmul.f32 %v2679, %v2324
        %v2752 = vmul.f32 %v2680, %v2326
        %v2753 = vmul.f32 %v2681, %v2328
        %v2754 = vmul.f32 %v2682, %v2330
        %v2755 = vmul.f32 %v2683, %v2332
        %v2756 = vmul.f32 %v2684, %v2334
        %v2757 = vmul.f32 %v2685, %v2336
        %v2758 = vmul.f32 %v2686, %v2338
        %v2759 = vmul.f32 %v2687, %v2340
        %v2760 = vmul.f32 %v2688, %v2342
        %v2761 = vmul.f32 %v2689, %v2344
        %v2762 = vmul.f32 %v2690, %v2346
        %v2763 = vmul.f32 %v2691, %v2348
        %v2764 = vmul.f32 %v2692, %v2350
        %v2765 = vmul.f32 %v2693, %v2352
        %v2766 = vmul.f32 %v2694, %v2354
        %v2767 = vmul.f32 %v2695, %v2356
        %v2768 = vmul.f32 %v2696, %v2358
        %v2769 = vmul.f32 %v2697, %v2360
        %v2770 = vmul.f32 %v2698, %v2362
        %v2771 = vmul.f32 %v2699, %v2364
        %v2772 = vmul.f32 %v2700, %v2366
        %v2773 = vmul.f32 %v2701, %v2368
        %v2774 = vmul.f32 %v2702, %v2370
        %v2775 = vmul.f32 %v2703, %v2372
        %v2776 = vmul.f32 %v2704, %v2374
        %v2777 = vmul.f32 %v2705, %v2376
        %v2778 = vmul.f32 %v2706, %v2378
        %v2779 = vmul.f32 %v2707, %v2380
        %v2780 = vmul.f32 %v2708, %v2382
        %v2781 = vmul.f32 %v2709, %v2384
        %v2782 = vmul.f32 %v2710, %v2386
        %v2783 = vmul.f32 %v2711, %v2388
        %v2784 = vmul.f32 %v2712, %v2390
        %v2785 = vmul.f32 %v2713, %v2392
        %v2786 = vmul.f32 %v2714, %v2394
        %v2787 = vmul.f32 %v2715, %v2396
        %v2788 = vmul.f32 %v2716, %v2398
        %v2789 = vmul.f32 %v2717, %v2400
        %v2790 = vmul.f32 %v2718, %v2402
        %v2791 = vmul.f32 %v2719, %v2404
        %v2792 = vmul.f32 %v2720, %v2406
        %v2793 = vmul.f32 %v2721, %v2408
        %v2794 = vmul.f32 %v2722, %v2410
        %v2795 = vmul.f32 %v2723, %v2412
        %v2796 = vmul.f32 %v2724, %v2414
        %v2797 = vmul.f32 %v2725, %v2416
        %v2798 = vmul.f32 %v2726, %v2418
        %v2799 = vmul.f32 %v2727, %v2420
        %v2800 = vmul.f32 %v2728, %v2422
        %v2801 = vmul.f32 %v2729, %v2424
        %v2802 = vmul.f32 %v2730, %v2426
        %v2803 = vmul.f32 %v2731, %v2428
        %v2804 = vmul.f32 %v2732, %v2430
        %v2805 = vmul.f32 %v2733, %v2432
        %v2806 = vmul.f32 %v2734, %v2434
        %v2807 = vmul.f32 %v2735, %v2436
        %v2808 = vmul.f32 %v2736, %v2438
        %v2809 = vmul.f32 %v2737, %v2440
        %v2810 = vmul.f32 %v2738, %v2442
        %v2811 = vmul.f32 %v2739, %v2444
        %v2812 = vmul.f32 %v2740, %v2446
        %v2813 = vmul.f32 %v2741, %v2448
        %v2814 = vmul.f32 %v2742, %v2450
        %v2815 = vmul.f32 %v2743, %v2452
        %v2816 = vmul.f32 %v2744, %v2454
        %v2817 = vmul.f32 %v2745, %v2456
        %v2818 = vmul.f32 %v2746, %v2458
        %v2819 = vsub.f32 0.0, %v2099
        %v2820 = vsub.f32 0.0, %v2100
        %v2821 = vsub.f32 0.0, %v2101
        %v2822 = vsub.f32 0.0, %v2102
        %v2823 = vsub.f32 0.0, %v2103
        %v2824 = vsub.f32 0.0, %v2104
        %v2825 = vsub.f32 0.0, %v2105
        %v2826 = vsub.f32 0.0, %v2106
        %v2827 = vsub.f32 0.0, %v2107
        %v2828 = vsub.f32 0.0, %v2108
        %v2829 = vsub.f32 0.0, %v2109
        %v2830 = vsub.f32 0.0, %v2110
        %v2831 = vsub.f32 0.0, %v2111
        %v2832 = vsub.f32 0.0, %v2112
        %v2833 = vsub.f32 0.0, %v2113
        %v2834 = vsub.f32 0.0, %v2114
        %v2835 = vsub.f32 0.0, %v2115
        %v2836 = vsub.f32 0.0, %v2116
        %v2837 = vsub.f32 0.0, %v2117
        %v2838 = vsub.f32 0.0, %v2118
        %v2839 = vsub.f32 0.0, %v2119
        %v2840 = vsub.f32 0.0, %v2120
        %v2841 = vsub.f32 0.0, %v2121
        %v2842 = vsub.f32 0.0, %v2122
        %v2843 = vsub.f32 0.0, %v2123
        %v2844 = vsub.f32 0.0, %v2124
        %v2845 = vsub.f32 0.0, %v2125
        %v2846 = vsub.f32 0.0, %v2126
        %v2847 = vsub.f32 0.0, %v2127
        %v2848 = vsub.f32 0.0, %v2128
        %v2849 = vsub.f32 0.0, %v2129
        %v2850 = vsub.f32 0.0, %v2130
        %v2851 = vsub.f32 0.0, %v2131
        %v2852 = vsub.f32 0.0, %v2132
        %v2853 = vsub.f32 0.0, %v2133
        %v2854 = vsub.f32 0.0, %v2134
        %v2855 = vsub.f32 0.0, %v2135
        %v2856 = vsub.f32 0.0, %v2136
        %v2857 = vsub.f32 0.0, %v2137
        %v2858 = vsub.f32 0.0, %v2138
        %v2859 = vsub.f32 0.0, %v2139
        %v2860 = vsub.f32 0.0, %v2140
        %v2861 = vsub.f32 0.0, %v2141
        %v2862 = vsub.f32 0.0, %v2142
        %v2863 = vsub.f32 0.0, %v2143
        %v2864 = vsub.f32 0.0, %v2144
        %v2865 = vsub.f32 0.0, %v2145
        %v2866 = vsub.f32 0.0, %v2146
        %v2867 = vsub.f32 0.0, %v2147
        %v2868 = vsub.f32 0.0, %v2148
        %v2869 = vsub.f32 0.0, %v2149
        %v2870 = vsub.f32 0.0, %v2150
        %v2871 = vsub.f32 0.0, %v2151
        %v2872 = vsub.f32 0.0, %v2152
        %v2873 = vsub.f32 0.0, %v2153
        %v2874 = vsub.f32 0.0, %v2154
        %v2875 = vsub.f32 0.0, %v2155
        %v2876 = vsub.f32 0.0, %v2156
        %v2877 = vsub.f32 0.0, %v2157
        %v2878 = vsub.f32 0.0, %v2158
        %v2879 = vsub.f32 0.0, %v2159
        %v2880 = vsub.f32 0.0, %v2160
        %v2881 = vsub.f32 0.0, %v2161
        %v2882 = vsub.f32 0.0, %v2162
        %v2883 = vsub.f32 0.0, %v2163
        %v2884 = vsub.f32 0.0, %v2164
        %v2885 = vsub.f32 0.0, %v2165
        %v2886 = vsub.f32 0.0, %v2166
        %v2887 = vsub.f32 0.0, %v2167
        %v2888 = vsub.f32 0.0, %v2168
        %v2889 = vsub.f32 0.0, %v2169
        %v2890 = vsub.f32 0.0, %v2170
        %v2891 = vmul.f32 %v2819, %v2099
        %v2892 = vmul.f32 %v2820, %v2100
        %v2893 = vmul.f32 %v2821, %v2101
        %v2894 = vmul.f32 %v2822, %v2102
        %v2895 = vmul.f32 %v2823, %v2103
        %v2896 = vmul.f32 %v2824, %v2104
        %v2897 = vmul.f32 %v2825, %v2105
        %v2898 = vmul.f32 %v2826, %v2106
        %v2899 = vmul.f32 %v2827, %v2107
        %v2900 = vmul.f32 %v2828, %v2108
        %v2901 = vmul.f32 %v2829, %v2109
        %v2902 = vmul.f32 %v2830, %v2110
        %v2903 = vmul.f32 %v2831, %v2111
        %v2904 = vmul.f32 %v2832, %v2112
        %v2905 = vmul.f32 %v2833, %v2113
        %v2906 = vmul.f32 %v2834, %v2114
        %v2907 = vmul.f32 %v2835, %v2115
        %v2908 = vmul.f32 %v2836, %v2116
        %v2909 = vmul.f32 %v2837, %v2117
        %v2910 = vmul.f32 %v2838, %v2118
        %v2911 = vmul.f32 %v2839, %v2119
        %v2912 = vmul.f32 %v2840, %v2120
        %v2913 = vmul.f32 %v2841, %v2121
        %v2914 = vmul.f32 %v2842, %v2122
        %v2915 = vmul.f32 %v2843, %v2123
        %v2916 = vmul.f32 %v2844, %v2124
        %v2917 = vmul.f32 %v2845, %v2125
        %v2918 = vmul.f32 %v2846, %v2126
        %v2919 = vmul.f32 %v2847, %v2127
        %v2920 = vmul.f32 %v2848, %v2128
        %v2921 = vmul.f32 %v2849, %v2129
        %v2922 = vmul.f32 %v2850, %v2130
        %v2923 = vmul.f32 %v2851, %v2131
        %v2924 = vmul.f32 %v2852, %v2132
        %v2925 = vmul.f32 %v2853, %v2133
        %v2926 = vmul.f32 %v2854, %v2134
        %v2927 = vmul.f32 %v2855, %v2135
        %v2928 = vmul.f32 %v2856, %v2136
        %v2929 = vmul.f32 %v2857, %v2137
        %v2930 = vmul.f32 %v2858, %v2138
        %v2931 = vmul.f32 %v2859, %v2139
        %v2932 = vmul.f32 %v2860, %v2140
        %v2933 = vmul.f32 %v2861, %v2141
        %v2934 = vmul.f32 %v2862, %v2142
        %v2935 = vmul.f32 %v2863, %v2143
        %v2936 = vmul.f32 %v2864, %v2144
        %v2937 = vmul.f32 %v2865, %v2145
        %v2938 = vmul.f32 %v2866, %v2146
        %v2939 = vmul.f32 %v2867, %v2147
        %v2940 = vmul.f32 %v2868, %v2148
        %v2941 = vmul.f32 %v2869, %v2149
        %v2942 = vmul.f32 %v2870, %v2150
        %v2943 = vmul.f32 %v2871, %v2151
        %v2944 = vmul.f32 %v2872, %v2152
        %v2945 = vmul.f32 %v2873, %v2153
        %v2946 = vmul.f32 %v2874, %v2154
        %v2947 = vmul.f32 %v2875, %v2155
        %v2948 = vmul.f32 %v2876, %v2156
        %v2949 = vmul.f32 %v2877, %v2157
        %v2950 = vmul.f32 %v2878, %v2158
        %v2951 = vmul.f32 %v2879, %v2159
        %v2952 = vmul.f32 %v2880, %v2160
        %v2953 = vmul.f32 %v2881, %v2161
        %v2954 = vmul.f32 %v2882, %v2162
        %v2955 = vmul.f32 %v2883, %v2163
        %v2956 = vmul.f32 %v2884, %v2164
        %v2957 = vmul.f32 %v2885, %v2165
        %v2958 = vmul.f32 %v2886, %v2166
        %v2959 = vmul.f32 %v2887, %v2167
        %v2960 = vmul.f32 %v2888, %v2168
        %v2961 = vmul.f32 %v2889, %v2169
        %v2962 = vmul.f32 %v2890, %v2170
        %v2963 = vmul.f32 %v2891, 1.442695
        %v2964 = vpow.pop %v2963
        %v2965 = vmul.f32 %v2892, 1.442695
        %v2966 = vpow.pop %v2965
        %v2967 = vmul.f32 %v2893, 1.442695
        %v2968 = vpow.pop %v2967
        %v2969 = vmul.f32 %v2894, 1.442695
        %v2970 = vpow.pop %v2969
        %v2971 = vmul.f32 %v2895, 1.442695
        %v2972 = vpow.pop %v2971
        %v2973 = vmul.f32 %v2896, 1.442695
        %v2974 = vpow.pop %v2973
        %v2975 = vmul.f32 %v2897, 1.442695
        %v2976 = vpow.pop %v2975
        %v2977 = vmul.f32 %v2898, 1.442695
        %v2978 = vpow.pop %v2977
        %v2979 = vmul.f32 %v2899, 1.442695
        %v2980 = vpow.pop %v2979
        %v2981 = vmul.f32 %v2900, 1.442695
        %v2982 = vpow.pop %v2981
        %v2983 = vmul.f32 %v2901, 1.442695
        %v2984 = vpow.pop %v2983
        %v2985 = vmul.f32 %v2902, 1.442695
        %v2986 = vpow.pop %v2985
        %v2987 = vmul.f32 %v2903, 1.442695
        %v2988 = vpow.pop %v2987
        %v2989 = vmul.f32 %v2904, 1.442695
        %v2990 = vpow.pop %v2989
        %v2991 = vmul.f32 %v2905, 1.442695
        %v2992 = vpow.pop %v2991
        %v2993 = vmul.f32 %v2906, 1.442695
        %v2994 = vpow.pop %v2993
        %v2995 = vmul.f32 %v2907, 1.442695
        %v2996 = vpow.pop %v2995
        %v2997 = vmul.f32 %v2908, 1.442695
        %v2998 = vpow.pop %v2997
        %v2999 = vmul.f32 %v2909, 1.442695
        %v3000 = vpow.pop %v2999
        %v3001 = vmul.f32 %v2910, 1.442695
        %v3002 = vpow.pop %v3001
        %v3003 = vmul.f32 %v2911, 1.442695
        %v3004 = vpow.pop %v3003
        %v3005 = vmul.f32 %v2912, 1.442695
        %v3006 = vpow.pop %v3005
        %v3007 = vmul.f32 %v2913, 1.442695
        %v3008 = vpow.pop %v3007
        %v3009 = vmul.f32 %v2914, 1.442695
        %v3010 = vpow.pop %v3009
        %v3011 = vmul.f32 %v2915, 1.442695
        %v3012 = vpow.pop %v3011
        %v3013 = vmul.f32 %v2916, 1.442695
        %v3014 = vpow.pop %v3013
        %v3015 = vmul.f32 %v2917, 1.442695
        %v3016 = vpow.pop %v3015
        %v3017 = vmul.f32 %v2918, 1.442695
        %v3018 = vpow.pop %v3017
        %v3019 = vmul.f32 %v2919, 1.442695
        %v3020 = vpow.pop %v3019
        %v3021 = vmul.f32 %v2920, 1.442695
        %v3022 = vpow.pop %v3021
        %v3023 = vmul.f32 %v2921, 1.442695
        %v3024 = vpow.pop %v3023
        %v3025 = vmul.f32 %v2922, 1.442695
        %v3026 = vpow.pop %v3025
        %v3027 = vmul.f32 %v2923, 1.442695
        %v3028 = vpow.pop %v3027
        %v3029 = vmul.f32 %v2924, 1.442695
        %v3030 = vpow.pop %v3029
        %v3031 = vmul.f32 %v2925, 1.442695
        %v3032 = vpow.pop %v3031
        %v3033 = vmul.f32 %v2926, 1.442695
        %v3034 = vpow.pop %v3033
        %v3035 = vmul.f32 %v2927, 1.442695
        %v3036 = vpow.pop %v3035
        %v3037 = vmul.f32 %v2928, 1.442695
        %v3038 = vpow.pop %v3037
        %v3039 = vmul.f32 %v2929, 1.442695
        %v3040 = vpow.pop %v3039
        %v3041 = vmul.f32 %v2930, 1.442695
        %v3042 = vpow.pop %v3041
        %v3043 = vmul.f32 %v2931, 1.442695
        %v3044 = vpow.pop %v3043
        %v3045 = vmul.f32 %v2932, 1.442695
        %v3046 = vpow.pop %v3045
        %v3047 = vmul.f32 %v2933, 1.442695
        %v3048 = vpow.pop %v3047
        %v3049 = vmul.f32 %v2934, 1.442695
        %v3050 = vpow.pop %v3049
        %v3051 = vmul.f32 %v2935, 1.442695
        %v3052 = vpow.pop %v3051
        %v3053 = vmul.f32 %v2936, 1.442695
        %v3054 = vpow.pop %v3053
        %v3055 = vmul.f32 %v2937, 1.442695
        %v3056 = vpow.pop %v3055
        %v3057 = vmul.f32 %v2938, 1.442695
        %v3058 = vpow.pop %v3057
        %v3059 = vmul.f32 %v2939, 1.442695
        %v3060 = vpow.pop %v3059
        %v3061 = vmul.f32 %v2940, 1.442695
        %v3062 = vpow.pop %v3061
        %v3063 = vmul.f32 %v2941, 1.442695
        %v3064 = vpow.pop %v3063
        %v3065 = vmul.f32 %v2942, 1.442695
        %v3066 = vpow.pop %v3065
        %v3067 = vmul.f32 %v2943, 1.442695
        %v3068 = vpow.pop %v3067
        %v3069 = vmul.f32 %v2944, 1.442695
        %v3070 = vpow.pop %v3069
        %v3071 = vmul.f32 %v2945, 1.442695
        %v3072 = vpow.pop %v3071
        %v3073 = vmul.f32 %v2946, 1.442695
        %v3074 = vpow.pop %v3073
        %v3075 = vmul.f32 %v2947, 1.442695
        %v3076 = vpow.pop %v3075
        %v3077 = vmul.f32 %v2948, 1.442695
        %v3078 = vpow.pop %v3077
        %v3079 = vmul.f32 %v2949, 1.442695
        %v3080 = vpow.pop %v3079
        %v3081 = vmul.f32 %v2950, 1.442695
        %v3082 = vpow.pop %v3081
        %v3083 = vmul.f32 %v2951, 1.442695
        %v3084 = vpow.pop %v3083
        %v3085 = vmul.f32 %v2952, 1.442695
        %v3086 = vpow.pop %v3085
        %v3087 = vmul.f32 %v2953, 1.442695
        %v3088 = vpow.pop %v3087
        %v3089 = vmul.f32 %v2954, 1.442695
        %v3090 = vpow.pop %v3089
        %v3091 = vmul.f32 %v2955, 1.442695
        %v3092 = vpow.pop %v3091
        %v3093 = vmul.f32 %v2956, 1.442695
        %v3094 = vpow.pop %v3093
        %v3095 = vmul.f32 %v2957, 1.442695
        %v3096 = vpow.pop %v3095
        %v3097 = vmul.f32 %v2958, 1.442695
        %v3098 = vpow.pop %v3097
        %v3099 = vmul.f32 %v2959, 1.442695
        %v3100 = vpow.pop %v3099
        %v3101 = vmul.f32 %v2960, 1.442695
        %v3102 = vpow.pop %v3101
        %v3103 = vmul.f32 %v2961, 1.442695
        %v3104 = vpow.pop %v3103
        %v3105 = vmul.f32 %v2962, 1.442695
        %v3106 = vpow.pop %v3105
        %v3107 = vmul.f32 %v2747, %v2964
        %v3108 = vmul.f32 %v2748, %v2966
        %v3109 = vmul.f32 %v2749, %v2968
        %v3110 = vmul.f32 %v2750, %v2970
        %v3111 = vmul.f32 %v2751, %v2972
        %v3112 = vmul.f32 %v2752, %v2974
        %v3113 = vmul.f32 %v2753, %v2976
        %v3114 = vmul.f32 %v2754, %v2978
        %v3115 = vmul.f32 %v2755, %v2980
        %v3116 = vmul.f32 %v2756, %v2982
        %v3117 = vmul.f32 %v2757, %v2984
        %v3118 = vmul.f32 %v2758, %v2986
        %v3119 = vmul.f32 %v2759, %v2988
        %v3120 = vmul.f32 %v2760, %v2990
        %v3121 = vmul.f32 %v2761, %v2992
        %v3122 = vmul.f32 %v2762, %v2994
        %v3123 = vmul.f32 %v2763, %v2996
        %v3124 = vmul.f32 %v2764, %v2998
        %v3125 = vmul.f32 %v2765, %v3000
        %v3126 = vmul.f32 %v2766, %v3002
        %v3127 = vmul.f32 %v2767, %v3004
        %v3128 = vmul.f32 %v2768, %v3006
        %v3129 = vmul.f32 %v2769, %v3008
        %v3130 = vmul.f32 %v2770, %v3010
        %v3131 = vmul.f32 %v2771, %v3012
        %v3132 = vmul.f32 %v2772, %v3014
        %v3133 = vmul.f32 %v2773, %v3016
        %v3134 = vmul.f32 %v2774, %v3018
        %v3135 = vmul.f32 %v2775, %v3020
        %v3136 = vmul.f32 %v2776, %v3022
        %v3137 = vmul.f32 %v2777, %v3024
        %v3138 = vmul.f32 %v2778, %v3026
        %v3139 = vmul.f32 %v2779, %v3028
        %v3140 = vmul.f32 %v2780, %v3030
        %v3141 = vmul.f32 %v2781, %v3032
        %v3142 = vmul.f32 %v2782, %v3034
        %v3143 = vmul.f32 %v2783, %v3036
        %v3144 = vmul.f32 %v2784, %v3038
        %v3145 = vmul.f32 %v2785, %v3040
        %v3146 = vmul.f32 %v2786, %v3042
        %v3147 = vmul.f32 %v2787, %v3044
        %v3148 = vmul.f32 %v2788, %v3046
        %v3149 = vmul.f32 %v2789, %v3048
        %v3150 = vmul.f32 %v2790, %v3050
        %v3151 = vmul.f32 %v2791, %v3052
        %v3152 = vmul.f32 %v2792, %v3054
        %v3153 = vmul.f32 %v2793, %v3056
        %v3154 = vmul.f32 %v2794, %v3058
        %v3155 = vmul.f32 %v2795, %v3060
        %v3156 = vmul.f32 %v2796, %v3062
        %v3157 = vmul.f32 %v2797, %v3064
        %v3158 = vmul.f32 %v2798, %v3066
        %v3159 = vmul.f32 %v2799, %v3068
        %v3160 = vmul.f32 %v2800, %v3070
        %v3161 = vmul.f32 %v2801, %v3072
        %v3162 = vmul.f32 %v2802, %v3074
        %v3163 = vmul.f32 %v2803, %v3076
        %v3164 = vmul.f32 %v2804, %v3078
        %v3165 = vmul.f32 %v2805, %v3080
        %v3166 = vmul.f32 %v2806, %v3082
        %v3167 = vmul.f32 %v2807, %v3084
        %v3168 = vmul.f32 %v2808, %v3086
        %v3169 = vmul.f32 %v2809, %v3088
        %v3170 = vmul.f32 %v2810, %v3090
        %v3171 = vmul.f32 %v2811, %v3092
        %v3172 = vmul.f32 %v2812, %v3094
        %v3173 = vmul.f32 %v2813, %v3096
        %v3174 = vmul.f32 %v2814, %v3098
        %v3175 = vmul.f32 %v2815, %v3100
        %v3176 = vmul.f32 %v2816, %v3102
        %v3177 = vmul.f32 %v2817, %v3104
        %v3178 = vmul.f32 %v2818, %v3106
        %vm3179 = vcmp.ge.f32.partialorder %v2027, 0.0
        %vm3180 = vcmp.ge.f32.partialorder %v2028, 0.0
        %vm3181 = vcmp.ge.f32.partialorder %v2029, 0.0
        %vm3182 = vcmp.ge.f32.partialorder %v2030, 0.0
        %vm3183 = vcmp.ge.f32.partialorder %v2031, 0.0
        %vm3184 = vcmp.ge.f32.partialorder %v2032, 0.0
        %vm3185 = vcmp.ge.f32.partialorder %v2033, 0.0
        %vm3186 = vcmp.ge.f32.partialorder %v2034, 0.0
        %vm3187 = vcmp.ge.f32.partialorder %v2035, 0.0
        %vm3188 = vcmp.ge.f32.partialorder %v2036, 0.0
        %vm3189 = vcmp.ge.f32.partialorder %v2037, 0.0
        %vm3190 = vcmp.ge.f32.partialorder %v2038, 0.0
        %vm3191 = vcmp.ge.f32.partialorder %v2039, 0.0
        %vm3192 = vcmp.ge.f32.partialorder %v2040, 0.0
        %vm3193 = vcmp.ge.f32.partialorder %v2041, 0.0
        %vm3194 = vcmp.ge.f32.partialorder %v2042, 0.0
        %vm3195 = vcmp.ge.f32.partialorder %v2043, 0.0
        %vm3196 = vcmp.ge.f32.partialorder %v2044, 0.0
        %vm3197 = vcmp.ge.f32.partialorder %v2045, 0.0
        %vm3198 = vcmp.ge.f32.partialorder %v2046, 0.0
        %vm3199 = vcmp.ge.f32.partialorder %v2047, 0.0
        %vm3200 = vcmp.ge.f32.partialorder %v2048, 0.0
        %vm3201 = vcmp.ge.f32.partialorder %v2049, 0.0
        %vm3202 = vcmp.ge.f32.partialorder %v2050, 0.0
        %vm3203 = vcmp.ge.f32.partialorder %v2051, 0.0
        %vm3204 = vcmp.ge.f32.partialorder %v2052, 0.0
        %vm3205 = vcmp.ge.f32.partialorder %v2053, 0.0
        %vm3206 = vcmp.ge.f32.partialorder %v2054, 0.0
        %vm3207 = vcmp.ge.f32.partialorder %v2055, 0.0
        %vm3208 = vcmp.ge.f32.partialorder %v2056, 0.0
        %vm3209 = vcmp.ge.f32.partialorder %v2057, 0.0
        %vm3210 = vcmp.ge.f32.partialorder %v2058, 0.0
        %vm3211 = vcmp.ge.f32.partialorder %v2059, 0.0
        %vm3212 = vcmp.ge.f32.partialorder %v2060, 0.0
        %vm3213 = vcmp.ge.f32.partialorder %v2061, 0.0
        %vm3214 = vcmp.ge.f32.partialorder %v2062, 0.0
        %vm3215 = vcmp.ge.f32.partialorder %v2063, 0.0
        %vm3216 = vcmp.ge.f32.partialorder %v2064, 0.0
        %vm3217 = vcmp.ge.f32.partialorder %v2065, 0.0
        %vm3218 = vcmp.ge.f32.partialorder %v2066, 0.0
        %vm3219 = vcmp.ge.f32.partialorder %v2067, 0.0
        %vm3220 = vcmp.ge.f32.partialorder %v2068, 0.0
        %vm3221 = vcmp.ge.f32.partialorder %v2069, 0.0
        %vm3222 = vcmp.ge.f32.partialorder %v2070, 0.0
        %vm3223 = vcmp.ge.f32.partialorder %v2071, 0.0
        %vm3224 = vcmp.ge.f32.partialorder %v2072, 0.0
        %vm3225 = vcmp.ge.f32.partialorder %v2073, 0.0
        %vm3226 = vcmp.ge.f32.partialorder %v2074, 0.0
        %vm3227 = vcmp.ge.f32.partialorder %v2075, 0.0
        %vm3228 = vcmp.ge.f32.partialorder %v2076, 0.0
        %vm3229 = vcmp.ge.f32.partialorder %v2077, 0.0
        %vm3230 = vcmp.ge.f32.partialorder %v2078, 0.0
        %vm3231 = vcmp.ge.f32.partialorder %v2079, 0.0
        %vm3232 = vcmp.ge.f32.partialorder %v2080, 0.0
        %vm3233 = vcmp.ge.f32.partialorder %v2081, 0.0
        %vm3234 = vcmp.ge.f32.partialorder %v2082, 0.0
        %vm3235 = vcmp.ge.f32.partialorder %v2083, 0.0
        %vm3236 = vcmp.ge.f32.partialorder %v2084, 0.0
        %vm3237 = vcmp.ge.f32.partialorder %v2085, 0.0
        %vm3238 = vcmp.ge.f32.partialorder %v2086, 0.0
        %vm3239 = vcmp.ge.f32.partialorder %v2087, 0.0
        %vm3240 = vcmp.ge.f32.partialorder %v2088, 0.0
        %vm3241 = vcmp.ge.f32.partialorder %v2089, 0.0
        %vm3242 = vcmp.ge.f32.partialorder %v2090, 0.0
        %vm3243 = vcmp.ge.f32.partialorder %v2091, 0.0
        %vm3244 = vcmp.ge.f32.partialorder %v2092, 0.0
        %vm3245 = vcmp.ge.f32.partialorder %v2093, 0.0
        %vm3246 = vcmp.ge.f32.partialorder %v2094, 0.0
        %vm3247 = vcmp.ge.f32.partialorder %v2095, 0.0
        %vm3248 = vcmp.ge.f32.partialorder %v2096, 0.0
        %vm3249 = vcmp.ge.f32.partialorder %v2097, 0.0
        %vm3250 = vcmp.ge.f32.partialorder %v2098, 0.0
        %v3251 = vsub.f32 1.0, %v3107
        %v3252 = vsub.f32 1.0, %v3108
        %v3253 = vsub.f32 1.0, %v3109
        %v3254 = vsub.f32 1.0, %v3110
        %v3255 = vsub.f32 1.0, %v3111
        %v3256 = vsub.f32 1.0, %v3112
        %v3257 = vsub.f32 1.0, %v3113
        %v3258 = vsub.f32 1.0, %v3114
        %v3259 = vsub.f32 1.0, %v3115
        %v3260 = vsub.f32 1.0, %v3116
        %v3261 = vsub.f32 1.0, %v3117
        %v3262 = vsub.f32 1.0, %v3118
        %v3263 = vsub.f32 1.0, %v3119
        %v3264 = vsub.f32 1.0, %v3120
        %v3265 = vsub.f32 1.0, %v3121
        %v3266 = vsub.f32 1.0, %v3122
        %v3267 = vsub.f32 1.0, %v3123
        %v3268 = vsub.f32 1.0, %v3124
        %v3269 = vsub.f32 1.0, %v3125
        %v3270 = vsub.f32 1.0, %v3126
        %v3271 = vsub.f32 1.0, %v3127
        %v3272 = vsub.f32 1.0, %v3128
        %v3273 = vsub.f32 1.0, %v3129
        %v3274 = vsub.f32 1.0, %v3130
        %v3275 = vsub.f32 1.0, %v3131
        %v3276 = vsub.f32 1.0, %v3132
        %v3277 = vsub.f32 1.0, %v3133
        %v3278 = vsub.f32 1.0, %v3134
        %v3279 = vsub.f32 1.0, %v3135
        %v3280 = vsub.f32 1.0, %v3136
        %v3281 = vsub.f32 1.0, %v3137
        %v3282 = vsub.f32 1.0, %v3138
        %v3283 = vsub.f32 1.0, %v3139
        %v3284 = vsub.f32 1.0, %v3140
        %v3285 = vsub.f32 1.0, %v3141
        %v3286 = vsub.f32 1.0, %v3142
        %v3287 = vsub.f32 1.0, %v3143
        %v3288 = vsub.f32 1.0, %v3144
        %v3289 = vsub.f32 1.0, %v3145
        %v3290 = vsub.f32 1.0, %v3146
        %v3291 = vsub.f32 1.0, %v3147
        %v3292 = vsub.f32 1.0, %v3148
        %v3293 = vsub.f32 1.0, %v3149
        %v3294 = vsub.f32 1.0, %v3150
        %v3295 = vsub.f32 1.0, %v3151
        %v3296 = vsub.f32 1.0, %v3152
        %v3297 = vsub.f32 1.0, %v3153
        %v3298 = vsub.f32 1.0, %v3154
        %v3299 = vsub.f32 1.0, %v3155
        %v3300 = vsub.f32 1.0, %v3156
        %v3301 = vsub.f32 1.0, %v3157
        %v3302 = vsub.f32 1.0, %v3158
        %v3303 = vsub.f32 1.0, %v3159
        %v3304 = vsub.f32 1.0, %v3160
        %v3305 = vsub.f32 1.0, %v3161
        %v3306 = vsub.f32 1.0, %v3162
        %v3307 = vsub.f32 1.0, %v3163
        %v3308 = vsub.f32 1.0, %v3164
        %v3309 = vsub.f32 1.0, %v3165
        %v3310 = vsub.f32 1.0, %v3166
        %v3311 = vsub.f32 1.0, %v3167
        %v3312 = vsub.f32 1.0, %v3168
        %v3313 = vsub.f32 1.0, %v3169
        %v3314 = vsub.f32 1.0, %v3170
        %v3315 = vsub.f32 1.0, %v3171
        %v3316 = vsub.f32 1.0, %v3172
        %v3317 = vsub.f32 1.0, %v3173
        %v3318 = vsub.f32 1.0, %v3174
        %v3319 = vsub.f32 1.0, %v3175
        %v3320 = vsub.f32 1.0, %v3176
        %v3321 = vsub.f32 1.0, %v3177
        %v3322 = vsub.f32 1.0, %v3178
        %v3323 = vsub.f32 %v3107, 1.0
        %v3324 = vsub.f32 %v3108, 1.0
        %v3325 = vsub.f32 %v3109, 1.0
        %v3326 = vsub.f32 %v3110, 1.0
        %v3327 = vsub.f32 %v3111, 1.0
        %v3328 = vsub.f32 %v3112, 1.0
        %v3329 = vsub.f32 %v3113, 1.0
        %v3330 = vsub.f32 %v3114, 1.0
        %v3331 = vsub.f32 %v3115, 1.0
        %v3332 = vsub.f32 %v3116, 1.0
        %v3333 = vsub.f32 %v3117, 1.0
        %v3334 = vsub.f32 %v3118, 1.0
        %v3335 = vsub.f32 %v3119, 1.0
        %v3336 = vsub.f32 %v3120, 1.0
        %v3337 = vsub.f32 %v3121, 1.0
        %v3338 = vsub.f32 %v3122, 1.0
        %v3339 = vsub.f32 %v3123, 1.0
        %v3340 = vsub.f32 %v3124, 1.0
        %v3341 = vsub.f32 %v3125, 1.0
        %v3342 = vsub.f32 %v3126, 1.0
        %v3343 = vsub.f32 %v3127, 1.0
        %v3344 = vsub.f32 %v3128, 1.0
        %v3345 = vsub.f32 %v3129, 1.0
        %v3346 = vsub.f32 %v3130, 1.0
        %v3347 = vsub.f32 %v3131, 1.0
        %v3348 = vsub.f32 %v3132, 1.0
        %v3349 = vsub.f32 %v3133, 1.0
        %v3350 = vsub.f32 %v3134, 1.0
        %v3351 = vsub.f32 %v3135, 1.0
        %v3352 = vsub.f32 %v3136, 1.0
        %v3353 = vsub.f32 %v3137, 1.0
        %v3354 = vsub.f32 %v3138, 1.0
        %v3355 = vsub.f32 %v3139, 1.0
        %v3356 = vsub.f32 %v3140, 1.0
        %v3357 = vsub.f32 %v3141, 1.0
        %v3358 = vsub.f32 %v3142, 1.0
        %v3359 = vsub.f32 %v3143, 1.0
        %v3360 = vsub.f32 %v3144, 1.0
        %v3361 = vsub.f32 %v3145, 1.0
        %v3362 = vsub.f32 %v3146, 1.0
        %v3363 = vsub.f32 %v3147, 1.0
        %v3364 = vsub.f32 %v3148, 1.0
        %v3365 = vsub.f32 %v3149, 1.0
        %v3366 = vsub.f32 %v3150, 1.0
        %v3367 = vsub.f32 %v3151, 1.0
        %v3368 = vsub.f32 %v3152, 1.0
        %v3369 = vsub.f32 %v3153, 1.0
        %v3370 = vsub.f32 %v3154, 1.0
        %v3371 = vsub.f32 %v3155, 1.0
        %v3372 = vsub.f32 %v3156, 1.0
        %v3373 = vsub.f32 %v3157, 1.0
        %v3374 = vsub.f32 %v3158, 1.0
        %v3375 = vsub.f32 %v3159, 1.0
        %v3376 = vsub.f32 %v3160, 1.0
        %v3377 = vsub.f32 %v3161, 1.0
        %v3378 = vsub.f32 %v3162, 1.0
        %v3379 = vsub.f32 %v3163, 1.0
        %v3380 = vsub.f32 %v3164, 1.0
        %v3381 = vsub.f32 %v3165, 1.0
        %v3382 = vsub.f32 %v3166, 1.0
        %v3383 = vsub.f32 %v3167, 1.0
        %v3384 = vsub.f32 %v3168, 1.0
        %v3385 = vsub.f32 %v3169, 1.0
        %v3386 = vsub.f32 %v3170, 1.0
        %v3387 = vsub.f32 %v3171, 1.0
        %v3388 = vsub.f32 %v3172, 1.0
        %v3389 = vsub.f32 %v3173, 1.0
        %v3390 = vsub.f32 %v3174, 1.0
        %v3391 = vsub.f32 %v3175, 1.0
        %v3392 = vsub.f32 %v3176, 1.0
        %v3393 = vsub.f32 %v3177, 1.0
        %v3394 = vsub.f32 %v3178, 1.0
        %v3395 = vsel %vm3179, %v3251, %v3323
        %v3396 = vsel %vm3180, %v3252, %v3324
        %v3397 = vsel %vm3181, %v3253, %v3325
        %v3398 = vsel %vm3182, %v3254, %v3326
        %v3399 = vsel %vm3183, %v3255, %v3327
        %v3400 = vsel %vm3184, %v3256, %v3328
        %v3401 = vsel %vm3185, %v3257, %v3329
        %v3402 = vsel %vm3186, %v3258, %v3330
        %v3403 = vsel %vm3187, %v3259, %v3331
        %v3404 = vsel %vm3188, %v3260, %v3332
        %v3405 = vsel %vm3189, %v3261, %v3333
        %v3406 = vsel %vm3190, %v3262, %v3334
        %v3407 = vsel %vm3191, %v3263, %v3335
        %v3408 = vsel %vm3192, %v3264, %v3336
        %v3409 = vsel %vm3193, %v3265, %v3337
        %v3410 = vsel %vm3194, %v3266, %v3338
        %v3411 = vsel %vm3195, %v3267, %v3339
        %v3412 = vsel %vm3196, %v3268, %v3340
        %v3413 = vsel %vm3197, %v3269, %v3341
        %v3414 = vsel %vm3198, %v3270, %v3342
        %v3415 = vsel %vm3199, %v3271, %v3343
        %v3416 = vsel %vm3200, %v3272, %v3344
        %v3417 = vsel %vm3201, %v3273, %v3345
        %v3418 = vsel %vm3202, %v3274, %v3346
        %v3419 = vsel %vm3203, %v3275, %v3347
        %v3420 = vsel %vm3204, %v3276, %v3348
        %v3421 = vsel %vm3205, %v3277, %v3349
        %v3422 = vsel %vm3206, %v3278, %v3350
        %v3423 = vsel %vm3207, %v3279, %v3351
        %v3424 = vsel %vm3208, %v3280, %v3352
        %v3425 = vsel %vm3209, %v3281, %v3353
        %v3426 = vsel %vm3210, %v3282, %v3354
        %v3427 = vsel %vm3211, %v3283, %v3355
        %v3428 = vsel %vm3212, %v3284, %v3356
        %v3429 = vsel %vm3213, %v3285, %v3357
        %v3430 = vsel %vm3214, %v3286, %v3358
        %v3431 = vsel %vm3215, %v3287, %v3359
        %v3432 = vsel %vm3216, %v3288, %v3360
        %v3433 = vsel %vm3217, %v3289, %v3361
        %v3434 = vsel %vm3218, %v3290, %v3362
        %v3435 = vsel %vm3219, %v3291, %v3363
        %v3436 = vsel %vm3220, %v3292, %v3364
        %v3437 = vsel %vm3221, %v3293, %v3365
        %v3438 = vsel %vm3222, %v3294, %v3366
        %v3439 = vsel %vm3223, %v3295, %v3367
        %v3440 = vsel %vm3224, %v3296, %v3368
        %v3441 = vsel %vm3225, %v3297, %v3369
        %v3442 = vsel %vm3226, %v3298, %v3370
        %v3443 = vsel %vm3227, %v3299, %v3371
        %v3444 = vsel %vm3228, %v3300, %v3372
        %v3445 = vsel %vm3229, %v3301, %v3373
        %v3446 = vsel %vm3230, %v3302, %v3374
        %v3447 = vsel %vm3231, %v3303, %v3375
        %v3448 = vsel %vm3232, %v3304, %v3376
        %v3449 = vsel %vm3233, %v3305, %v3377
        %v3450 = vsel %vm3234, %v3306, %v3378
        %v3451 = vsel %vm3235, %v3307, %v3379
        %v3452 = vsel %vm3236, %v3308, %v3380
        %v3453 = vsel %vm3237, %v3309, %v3381
        %v3454 = vsel %vm3238, %v3310, %v3382
        %v3455 = vsel %vm3239, %v3311, %v3383
        %v3456 = vsel %vm3240, %v3312, %v3384
        %v3457 = vsel %vm3241, %v3313, %v3385
        %v3458 = vsel %vm3242, %v3314, %v3386
        %v3459 = vsel %vm3243, %v3315, %v3387
        %v3460 = vsel %vm3244, %v3316, %v3388
        %v3461 = vsel %vm3245, %v3317, %v3389
        %v3462 = vsel %vm3246, %v3318, %v3390
        %v3463 = vsel %vm3247, %v3319, %v3391
        %v3464 = vsel %vm3248, %v3320, %v3392
        %v3465 = vsel %vm3249, %v3321, %v3393
        %v3466 = vsel %vm3250, %v3322, %v3394
        %v3467 = vmul.f32 %v1780, 0.5
        %v3468 = vmul.f32 %v1782, 0.5
        %v3469 = vmul.f32 %v1933, 0.5
        %v3470 = vmul.f32 %v1784, 0.5
        %v3471 = vmul.f32 %v1786, 0.5
        %v3472 = vmul.f32 %v1936, 0.5
        %v3473 = vmul.f32 %v1790, 0.5
        %v3474 = vmul.f32 %v1792, 0.5
        %v3475 = vmul.f32 %v1941, 0.5
        %v3476 = vmul.f32 %v1794, 0.5
        %v3477 = vmul.f32 %v1796, 0.5
        %v3478 = vmul.f32 %v1944, 0.5
        %v3479 = vmul.f32 %v1800, 0.5
        %v3480 = vmul.f32 %v1802, 0.5
        %v3481 = vmul.f32 %v1949, 0.5
        %v3482 = vmul.f32 %v1804, 0.5
        %v3483 = vmul.f32 %v1806, 0.5
        %v3484 = vmul.f32 %v1952, 0.5
        %v3485 = vmul.f32 %v1810, 0.5
        %v3486 = vmul.f32 %v1812, 0.5
        %v3487 = vmul.f32 %v1957, 0.5
        %v3488 = vmul.f32 %v1814, 0.5
        %v3489 = vmul.f32 %v1816, 0.5
        %v3490 = vmul.f32 %v1960, 0.5
        %v3491 = vmul.f32 %v1820, 0.5
        %v3492 = vmul.f32 %v1822, 0.5
        %v3493 = vmul.f32 %v1965, 0.5
        %v3494 = vmul.f32 %v1824, 0.5
        %v3495 = vmul.f32 %v1826, 0.5
        %v3496 = vmul.f32 %v1968, 0.5
        %v3497 = vmul.f32 %v1830, 0.5
        %v3498 = vmul.f32 %v1832, 0.5
        %v3499 = vmul.f32 %v1973, 0.5
        %v3500 = vmul.f32 %v1834, 0.5
        %v3501 = vmul.f32 %v1836, 0.5
        %v3502 = vmul.f32 %v1976, 0.5
        %v3503 = vmul.f32 %v1840, 0.5
        %v3504 = vmul.f32 %v1842, 0.5
        %v3505 = vmul.f32 %v1981, 0.5
        %v3506 = vmul.f32 %v1844, 0.5
        %v3507 = vmul.f32 %v1846, 0.5
        %v3508 = vmul.f32 %v1984, 0.5
        %v3509 = vmul.f32 %v1850, 0.5
        %v3510 = vmul.f32 %v1852, 0.5
        %v3511 = vmul.f32 %v1989, 0.5
        %v3512 = vmul.f32 %v1854, 0.5
        %v3513 = vmul.f32 %v1856, 0.5
        %v3514 = vmul.f32 %v1992, 0.5
        %v3515 = vmul.f32 %v1860, 0.5
        %v3516 = vmul.f32 %v1862, 0.5
        %v3517 = vmul.f32 %v1997, 0.5
        %v3518 = vmul.f32 %v1864, 0.5
        %v3519 = vmul.f32 %v1866, 0.5
        %v3520 = vmul.f32 %v2000, 0.5
        %v3521 = vmul.f32 %v1870, 0.5
        %v3522 = vmul.f32 %v1872, 0.5
        %v3523 = vmul.f32 %v2005, 0.5
        %v3524 = vmul.f32 %v1874, 0.5
        %v3525 = vmul.f32 %v1876, 0.5
        %v3526 = vmul.f32 %v2008, 0.5
        %v3527 = vmul.f32 %v1880, 0.5
        %v3528 = vmul.f32 %v1882, 0.5
        %v3529 = vmul.f32 %v2013, 0.5
        %v3530 = vmul.f32 %v1884, 0.5
        %v3531 = vmul.f32 %v1886, 0.5
        %v3532 = vmul.f32 %v2016, 0.5
        %v3533 = vmul.f32 %v1890, 0.5
        %v3534 = vmul.f32 %v1892, 0.5
        %v3535 = vmul.f32 %v2021, 0.5
        %v3536 = vmul.f32 %v1894, 0.5
        %v3537 = vmul.f32 %v1896, 0.5
        %v3538 = vmul.f32 %v2024, 0.5
        %v3539 = vadd.f32 %v3395, 1.0
        %v3540 = vadd.f32 %v3396, 1.0
        %v3541 = vadd.f32 %v3397, 1.0
        %v3542 = vadd.f32 %v3398, 1.0
        %v3543 = vadd.f32 %v3399, 1.0
        %v3544 = vadd.f32 %v3400, 1.0
        %v3545 = vadd.f32 %v3401, 1.0
        %v3546 = vadd.f32 %v3402, 1.0
        %v3547 = vadd.f32 %v3403, 1.0
        %v3548 = vadd.f32 %v3404, 1.0
        %v3549 = vadd.f32 %v3405, 1.0
        %v3550 = vadd.f32 %v3406, 1.0
        %v3551 = vadd.f32 %v3407, 1.0
        %v3552 = vadd.f32 %v3408, 1.0
        %v3553 = vadd.f32 %v3409, 1.0
        %v3554 = vadd.f32 %v3410, 1.0
        %v3555 = vadd.f32 %v3411, 1.0
        %v3556 = vadd.f32 %v3412, 1.0
        %v3557 = vadd.f32 %v3413, 1.0
        %v3558 = vadd.f32 %v3414, 1.0
        %v3559 = vadd.f32 %v3415, 1.0
        %v3560 = vadd.f32 %v3416, 1.0
        %v3561 = vadd.f32 %v3417, 1.0
        %v3562 = vadd.f32 %v3418, 1.0
        %v3563 = vadd.f32 %v3419, 1.0
        %v3564 = vadd.f32 %v3420, 1.0
        %v3565 = vadd.f32 %v3421, 1.0
        %v3566 = vadd.f32 %v3422, 1.0
        %v3567 = vadd.f32 %v3423, 1.0
        %v3568 = vadd.f32 %v3424, 1.0
        %v3569 = vadd.f32 %v3425, 1.0
        %v3570 = vadd.f32 %v3426, 1.0
        %v3571 = vadd.f32 %v3427, 1.0
        %v3572 = vadd.f32 %v3428, 1.0
        %v3573 = vadd.f32 %v3429, 1.0
        %v3574 = vadd.f32 %v3430, 1.0
        %v3575 = vadd.f32 %v3431, 1.0
        %v3576 = vadd.f32 %v3432, 1.0
        %v3577 = vadd.f32 %v3433, 1.0
        %v3578 = vadd.f32 %v3434, 1.0
        %v3579 = vadd.f32 %v3435, 1.0
        %v3580 = vadd.f32 %v3436, 1.0
        %v3581 = vadd.f32 %v3437, 1.0
        %v3582 = vadd.f32 %v3438, 1.0
        %v3583 = vadd.f32 %v3439, 1.0
        %v3584 = vadd.f32 %v3440, 1.0
        %v3585 = vadd.f32 %v3441, 1.0
        %v3586 = vadd.f32 %v3442, 1.0
        %v3587 = vadd.f32 %v3443, 1.0
        %v3588 = vadd.f32 %v3444, 1.0
        %v3589 = vadd.f32 %v3445, 1.0
        %v3590 = vadd.f32 %v3446, 1.0
        %v3591 = vadd.f32 %v3447, 1.0
        %v3592 = vadd.f32 %v3448, 1.0
        %v3593 = vadd.f32 %v3449, 1.0
        %v3594 = vadd.f32 %v3450, 1.0
        %v3595 = vadd.f32 %v3451, 1.0
        %v3596 = vadd.f32 %v3452, 1.0
        %v3597 = vadd.f32 %v3453, 1.0
        %v3598 = vadd.f32 %v3454, 1.0
        %v3599 = vadd.f32 %v3455, 1.0
        %v3600 = vadd.f32 %v3456, 1.0
        %v3601 = vadd.f32 %v3457, 1.0
        %v3602 = vadd.f32 %v3458, 1.0
        %v3603 = vadd.f32 %v3459, 1.0
        %v3604 = vadd.f32 %v3460, 1.0
        %v3605 = vadd.f32 %v3461, 1.0
        %v3606 = vadd.f32 %v3462, 1.0
        %v3607 = vadd.f32 %v3463, 1.0
        %v3608 = vadd.f32 %v3464, 1.0
        %v3609 = vadd.f32 %v3465, 1.0
        %v3610 = vadd.f32 %v3466, 1.0
        %v3611 = vmul.f32 %v3467, %v3539
        %v3612 = vmul.f32 %v3468, %v3540
        %v3613 = vmul.f32 %v3469, %v3541
        %v3614 = vmul.f32 %v3470, %v3542
        %v3615 = vmul.f32 %v3471, %v3543
        %v3616 = vmul.f32 %v3472, %v3544
        %v3617 = vmul.f32 %v3473, %v3545
        %v3618 = vmul.f32 %v3474, %v3546
        %v3619 = vmul.f32 %v3475, %v3547
        %v3620 = vmul.f32 %v3476, %v3548
        %v3621 = vmul.f32 %v3477, %v3549
        %v3622 = vmul.f32 %v3478, %v3550
        %v3623 = vmul.f32 %v3479, %v3551
        %v3624 = vmul.f32 %v3480, %v3552
        %v3625 = vmul.f32 %v3481, %v3553
        %v3626 = vmul.f32 %v3482, %v3554
        %v3627 = vmul.f32 %v3483, %v3555
        %v3628 = vmul.f32 %v3484, %v3556
        %v3629 = vmul.f32 %v3485, %v3557
        %v3630 = vmul.f32 %v3486, %v3558
        %v3631 = vmul.f32 %v3487, %v3559
        %v3632 = vmul.f32 %v3488, %v3560
        %v3633 = vmul.f32 %v3489, %v3561
        %v3634 = vmul.f32 %v3490, %v3562
        %v3635 = vmul.f32 %v3491, %v3563
        %v3636 = vmul.f32 %v3492, %v3564
        %v3637 = vmul.f32 %v3493, %v3565
        %v3638 = vmul.f32 %v3494, %v3566
        %v3639 = vmul.f32 %v3495, %v3567
        %v3640 = vmul.f32 %v3496, %v3568
        %v3641 = vmul.f32 %v3497, %v3569
        %v3642 = vmul.f32 %v3498, %v3570
        %v3643 = vmul.f32 %v3499, %v3571
        %v3644 = vmul.f32 %v3500, %v3572
        %v3645 = vmul.f32 %v3501, %v3573
        %v3646 = vmul.f32 %v3502, %v3574
        %v3647 = vmul.f32 %v3503, %v3575
        %v3648 = vmul.f32 %v3504, %v3576
        %v3649 = vmul.f32 %v3505, %v3577
        %v3650 = vmul.f32 %v3506, %v3578
        %v3651 = vmul.f32 %v3507, %v3579
        %v3652 = vmul.f32 %v3508, %v3580
        %v3653 = vmul.f32 %v3509, %v3581
        %v3654 = vmul.f32 %v3510, %v3582
        %v3655 = vmul.f32 %v3511, %v3583
        %v3656 = vmul.f32 %v3512, %v3584
        %v3657 = vmul.f32 %v3513, %v3585
        %v3658 = vmul.f32 %v3514, %v3586
        %v3659 = vmul.f32 %v3515, %v3587
        %v3660 = vmul.f32 %v3516, %v3588
        %v3661 = vmul.f32 %v3517, %v3589
        %v3662 = vmul.f32 %v3518, %v3590
        %v3663 = vmul.f32 %v3519, %v3591
        %v3664 = vmul.f32 %v3520, %v3592
        %v3665 = vmul.f32 %v3521, %v3593
        %v3666 = vmul.f32 %v3522, %v3594
        %v3667 = vmul.f32 %v3523, %v3595
        %v3668 = vmul.f32 %v3524, %v3596
        %v3669 = vmul.f32 %v3525, %v3597
        %v3670 = vmul.f32 %v3526, %v3598
        %v3671 = vmul.f32 %v3527, %v3599
        %v3672 = vmul.f32 %v3528, %v3600
        %v3673 = vmul.f32 %v3529, %v3601
        %v3674 = vmul.f32 %v3530, %v3602
        %v3675 = vmul.f32 %v3531, %v3603
        %v3676 = vmul.f32 %v3532, %v3604
        %v3677 = vmul.f32 %v3533, %v3605
        %v3678 = vmul.f32 %v3534, %v3606
        %v3679 = vmul.f32 %v3535, %v3607
        %v3680 = vmul.f32 %v3536, %v3608
        %v3681 = vmul.f32 %v3537, %v3609
        %v3682 = vmul.f32 %v3538, %v3610
        %v3683 = vpack.c.bf16 %v3614, %v3611
        %v3684 = vpack.c.bf16 %v3615, %v3612
        %v3685 = vpack.c.bf16 %v3616, %v3613
        %v3686 = vpack.c.bf16 %v3620, %v3617
        %v3687 = vpack.c.bf16 %v3621, %v3618
        %v3688 = vpack.c.bf16 %v3622, %v3619
        %v3689 = vpack.c.bf16 %v3626, %v3623
        %v3690 = vpack.c.bf16 %v3627, %v3624
        %v3691 = vpack.c.bf16 %v3628, %v3625
        %v3692 = vpack.c.bf16 %v3632, %v3629
        %v3693 = vpack.c.bf16 %v3633, %v3630
        %v3694 = vpack.c.bf16 %v3634, %v3631
        %v3695 = vpack.c.bf16 %v3638, %v3635
        %v3696 = vpack.c.bf16 %v3639, %v3636
        %v3697 = vpack.c.bf16 %v3640, %v3637
        %v3698 = vpack.c.bf16 %v3644, %v3641
        %v3699 = vpack.c.bf16 %v3645, %v3642
        %v3700 = vpack.c.bf16 %v3646, %v3643
        %v3701 = vpack.c.bf16 %v3650, %v3647
        %v3702 = vpack.c.bf16 %v3651, %v3648
        %v3703 = vpack.c.bf16 %v3652, %v3649
        %v3704 = vpack.c.bf16 %v3656, %v3653
        %v3705 = vpack.c.bf16 %v3657, %v3654
        %v3706 = vpack.c.bf16 %v3658, %v3655
        %v3707 = vpack.c.bf16 %v3662, %v3659
        %v3708 = vpack.c.bf16 %v3663, %v3660
        %v3709 = vpack.c.bf16 %v3664, %v3661
        %v3710 = vpack.c.bf16 %v3668, %v3665
        %v3711 = vpack.c.bf16 %v3669, %v3666
        %v3712 = vpack.c.bf16 %v3670, %v3667
        %v3713 = vpack.c.bf16 %v3674, %v3671
        %v3714 = vpack.c.bf16 %v3675, %v3672
        %v3715 = vpack.c.bf16 %v3676, %v3673
        %v3716 = vpack.c.bf16 %v3680, %v3677
        %v3717 = vpack.c.bf16 %v3681, %v3678
        %v3718 = vpack.c.bf16 %v3682, %v3679
        %v3719 = vld [vmem:[%s5] sm:$0xff]
        %v3720 = vld [vmem:[%s5 + $0x8] sm:$0xff]
        %v3721 = vld [vmem:[%s5 + $0x10] sm:$0xff]
        %v3722 = vld [vmem:[%s5 + $0x18] sm:$0xff]
        %v3723 = vld [vmem:[%s5 + $0x20] sm:$0xff]
        %v3724 = vld [vmem:[%s5 + $0x28] sm:$0xff]
        %v3725 = vld [vmem:[%s5 + $0x30] sm:$0xff]
        %v3726 = vld [vmem:[%s5 + $0x38] sm:$0xff]
        %v3727 = vld [vmem:[%s5 + $0x40] sm:$0xff]
        %v3728 = vld [vmem:[%s5 + $0x48] sm:$0xff]
        %v3729 = vld [vmem:[%s5 + $0x50] sm:$0xff]
        %v3730 = vld [vmem:[%s5 + $0x58] sm:$0xff]
        %v3731 = vld [vmem:[%s5 + $0x60] sm:$0xff]
        %v3732 = vld [vmem:[%s5 + $0x68] sm:$0xff]
        %v3733 = vld [vmem:[%s5 + $0x70] sm:$0xff]
        %v3734 = vld [vmem:[%s5 + $0x78] sm:$0xff]
        %v3735 = vld [vmem:[%s5 + $0x80] sm:$0xff]
        %v3736 = vld [vmem:[%s5 + $0x88] sm:$0xff]
        %v3737 = vld [vmem:[%s5 + $0x90] sm:$0xff]
        %v3738 = vld [vmem:[%s5 + $0x98] sm:$0xff]
        %v3739 = vld [vmem:[%s5 + $0xa0] sm:$0xff]
        %v3740 = vld [vmem:[%s5 + $0xa8] sm:$0xff]
        %v3741 = vld [vmem:[%s5 + $0xb0] sm:$0xff]
        %v3742 = vld [vmem:[%s5 + $0xb8] sm:$0xff]
        %v3743 = vld [vmem:[%s5 + $0xc0] sm:$0xff]
        %v3744 = vld [vmem:[%s5 + $0xc8] sm:$0xff]
        %v3745 = vld [vmem:[%s5 + $0xd0] sm:$0xff]
        %v3746 = vld [vmem:[%s5 + $0xd8] sm:$0xff]
        %v3747 = vld [vmem:[%s5 + $0xe0] sm:$0xff]
        %v3748 = vld [vmem:[%s5 + $0xe8] sm:$0xff]
        %v3749 = vld [vmem:[%s5 + $0xf0] sm:$0xff]
        %v3750 = vld [vmem:[%s5 + $0xf8] sm:$0xff]
        %v3751 = vld [vmem:[%s5 + $0x100] sm:$0xff]
        %v3752 = vld [vmem:[%s5 + $0x108] sm:$0xff]
        %v3753 = vld [vmem:[%s5 + $0x110] sm:$0xff]
        %v3754 = vld [vmem:[%s5 + $0x118] sm:$0xff]
        %v3755 = vld [vmem:[%s5 + $0x120] sm:$0xff]
        %v3756 = vld [vmem:[%s5 + $0x128] sm:$0xff]
        %v3757 = vld [vmem:[%s5 + $0x130] sm:$0xff]
        %v3758 = vld [vmem:[%s5 + $0x138] sm:$0xff]
        %v3759 = vld [vmem:[%s5 + $0x140] sm:$0xff]
        %v3760 = vld [vmem:[%s5 + $0x148] sm:$0xff]
        %v3761 = vld [vmem:[%s5 + $0x150] sm:$0xff]
        %v3762 = vld [vmem:[%s5 + $0x158] sm:$0xff]
        %v3763 = vld [vmem:[%s5 + $0x160] sm:$0xff]
        %v3764 = vld [vmem:[%s5 + $0x168] sm:$0xff]
        %v3765 = vld [vmem:[%s5 + $0x170] sm:$0xff]
        %v3766 = vld [vmem:[%s5 + $0x178] sm:$0xff]
        %v3767 = vld [vmem:[%s6] sm:$0xff]
        %v3768 = vld [vmem:[%s6 + $0x8] sm:$0xff]
        %v3769 = vld [vmem:[%s6 + $0x10] sm:$0xff]
        %v3770 = vld [vmem:[%s6 + $0x18] sm:$0xff]
        %v3771 = vld [vmem:[%s6 + $0x20] sm:$0xff]
        %v3772 = vld [vmem:[%s6 + $0x28] sm:$0xff]
        %v3773 = vld [vmem:[%s6 + $0x30] sm:$0xff]
        %v3774 = vld [vmem:[%s6 + $0x38] sm:$0xff]
        %v3775 = vld [vmem:[%s6 + $0x40] sm:$0xff]
        %v3776 = vld [vmem:[%s6 + $0x48] sm:$0xff]
        %v3777 = vld [vmem:[%s6 + $0x50] sm:$0xff]
        %v3778 = vld [vmem:[%s6 + $0x58] sm:$0xff]
        %v3779 = vld [vmem:[%s6 + $0x60] sm:$0xff]
        %v3780 = vld [vmem:[%s6 + $0x68] sm:$0xff]
        %v3781 = vld [vmem:[%s6 + $0x70] sm:$0xff]
        %v3782 = vld [vmem:[%s6 + $0x78] sm:$0xff]
        %v3783 = vld [vmem:[%s6 + $0x80] sm:$0xff]
        %v3784 = vld [vmem:[%s6 + $0x88] sm:$0xff]
        %v3785 = vld [vmem:[%s6 + $0x90] sm:$0xff]
        %v3786 = vld [vmem:[%s6 + $0x98] sm:$0xff]
        %v3787 = vld [vmem:[%s6 + $0xa0] sm:$0xff]
        %v3788 = vld [vmem:[%s6 + $0xa8] sm:$0xff]
        %v3789 = vld [vmem:[%s6 + $0xb0] sm:$0xff]
        %v3790 = vld [vmem:[%s6 + $0xb8] sm:$0xff]
        %v3791 = vld [vmem:[%s6 + $0xc0] sm:$0xff]
        %v3792 = vld [vmem:[%s6 + $0xc8] sm:$0xff]
        %v3793 = vld [vmem:[%s6 + $0xd0] sm:$0xff]
        %v3794 = vld [vmem:[%s6 + $0xd8] sm:$0xff]
        %v3795 = vld [vmem:[%s6 + $0xe0] sm:$0xff]
        %v3796 = vld [vmem:[%s6 + $0xe8] sm:$0xff]
        %v3797 = vld [vmem:[%s6 + $0xf0] sm:$0xff]
        %v3798 = vld [vmem:[%s6 + $0xf8] sm:$0xff]
        %v3799 = vld [vmem:[%s6 + $0x100] sm:$0xff]
        %v3800 = vld [vmem:[%s6 + $0x108] sm:$0xff]
        %v3801 = vld [vmem:[%s6 + $0x110] sm:$0xff]
        %v3802 = vld [vmem:[%s6 + $0x118] sm:$0xff]
        %v3803 = vld [vmem:[%s6 + $0x120] sm:$0xff]
        %v3804 = vld [vmem:[%s6 + $0x128] sm:$0xff]
        %v3805 = vld [vmem:[%s6 + $0x130] sm:$0xff]
        %v3806 = vld [vmem:[%s6 + $0x138] sm:$0xff]
        %v3807 = vld [vmem:[%s6 + $0x140] sm:$0xff]
        %v3808 = vld [vmem:[%s6 + $0x148] sm:$0xff]
        %v3809 = vld [vmem:[%s6 + $0x150] sm:$0xff]
        %v3810 = vld [vmem:[%s6 + $0x158] sm:$0xff]
        %v3811 = vld [vmem:[%s6 + $0x160] sm:$0xff]
        %v3812 = vld [vmem:[%s6 + $0x168] sm:$0xff]
        %v3813 = vld [vmem:[%s6 + $0x170] sm:$0xff]
        %v3814 = vld [vmem:[%s6 + $0x178] sm:$0xff]
        %3816 = vset.pattern.permute.xlu0 0
        %3817 = vperm.xlu0 %3816, %v3767
        %v3818 = vpop.permute.xlu0 %3817
        %3821 = vset.pattern.permute.xlu0 0
        %3822 = vperm.xlu0 %3821, %v3768
        %v3823 = vpop.permute.xlu0 %3822
        %3826 = vset.pattern.permute.xlu0 0
        %3827 = vperm.xlu0 %3826, %v3769
        %v3828 = vpop.permute.xlu0 %3827
        %3831 = vset.pattern.permute.xlu0 0
        %3832 = vperm.xlu0 %3831, %v3770
        %v3833 = vpop.permute.xlu0 %3832
        %3836 = vset.pattern.permute.xlu0 0
        %3837 = vperm.xlu0 %3836, %v3771
        %v3838 = vpop.permute.xlu0 %3837
        %3841 = vset.pattern.permute.xlu0 0
        %3842 = vperm.xlu0 %3841, %v3772
        %v3843 = vpop.permute.xlu0 %3842
        %3846 = vset.pattern.permute.xlu0 0
        %3847 = vperm.xlu0 %3846, %v3773
        %v3848 = vpop.permute.xlu0 %3847
        %3851 = vset.pattern.permute.xlu0 0
        %3852 = vperm.xlu0 %3851, %v3774
        %v3853 = vpop.permute.xlu0 %3852
        %3856 = vset.pattern.permute.xlu0 0
        %3857 = vperm.xlu0 %3856, %v3775
        %v3858 = vpop.permute.xlu0 %3857
        %3861 = vset.pattern.permute.xlu0 0
        %3862 = vperm.xlu0 %3861, %v3776
        %v3863 = vpop.permute.xlu0 %3862
        %3866 = vset.pattern.permute.xlu0 0
        %3867 = vperm.xlu0 %3866, %v3777
        %v3868 = vpop.permute.xlu0 %3867
        %3871 = vset.pattern.permute.xlu0 0
        %3872 = vperm.xlu0 %3871, %v3778
        %v3873 = vpop.permute.xlu0 %3872
        %3876 = vset.pattern.permute.xlu0 0
        %3877 = vperm.xlu0 %3876, %v3779
        %v3878 = vpop.permute.xlu0 %3877
        %3881 = vset.pattern.permute.xlu0 0
        %3882 = vperm.xlu0 %3881, %v3780
        %v3883 = vpop.permute.xlu0 %3882
        %3886 = vset.pattern.permute.xlu0 0
        %3887 = vperm.xlu0 %3886, %v3781
        %v3888 = vpop.permute.xlu0 %3887
        %3891 = vset.pattern.permute.xlu0 0
        %3892 = vperm.xlu0 %3891, %v3782
        %v3893 = vpop.permute.xlu0 %3892
        %3896 = vset.pattern.permute.xlu0 0
        %3897 = vperm.xlu0 %3896, %v3783
        %v3898 = vpop.permute.xlu0 %3897
        %3901 = vset.pattern.permute.xlu0 0
        %3902 = vperm.xlu0 %3901, %v3784
        %v3903 = vpop.permute.xlu0 %3902
        %3906 = vset.pattern.permute.xlu0 0
        %3907 = vperm.xlu0 %3906, %v3785
        %v3908 = vpop.permute.xlu0 %3907
        %3911 = vset.pattern.permute.xlu0 0
        %3912 = vperm.xlu0 %3911, %v3786
        %v3913 = vpop.permute.xlu0 %3912
        %3916 = vset.pattern.permute.xlu0 0
        %3917 = vperm.xlu0 %3916, %v3787
        %v3918 = vpop.permute.xlu0 %3917
        %3921 = vset.pattern.permute.xlu0 0
        %3922 = vperm.xlu0 %3921, %v3788
        %v3923 = vpop.permute.xlu0 %3922
        %3926 = vset.pattern.permute.xlu0 0
        %3927 = vperm.xlu0 %3926, %v3789
        %v3928 = vpop.permute.xlu0 %3927
        %3931 = vset.pattern.permute.xlu0 0
        %3932 = vperm.xlu0 %3931, %v3790
        %v3933 = vpop.permute.xlu0 %3932
        %3936 = vset.pattern.permute.xlu0 0
        %3937 = vperm.xlu0 %3936, %v3791
        %v3938 = vpop.permute.xlu0 %3937
        %3941 = vset.pattern.permute.xlu0 0
        %3942 = vperm.xlu0 %3941, %v3792
        %v3943 = vpop.permute.xlu0 %3942
        %3946 = vset.pattern.permute.xlu0 0
        %3947 = vperm.xlu0 %3946, %v3793
        %v3948 = vpop.permute.xlu0 %3947
        %3951 = vset.pattern.permute.xlu0 0
        %3952 = vperm.xlu0 %3951, %v3794
        %v3953 = vpop.permute.xlu0 %3952
        %3956 = vset.pattern.permute.xlu0 0
        %3957 = vperm.xlu0 %3956, %v3795
        %v3958 = vpop.permute.xlu0 %3957
        %3961 = vset.pattern.permute.xlu0 0
        %3962 = vperm.xlu0 %3961, %v3796
        %v3963 = vpop.permute.xlu0 %3962
        %3966 = vset.pattern.permute.xlu0 0
        %3967 = vperm.xlu0 %3966, %v3797
        %v3968 = vpop.permute.xlu0 %3967
        %3971 = vset.pattern.permute.xlu0 0
        %3972 = vperm.xlu0 %3971, %v3798
        %v3973 = vpop.permute.xlu0 %3972
        %3976 = vset.pattern.permute.xlu0 0
        %3977 = vperm.xlu0 %3976, %v3799
        %v3978 = vpop.permute.xlu0 %3977
        %3981 = vset.pattern.permute.xlu0 0
        %3982 = vperm.xlu0 %3981, %v3800
        %v3983 = vpop.permute.xlu0 %3982
        %3986 = vset.pattern.permute.xlu0 0
        %3987 = vperm.xlu0 %3986, %v3801
        %v3988 = vpop.permute.xlu0 %3987
        %3991 = vset.pattern.permute.xlu0 0
        %3992 = vperm.xlu0 %3991, %v3802
        %v3993 = vpop.permute.xlu0 %3992
        %3996 = vset.pattern.permute.xlu0 0
        %3997 = vperm.xlu0 %3996, %v3803
        %v3998 = vpop.permute.xlu0 %3997
        %4001 = vset.pattern.permute.xlu0 0
        %4002 = vperm.xlu0 %4001, %v3804
        %v4003 = vpop.permute.xlu0 %4002
        %4006 = vset.pattern.permute.xlu0 0
        %4007 = vperm.xlu0 %4006, %v3805
        %v4008 = vpop.permute.xlu0 %4007
        %4011 = vset.pattern.permute.xlu0 0
        %4012 = vperm.xlu0 %4011, %v3806
        %v4013 = vpop.permute.xlu0 %4012
        %4016 = vset.pattern.permute.xlu0 0
        %4017 = vperm.xlu0 %4016, %v3807
        %v4018 = vpop.permute.xlu0 %4017
        %4021 = vset.pattern.permute.xlu0 0
        %4022 = vperm.xlu0 %4021, %v3808
        %v4023 = vpop.permute.xlu0 %4022
        %4026 = vset.pattern.permute.xlu0 0
        %4027 = vperm.xlu0 %4026, %v3809
        %v4028 = vpop.permute.xlu0 %4027
        %4031 = vset.pattern.permute.xlu0 0
        %4032 = vperm.xlu0 %4031, %v3810
        %v4033 = vpop.permute.xlu0 %4032
        %4036 = vset.pattern.permute.xlu0 0
        %4037 = vperm.xlu0 %4036, %v3811
        %v4038 = vpop.permute.xlu0 %4037
        %4041 = vset.pattern.permute.xlu0 0
        %4042 = vperm.xlu0 %4041, %v3812
        %v4043 = vpop.permute.xlu0 %4042
        %4046 = vset.pattern.permute.xlu0 0
        %4047 = vperm.xlu0 %4046, %v3813
        %v4048 = vpop.permute.xlu0 %4047
        %4051 = vset.pattern.permute.xlu0 0
        %4052 = vperm.xlu0 %4051, %v3814
        %v4053 = vpop.permute.xlu0 %4052
        %v4103 = vunpack.c.l.b16 %v3719
        %v4104 = vunpack.c.h.b16 %v3719
        %v4105 = vunpack.c.l.b16 %v3720
        %v4106 = vunpack.c.h.b16 %v3720
        %v4107 = vunpack.c.l.b16 %v3721
        %v4108 = vunpack.c.h.b16 %v3721
        %v4109 = vunpack.c.l.b16 %v3722
        %v4110 = vunpack.c.h.b16 %v3722
        %v4111 = vunpack.c.l.b16 %v3723
        %v4112 = vunpack.c.h.b16 %v3723
        %v4113 = vunpack.c.l.b16 %v3724
        %v4114 = vunpack.c.h.b16 %v3724
        %v4115 = vunpack.c.l.b16 %v3725
        %v4116 = vunpack.c.h.b16 %v3725
        %v4117 = vunpack.c.l.b16 %v3726
        %v4118 = vunpack.c.h.b16 %v3726
        %v4119 = vunpack.c.l.b16 %v3727
        %v4120 = vunpack.c.h.b16 %v3727
        %v4121 = vunpack.c.l.b16 %v3728
        %v4122 = vunpack.c.h.b16 %v3728
        %v4123 = vunpack.c.l.b16 %v3729
        %v4124 = vunpack.c.h.b16 %v3729
        %v4125 = vunpack.c.l.b16 %v3730
        %v4126 = vunpack.c.h.b16 %v3730
        %v4127 = vunpack.c.l.b16 %v3731
        %v4128 = vunpack.c.h.b16 %v3731
        %v4129 = vunpack.c.l.b16 %v3732
        %v4130 = vunpack.c.h.b16 %v3732
        %v4131 = vunpack.c.l.b16 %v3733
        %v4132 = vunpack.c.h.b16 %v3733
        %v4133 = vunpack.c.l.b16 %v3734
        %v4134 = vunpack.c.h.b16 %v3734
        %v4135 = vunpack.c.l.b16 %v3735
        %v4136 = vunpack.c.h.b16 %v3735
        %v4137 = vunpack.c.l.b16 %v3736
        %v4138 = vunpack.c.h.b16 %v3736
        %v4139 = vunpack.c.l.b16 %v3737
        %v4140 = vunpack.c.h.b16 %v3737
        %v4141 = vunpack.c.l.b16 %v3738
        %v4142 = vunpack.c.h.b16 %v3738
        %v4143 = vunpack.c.l.b16 %v3739
        %v4144 = vunpack.c.h.b16 %v3739
        %v4145 = vunpack.c.l.b16 %v3740
        %v4146 = vunpack.c.h.b16 %v3740
        %v4147 = vunpack.c.l.b16 %v3741
        %v4148 = vunpack.c.h.b16 %v3741
        %v4149 = vunpack.c.l.b16 %v3742
        %v4150 = vunpack.c.h.b16 %v3742
        %v4151 = vunpack.c.l.b16 %v3743
        %v4152 = vunpack.c.h.b16 %v3743
        %v4153 = vunpack.c.l.b16 %v3744
        %v4154 = vunpack.c.h.b16 %v3744
        %v4155 = vunpack.c.l.b16 %v3745
        %v4156 = vunpack.c.h.b16 %v3745
        %v4157 = vunpack.c.l.b16 %v3746
        %v4158 = vunpack.c.h.b16 %v3746
        %v4159 = vunpack.c.l.b16 %v3747
        %v4160 = vunpack.c.h.b16 %v3747
        %v4161 = vunpack.c.l.b16 %v3748
        %v4162 = vunpack.c.h.b16 %v3748
        %v4163 = vunpack.c.l.b16 %v3749
        %v4164 = vunpack.c.h.b16 %v3749
        %v4165 = vunpack.c.l.b16 %v3750
        %v4166 = vunpack.c.h.b16 %v3750
        %v4167 = vunpack.c.l.b16 %v3751
        %v4168 = vunpack.c.h.b16 %v3751
        %v4169 = vunpack.c.l.b16 %v3752
        %v4170 = vunpack.c.h.b16 %v3752
        %v4171 = vunpack.c.l.b16 %v3753
        %v4172 = vunpack.c.h.b16 %v3753
        %v4173 = vunpack.c.l.b16 %v3754
        %v4174 = vunpack.c.h.b16 %v3754
        %v4175 = vunpack.c.l.b16 %v3755
        %v4176 = vunpack.c.h.b16 %v3755
        %v4177 = vunpack.c.l.b16 %v3756
        %v4178 = vunpack.c.h.b16 %v3756
        %v4179 = vunpack.c.l.b16 %v3757
        %v4180 = vunpack.c.h.b16 %v3757
        %v4181 = vunpack.c.l.b16 %v3758
        %v4182 = vunpack.c.h.b16 %v3758
        %v4183 = vunpack.c.l.b16 %v3759
        %v4184 = vunpack.c.h.b16 %v3759
        %v4185 = vunpack.c.l.b16 %v3760
        %v4186 = vunpack.c.h.b16 %v3760
        %v4187 = vunpack.c.l.b16 %v3761
        %v4188 = vunpack.c.h.b16 %v3761
        %v4189 = vunpack.c.l.b16 %v3762
        %v4190 = vunpack.c.h.b16 %v3762
        %v4191 = vunpack.c.l.b16 %v3763
        %v4192 = vunpack.c.h.b16 %v3763
        %v4193 = vunpack.c.l.b16 %v3764
        %v4194 = vunpack.c.h.b16 %v3764
        %v4195 = vunpack.c.l.b16 %v3765
        %v4196 = vunpack.c.h.b16 %v3765
        %v4197 = vunpack.c.l.b16 %v3766
        %v4198 = vunpack.c.h.b16 %v3766
        %v4199 = vpack.c.b16 %v4105, %v4103
        %v4200 = vpack.c.b16 %v4106, %v4104
        %v4201 = vpack.c.b16 %v4109, %v4107
        %v4202 = vpack.c.b16 %v4110, %v4108
        %v4203 = vpack.c.b16 %v4113, %v4111
        %v4204 = vpack.c.b16 %v4114, %v4112
        %v4205 = vpack.c.b16 %v4117, %v4115
        %v4206 = vpack.c.b16 %v4118, %v4116
        %v4207 = vpack.c.b16 %v4121, %v4119
        %v4208 = vpack.c.b16 %v4122, %v4120
        %v4209 = vpack.c.b16 %v4125, %v4123
        %v4210 = vpack.c.b16 %v4126, %v4124
        %v4211 = vpack.c.b16 %v4129, %v4127
        %v4212 = vpack.c.b16 %v4130, %v4128
        %v4213 = vpack.c.b16 %v4133, %v4131
        %v4214 = vpack.c.b16 %v4134, %v4132
        %v4215 = vpack.c.b16 %v4137, %v4135
        %v4216 = vpack.c.b16 %v4138, %v4136
        %v4217 = vpack.c.b16 %v4141, %v4139
        %v4218 = vpack.c.b16 %v4142, %v4140
        %v4219 = vpack.c.b16 %v4145, %v4143
        %v4220 = vpack.c.b16 %v4146, %v4144
        %v4221 = vpack.c.b16 %v4149, %v4147
        %v4222 = vpack.c.b16 %v4150, %v4148
        %v4223 = vpack.c.b16 %v4153, %v4151
        %v4224 = vpack.c.b16 %v4154, %v4152
        %v4225 = vpack.c.b16 %v4157, %v4155
        %v4226 = vpack.c.b16 %v4158, %v4156
        %v4227 = vpack.c.b16 %v4161, %v4159
        %v4228 = vpack.c.b16 %v4162, %v4160
        %v4229 = vpack.c.b16 %v4165, %v4163
        %v4230 = vpack.c.b16 %v4166, %v4164
        %v4231 = vpack.c.b16 %v4169, %v4167
        %v4232 = vpack.c.b16 %v4170, %v4168
        %v4233 = vpack.c.b16 %v4173, %v4171
        %v4234 = vpack.c.b16 %v4174, %v4172
        %v4235 = vpack.c.b16 %v4177, %v4175
        %v4236 = vpack.c.b16 %v4178, %v4176
        %v4237 = vpack.c.b16 %v4181, %v4179
        %v4238 = vpack.c.b16 %v4182, %v4180
        %v4239 = vpack.c.b16 %v4185, %v4183
        %v4240 = vpack.c.b16 %v4186, %v4184
        %v4241 = vpack.c.b16 %v4189, %v4187
        %v4242 = vpack.c.b16 %v4190, %v4188
        %v4243 = vpack.c.b16 %v4193, %v4191
        %v4244 = vpack.c.b16 %v4194, %v4192
        %v4245 = vpack.c.b16 %v4197, %v4195
        %v4246 = vpack.c.b16 %v4198, %v4196
        %vm4271 = vcmask 523264
        %v4273 = vsel %vm4271, %v4200, 0
        %v4276 = vsel %vm4271, %v4202, 0
        %v4279 = vsel %vm4271, %v4204, 0
        %v4282 = vsel %vm4271, %v4206, 0
        %v4285 = vsel %vm4271, %v4208, 0
        %v4288 = vsel %vm4271, %v4210, 0
        %v4291 = vsel %vm4271, %v4212, 0
        %v4294 = vsel %vm4271, %v4214, 0
        %v4297 = vsel %vm4271, %v4216, 0
        %v4300 = vsel %vm4271, %v4218, 0
        %v4303 = vsel %vm4271, %v4220, 0
        %v4306 = vsel %vm4271, %v4222, 0
        %v4309 = vsel %vm4271, %v4224, 0
        %v4312 = vsel %vm4271, %v4226, 0
        %v4315 = vsel %vm4271, %v4228, 0
        %v4318 = vsel %vm4271, %v4230, 0
        %v4321 = vsel %vm4271, %v4232, 0
        %v4324 = vsel %vm4271, %v4234, 0
        %v4327 = vsel %vm4271, %v4236, 0
        %v4330 = vsel %vm4271, %v4238, 0
        %v4333 = vsel %vm4271, %v4240, 0
        %v4336 = vsel %vm4271, %v4242, 0
        %v4339 = vsel %vm4271, %v4244, 0
        %v4342 = vsel %vm4271, %v4246, 0
        %4344 = vmatprep.subr.bf16.mxu0 %v3684
        %4345 = vmatpush1.bf16.msra.mxu0 %v3683
        %4346 = vmatprep.subr.bf16.mxu0 %v3687
        %4347 = vmatpush1.bf16.msra.mxu0 %v3686
        %4348 = vmatprep.subr.bf16.mxu0 %v3690
        %4349 = vmatpush1.bf16.msra.mxu0 %v3689
        %4350 = vmatprep.subr.bf16.mxu0 %v3693
        %4351 = vmatpush1.bf16.msra.mxu0 %v3692
        %4352 = vmatprep.subr.bf16.mxu0 %v3696
        %4353 = vmatpush1.bf16.msra.mxu0 %v3695
        %4354 = vmatprep.subr.bf16.mxu0 %v3699
        %4355 = vmatpush1.bf16.msra.mxu0 %v3698
        %4356 = vmatprep.subr.bf16.mxu0 %v3702
        %4357 = vmatpush1.bf16.msra.mxu0 %v3701
        %4358 = vmatprep.subr.bf16.mxu0 %v3705
        %4359 = vmatpush1.bf16.msra.mxu0 %v3704
        %4360 = vmatprep.subr.bf16.mxu0 %v3708
        %4361 = vmatpush1.bf16.msra.mxu0 %v3707
        %4362 = vmatprep.subr.bf16.mxu0 %v3711
        %4363 = vmatpush1.bf16.msra.mxu0 %v3710
        %4364 = vmatprep.subr.bf16.mxu0 %v3714
        %4365 = vmatpush1.bf16.msra.mxu0 %v3713
        %4366 = vmatprep.subr.bf16.mxu0 %v3717
        %4367 = vmatpush1.bf16.msra.mxu0 %v3716
        %4368 = vmatprep.subr.bf16.mxu0 0
        %4369 = vmatpush1.bf16.msra.mxu0 0
        %4370 = vmatprep.subr.bf16.mxu0 0
        %4371 = vmatpush1.bf16.msra.mxu0 0
        %4372 = vmatprep.subr.bf16.mxu0 0
        %4373 = vmatpush1.bf16.msra.mxu0 0
        %4374 = vmatprep.subr.bf16.mxu0 0
        %4375 = vmatpush1.bf16.msra.mxu0 0
        %4376 = vmatprep.mubr.bf16.mxu0 %v4273
        %4377 = vmatmul.mubr.bf16.gmra.mrb[0].mxu0 %v4199
        %v4378 = vpop.f32.mrb[0].mxu0
        %v4379 = vadd.f32 %v3818, %v4378
        %v4380 = vpop.f32.mrb[0].mxu0
        %v4381 = vadd.f32 %v3818, %v4380
        %v4382 = vpop.f32.mrb[0].mxu0
        %v4383 = vadd.f32 %v3823, %v4382
        %v4384 = vpop.f32.mrb[0].mxu0
        %v4385 = vadd.f32 %v3823, %v4384
        %4386 = vmatprep.mubr.bf16.mxu0 %v4276
        %4387 = vmatmul.mubr.bf16.gmra.mrb[0].mxu0 %v4201
        %v4388 = vpop.f32.mrb[0].mxu0
        %v4389 = vadd.f32 %v3828, %v4388
        %v4390 = vpop.f32.mrb[0].mxu0
        %v4391 = vadd.f32 %v3828, %v4390
        %v4392 = vpop.f32.mrb[0].mxu0
        %v4393 = vadd.f32 %v3833, %v4392
        %v4394 = vpop.f32.mrb[0].mxu0
        %v4395 = vadd.f32 %v3833, %v4394
        %4396 = vmatprep.mubr.bf16.mxu0 %v4279
        %4397 = vmatmul.mubr.bf16.gmra.mrb[0].mxu0 %v4203
        %v4398 = vpop.f32.mrb[0].mxu0
        %v4399 = vadd.f32 %v3838, %v4398
        %v4400 = vpop.f32.mrb[0].mxu0
        %v4401 = vadd.f32 %v3838, %v4400
        %v4402 = vpop.f32.mrb[0].mxu0
        %v4403 = vadd.f32 %v3843, %v4402
        %v4404 = vpop.f32.mrb[0].mxu0
        %v4405 = vadd.f32 %v3843, %v4404
        %4406 = vmatprep.mubr.bf16.mxu0 %v4282
        %4407 = vmatmul.mubr.bf16.gmra.mrb[0].mxu0 %v4205
        %v4408 = vpop.f32.mrb[0].mxu0
        %v4409 = vadd.f32 %v3848, %v4408
        %v4410 = vpop.f32.mrb[0].mxu0
        %v4411 = vadd.f32 %v3848, %v4410
        %v4412 = vpop.f32.mrb[0].mxu0
        %v4413 = vadd.f32 %v3853, %v4412
        %v4414 = vpop.f32.mrb[0].mxu0
        %v4415 = vadd.f32 %v3853, %v4414
        %4416 = vmatprep.mubr.bf16.mxu0 %v4285
        %4417 = vmatmul.mubr.bf16.gmra.mrb[0].mxu0 %v4207
        %v4418 = vpop.f32.mrb[0].mxu0
        %v4419 = vadd.f32 %v3858, %v4418
        %v4420 = vpop.f32.mrb[0].mxu0
        %v4421 = vadd.f32 %v3858, %v4420
        %v4422 = vpop.f32.mrb[0].mxu0
        %v4423 = vadd.f32 %v3863, %v4422
        %v4424 = vpop.f32.mrb[0].mxu0
        %v4425 = vadd.f32 %v3863, %v4424
        %4426 = vmatprep.mubr.bf16.mxu0 %v4288
        %4427 = vmatmul.mubr.bf16.gmra.mrb[0].mxu0 %v4209
        %v4428 = vpop.f32.mrb[0].mxu0
        %v4429 = vadd.f32 %v3868, %v4428
        %v4430 = vpop.f32.mrb[0].mxu0
        %v4431 = vadd.f32 %v3868, %v4430
        %v4432 = vpop.f32.mrb[0].mxu0
        %v4433 = vadd.f32 %v3873, %v4432
        %v4434 = vpop.f32.mrb[0].mxu0
        %v4435 = vadd.f32 %v3873, %v4434
        %4436 = vmatprep.mubr.bf16.mxu0 %v4291
        %4437 = vmatmul.mubr.bf16.gmra.mrb[0].mxu0 %v4211
        %v4438 = vpop.f32.mrb[0].mxu0
        %v4439 = vadd.f32 %v3878, %v4438
        %v4440 = vpop.f32.mrb[0].mxu0
        %v4441 = vadd.f32 %v3878, %v4440
        %v4442 = vpop.f32.mrb[0].mxu0
        %v4443 = vadd.f32 %v3883, %v4442
        %v4444 = vpop.f32.mrb[0].mxu0
        %v4445 = vadd.f32 %v3883, %v4444
        %4446 = vmatprep.mubr.bf16.mxu0 %v4294
        %4447 = vmatmul.mubr.bf16.gmra.mrb[0].mxu0 %v4213
        %v4448 = vpop.f32.mrb[0].mxu0
        %v4449 = vadd.f32 %v3888, %v4448
        %v4450 = vpop.f32.mrb[0].mxu0
        %v4451 = vadd.f32 %v3888, %v4450
        %v4452 = vpop.f32.mrb[0].mxu0
        %v4453 = vadd.f32 %v3893, %v4452
        %v4454 = vpop.f32.mrb[0].mxu0
        %v4455 = vadd.f32 %v3893, %v4454
        %4456 = vmatprep.mubr.bf16.mxu0 %v4297
        %4457 = vmatmul.mubr.bf16.gmra.mrb[0].mxu0 %v4215
        %v4458 = vpop.f32.mrb[0].mxu0
        %v4459 = vadd.f32 %v3898, %v4458
        %v4460 = vpop.f32.mrb[0].mxu0
        %v4461 = vadd.f32 %v3898, %v4460
        %v4462 = vpop.f32.mrb[0].mxu0
        %v4463 = vadd.f32 %v3903, %v4462
        %v4464 = vpop.f32.mrb[0].mxu0
        %v4465 = vadd.f32 %v3903, %v4464
        %4466 = vmatprep.mubr.bf16.mxu0 %v4300
        %4467 = vmatmul.mubr.bf16.gmra.mrb[0].mxu0 %v4217
        %v4468 = vpop.f32.mrb[0].mxu0
        %v4469 = vadd.f32 %v3908, %v4468
        %v4470 = vpop.f32.mrb[0].mxu0
        %v4471 = vadd.f32 %v3908, %v4470
        %v4472 = vpop.f32.mrb[0].mxu0
        %v4473 = vadd.f32 %v3913, %v4472
        %v4474 = vpop.f32.mrb[0].mxu0
        %v4475 = vadd.f32 %v3913, %v4474
        %4476 = vmatprep.mubr.bf16.mxu0 %v4303
        %4477 = vmatmul.mubr.bf16.gmra.mrb[0].mxu0 %v4219
        %v4478 = vpop.f32.mrb[0].mxu0
        %v4479 = vadd.f32 %v3918, %v4478
        %v4480 = vpop.f32.mrb[0].mxu0
        %v4481 = vadd.f32 %v3918, %v4480
        %v4482 = vpop.f32.mrb[0].mxu0
        %v4483 = vadd.f32 %v3923, %v4482
        %v4484 = vpop.f32.mrb[0].mxu0
        %v4485 = vadd.f32 %v3923, %v4484
        %4486 = vmatprep.mubr.bf16.mxu0 %v4306
        %4487 = vmatmul.mubr.bf16.gmra.mrb[0].mxu0 %v4221
        %v4488 = vpop.f32.mrb[0].mxu0
        %v4489 = vadd.f32 %v3928, %v4488
        %v4490 = vpop.f32.mrb[0].mxu0
        %v4491 = vadd.f32 %v3928, %v4490
        %v4492 = vpop.f32.mrb[0].mxu0
        %v4493 = vadd.f32 %v3933, %v4492
        %v4494 = vpop.f32.mrb[0].mxu0
        %v4495 = vadd.f32 %v3933, %v4494
        %4496 = vmatprep.mubr.bf16.mxu0 %v4309
        %4497 = vmatmul.mubr.bf16.gmra.mrb[0].mxu0 %v4223
        %v4498 = vpop.f32.mrb[0].mxu0
        %v4499 = vadd.f32 %v3938, %v4498
        %v4500 = vpop.f32.mrb[0].mxu0
        %v4501 = vadd.f32 %v3938, %v4500
        %v4502 = vpop.f32.mrb[0].mxu0
        %v4503 = vadd.f32 %v3943, %v4502
        %v4504 = vpop.f32.mrb[0].mxu0
        %v4505 = vadd.f32 %v3943, %v4504
        %4506 = vmatprep.mubr.bf16.mxu0 %v4312
        %4507 = vmatmul.mubr.bf16.gmra.mrb[0].mxu0 %v4225
        %v4508 = vpop.f32.mrb[0].mxu0
        %v4509 = vadd.f32 %v3948, %v4508
        %v4510 = vpop.f32.mrb[0].mxu0
        %v4511 = vadd.f32 %v3948, %v4510
        %v4512 = vpop.f32.mrb[0].mxu0
        %v4513 = vadd.f32 %v3953, %v4512
        %v4514 = vpop.f32.mrb[0].mxu0
        %v4515 = vadd.f32 %v3953, %v4514
        %4516 = vmatprep.mubr.bf16.mxu0 %v4315
        %4517 = vmatmul.mubr.bf16.gmra.mrb[0].mxu0 %v4227
        %v4518 = vpop.f32.mrb[0].mxu0
        %v4519 = vadd.f32 %v3958, %v4518
        %v4520 = vpop.f32.mrb[0].mxu0
        %v4521 = vadd.f32 %v3958, %v4520
        %v4522 = vpop.f32.mrb[0].mxu0
        %v4523 = vadd.f32 %v3963, %v4522
        %v4524 = vpop.f32.mrb[0].mxu0
        %v4525 = vadd.f32 %v3963, %v4524
        %4526 = vmatprep.mubr.bf16.mxu0 %v4318
        %4527 = vmatmul.mubr.bf16.gmra.mrb[0].mxu0 %v4229
        %v4528 = vpop.f32.mrb[0].mxu0
        %v4529 = vadd.f32 %v3968, %v4528
        %v4530 = vpop.f32.mrb[0].mxu0
        %v4531 = vadd.f32 %v3968, %v4530
        %v4532 = vpop.f32.mrb[0].mxu0
        %v4533 = vadd.f32 %v3973, %v4532
        %v4534 = vpop.f32.mrb[0].mxu0
        %v4535 = vadd.f32 %v3973, %v4534
        %4536 = vmatprep.mubr.bf16.mxu0 %v4321
        %4537 = vmatmul.mubr.bf16.gmra.mrb[0].mxu0 %v4231
        %v4538 = vpop.f32.mrb[0].mxu0
        %v4539 = vadd.f32 %v3978, %v4538
        %v4540 = vpop.f32.mrb[0].mxu0
        %v4541 = vadd.f32 %v3978, %v4540
        %v4542 = vpop.f32.mrb[0].mxu0
        %v4543 = vadd.f32 %v3983, %v4542
        %v4544 = vpop.f32.mrb[0].mxu0
        %v4545 = vadd.f32 %v3983, %v4544
        %4546 = vmatprep.mubr.bf16.mxu0 %v4324
        %4547 = vmatmul.mubr.bf16.gmra.mrb[0].mxu0 %v4233
        %v4548 = vpop.f32.mrb[0].mxu0
        %v4549 = vadd.f32 %v3988, %v4548
        %v4550 = vpop.f32.mrb[0].mxu0
        %v4551 = vadd.f32 %v3988, %v4550
        %v4552 = vpop.f32.mrb[0].mxu0
        %v4553 = vadd.f32 %v3993, %v4552
        %v4554 = vpop.f32.mrb[0].mxu0
        %v4555 = vadd.f32 %v3993, %v4554
        %4556 = vmatprep.mubr.bf16.mxu0 %v4327
        %4557 = vmatmul.mubr.bf16.gmra.mrb[0].mxu0 %v4235
        %v4558 = vpop.f32.mrb[0].mxu0
        %v4559 = vadd.f32 %v3998, %v4558
        %v4560 = vpop.f32.mrb[0].mxu0
        %v4561 = vadd.f32 %v3998, %v4560
        %v4562 = vpop.f32.mrb[0].mxu0
        %v4563 = vadd.f32 %v4003, %v4562
        %v4564 = vpop.f32.mrb[0].mxu0
        %v4565 = vadd.f32 %v4003, %v4564
        %4566 = vmatprep.mubr.bf16.mxu0 %v4330
        %4567 = vmatmul.mubr.bf16.gmra.mrb[0].mxu0 %v4237
        %v4568 = vpop.f32.mrb[0].mxu0
        %v4569 = vadd.f32 %v4008, %v4568
        %v4570 = vpop.f32.mrb[0].mxu0
        %v4571 = vadd.f32 %v4008, %v4570
        %v4572 = vpop.f32.mrb[0].mxu0
        %v4573 = vadd.f32 %v4013, %v4572
        %v4574 = vpop.f32.mrb[0].mxu0
        %v4575 = vadd.f32 %v4013, %v4574
        %4576 = vmatprep.mubr.bf16.mxu0 %v4333
        %4577 = vmatmul.mubr.bf16.gmra.mrb[0].mxu0 %v4239
        %v4578 = vpop.f32.mrb[0].mxu0
        %v4579 = vadd.f32 %v4018, %v4578
        %v4580 = vpop.f32.mrb[0].mxu0
        %v4581 = vadd.f32 %v4018, %v4580
        %v4582 = vpop.f32.mrb[0].mxu0
        %v4583 = vadd.f32 %v4023, %v4582
        %v4584 = vpop.f32.mrb[0].mxu0
        %v4585 = vadd.f32 %v4023, %v4584
        %4586 = vmatprep.mubr.bf16.mxu0 %v4336
        %4587 = vmatmul.mubr.bf16.gmra.mrb[0].mxu0 %v4241
        %v4588 = vpop.f32.mrb[0].mxu0
        %v4589 = vadd.f32 %v4028, %v4588
        %v4590 = vpop.f32.mrb[0].mxu0
        %v4591 = vadd.f32 %v4028, %v4590
        %v4592 = vpop.f32.mrb[0].mxu0
        %v4593 = vadd.f32 %v4033, %v4592
        %v4594 = vpop.f32.mrb[0].mxu0
        %v4595 = vadd.f32 %v4033, %v4594
        %4596 = vmatprep.mubr.bf16.mxu0 %v4339
        %4597 = vmatmul.mubr.bf16.gmra.mrb[0].mxu0 %v4243
        %v4598 = vpop.f32.mrb[0].mxu0
        %v4599 = vadd.f32 %v4038, %v4598
        %v4600 = vpop.f32.mrb[0].mxu0
        %v4601 = vadd.f32 %v4038, %v4600
        %v4602 = vpop.f32.mrb[0].mxu0
        %v4603 = vadd.f32 %v4043, %v4602
        %v4604 = vpop.f32.mrb[0].mxu0
        %v4605 = vadd.f32 %v4043, %v4604
        %4606 = vmatprep.mubr.bf16.mxu0 %v4342
        %4607 = vmatmul.mubr.bf16.gmra.mrb[0].mxu0 %v4245
        %v4608 = vpop.f32.mrb[0].mxu0
        %v4609 = vadd.f32 %v4048, %v4608
        %v4610 = vpop.f32.mrb[0].mxu0
        %v4611 = vadd.f32 %v4048, %v4610
        %v4612 = vpop.f32.mrb[0].mxu0
        %v4613 = vadd.f32 %v4053, %v4612
        %v4614 = vpop.f32.mrb[0].mxu0
        %v4615 = vadd.f32 %v4053, %v4614
        %4616 = vdwg.mxu0
        %4617 = vmatprep.subr.bf16.mxu0 0
        %4618 = vmatpush1.bf16.msra.mxu0 %v3685
        %4619 = vmatprep.subr.bf16.mxu0 0
        %4620 = vmatpush1.bf16.msra.mxu0 %v3688
        %4621 = vmatprep.subr.bf16.mxu0 0
        %4622 = vmatpush1.bf16.msra.mxu0 %v3691
        %4623 = vmatprep.subr.bf16.mxu0 0
        %4624 = vmatpush1.bf16.msra.mxu0 %v3694
        %4625 = vmatprep.subr.bf16.mxu0 0
        %4626 = vmatpush1.bf16.msra.mxu0 %v3697
        %4627 = vmatprep.subr.bf16.mxu0 0
        %4628 = vmatpush1.bf16.msra.mxu0 %v3700
        %4629 = vmatprep.subr.bf16.mxu0 0
        %4630 = vmatpush1.bf16.msra.mxu0 %v3703
        %4631 = vmatprep.subr.bf16.mxu0 0
        %4632 = vmatpush1.bf16.msra.mxu0 %v3706
        %4633 = vmatprep.subr.bf16.mxu0 0
        %4634 = vmatpush1.bf16.msra.mxu0 %v3709
        %4635 = vmatprep.subr.bf16.mxu0 0
        %4636 = vmatpush1.bf16.msra.mxu0 %v3712
        %4637 = vmatprep.subr.bf16.mxu0 0
        %4638 = vmatpush1.bf16.msra.mxu0 %v3715
        %4639 = vmatprep.subr.bf16.mxu0 0
        %4640 = vmatpush1.bf16.msra.mxu0 %v3718
        %4641 = vmatprep.subr.bf16.mxu0 0
        %4642 = vmatpush1.bf16.msra.mxu0 0
        %4643 = vmatprep.subr.bf16.mxu0 0
        %4644 = vmatpush1.bf16.msra.mxu0 0
        %4645 = vmatprep.subr.bf16.mxu0 0
        %4646 = vmatpush1.bf16.msra.mxu0 0
        %4647 = vmatprep.subr.bf16.mxu0 0
        %4648 = vmatpush1.bf16.msra.mxu0 0
        %4649 = vmatprep.mubr.bf16.mxu0 %v4273
        %4650 = vmatmul.mubr.bf16.gmra.mrb[0].mxu0 %v4199
        %v4651 = vpop.f32.mrb[0].mxu0
        %v4652 = vadd.f32 %v3818, %v4651
        %v4653 = vpop.f32.mrb[0].mxu0
        %v4654 = vpop.f32.mrb[0].mxu0
        %v4655 = vadd.f32 %v3823, %v4654
        %v4656 = vpop.f32.mrb[0].mxu0
        %4657 = vmatprep.mubr.bf16.mxu0 %v4276
        %4658 = vmatmul.mubr.bf16.gmra.mrb[0].mxu0 %v4201
        %v4659 = vpop.f32.mrb[0].mxu0
        %v4660 = vadd.f32 %v3828, %v4659
        %v4661 = vpop.f32.mrb[0].mxu0
        %v4662 = vpop.f32.mrb[0].mxu0
        %v4663 = vadd.f32 %v3833, %v4662
        %v4664 = vpop.f32.mrb[0].mxu0
        %4665 = vmatprep.mubr.bf16.mxu0 %v4279
        %4666 = vmatmul.mubr.bf16.gmra.mrb[0].mxu0 %v4203
        %v4667 = vpop.f32.mrb[0].mxu0
        %v4668 = vadd.f32 %v3838, %v4667
        %v4669 = vpop.f32.mrb[0].mxu0
        %v4670 = vpop.f32.mrb[0].mxu0
        %v4671 = vadd.f32 %v3843, %v4670
        %v4672 = vpop.f32.mrb[0].mxu0
        %4673 = vmatprep.mubr.bf16.mxu0 %v4282
        %4674 = vmatmul.mubr.bf16.gmra.mrb[0].mxu0 %v4205
        %v4675 = vpop.f32.mrb[0].mxu0
        %v4676 = vadd.f32 %v3848, %v4675
        %v4677 = vpop.f32.mrb[0].mxu0
        %v4678 = vpop.f32.mrb[0].mxu0
        %v4679 = vadd.f32 %v3853, %v4678
        %v4680 = vpop.f32.mrb[0].mxu0
        %4681 = vmatprep.mubr.bf16.mxu0 %v4285
        %4682 = vmatmul.mubr.bf16.gmra.mrb[0].mxu0 %v4207
        %v4683 = vpop.f32.mrb[0].mxu0
        %v4684 = vadd.f32 %v3858, %v4683
        %v4685 = vpop.f32.mrb[0].mxu0
        %v4686 = vpop.f32.mrb[0].mxu0
        %v4687 = vadd.f32 %v3863, %v4686
        %v4688 = vpop.f32.mrb[0].mxu0
        %4689 = vmatprep.mubr.bf16.mxu0 %v4288
        %4690 = vmatmul.mubr.bf16.gmra.mrb[0].mxu0 %v4209
        %v4691 = vpop.f32.mrb[0].mxu0
        %v4692 = vadd.f32 %v3868, %v4691
        %v4693 = vpop.f32.mrb[0].mxu0
        %v4694 = vpop.f32.mrb[0].mxu0
        %v4695 = vadd.f32 %v3873, %v4694
        %v4696 = vpop.f32.mrb[0].mxu0
        %4697 = vmatprep.mubr.bf16.mxu0 %v4291
        %4698 = vmatmul.mubr.bf16.gmra.mrb[0].mxu0 %v4211
        %v4699 = vpop.f32.mrb[0].mxu0
        %v4700 = vadd.f32 %v3878, %v4699
        %v4701 = vpop.f32.mrb[0].mxu0
        %v4702 = vpop.f32.mrb[0].mxu0
        %v4703 = vadd.f32 %v3883, %v4702
        %v4704 = vpop.f32.mrb[0].mxu0
        %4705 = vmatprep.mubr.bf16.mxu0 %v4294
        %4706 = vmatmul.mubr.bf16.gmra.mrb[0].mxu0 %v4213
        %v4707 = vpop.f32.mrb[0].mxu0
        %v4708 = vadd.f32 %v3888, %v4707
        %v4709 = vpop.f32.mrb[0].mxu0
        %v4710 = vpop.f32.mrb[0].mxu0
        %v4711 = vadd.f32 %v3893, %v4710
        %v4712 = vpop.f32.mrb[0].mxu0
        %4713 = vmatprep.mubr.bf16.mxu0 %v4297
        %4714 = vmatmul.mubr.bf16.gmra.mrb[0].mxu0 %v4215
        %v4715 = vpop.f32.mrb[0].mxu0
        %v4716 = vadd.f32 %v3898, %v4715
        %v4717 = vpop.f32.mrb[0].mxu0
        %v4718 = vpop.f32.mrb[0].mxu0
        %v4719 = vadd.f32 %v3903, %v4718
        %v4720 = vpop.f32.mrb[0].mxu0
        %4721 = vmatprep.mubr.bf16.mxu0 %v4300
        %4722 = vmatmul.mubr.bf16.gmra.mrb[0].mxu0 %v4217
        %v4723 = vpop.f32.mrb[0].mxu0
        %v4724 = vadd.f32 %v3908, %v4723
        %v4725 = vpop.f32.mrb[0].mxu0
        %v4726 = vpop.f32.mrb[0].mxu0
        %v4727 = vadd.f32 %v3913, %v4726
        %v4728 = vpop.f32.mrb[0].mxu0
        %4729 = vmatprep.mubr.bf16.mxu0 %v4303
        %4730 = vmatmul.mubr.bf16.gmra.mrb[0].mxu0 %v4219
        %v4731 = vpop.f32.mrb[0].mxu0
        %v4732 = vadd.f32 %v3918, %v4731
        %v4733 = vpop.f32.mrb[0].mxu0
        %v4734 = vpop.f32.mrb[0].mxu0
        %v4735 = vadd.f32 %v3923, %v4734
        %v4736 = vpop.f32.mrb[0].mxu0
        %4737 = vmatprep.mubr.bf16.mxu0 %v4306
        %4738 = vmatmul.mubr.bf16.gmra.mrb[0].mxu0 %v4221
        %v4739 = vpop.f32.mrb[0].mxu0
        %v4740 = vadd.f32 %v3928, %v4739
        %v4741 = vpop.f32.mrb[0].mxu0
        %v4742 = vpop.f32.mrb[0].mxu0
        %v4743 = vadd.f32 %v3933, %v4742
        %v4744 = vpop.f32.mrb[0].mxu0
        %4745 = vmatprep.mubr.bf16.mxu0 %v4309
        %4746 = vmatmul.mubr.bf16.gmra.mrb[0].mxu0 %v4223
        %v4747 = vpop.f32.mrb[0].mxu0
        %v4748 = vadd.f32 %v3938, %v4747
        %v4749 = vpop.f32.mrb[0].mxu0
        %v4750 = vpop.f32.mrb[0].mxu0
        %v4751 = vadd.f32 %v3943, %v4750
        %v4752 = vpop.f32.mrb[0].mxu0
        %4753 = vmatprep.mubr.bf16.mxu0 %v4312
        %4754 = vmatmul.mubr.bf16.gmra.mrb[0].mxu0 %v4225
        %v4755 = vpop.f32.mrb[0].mxu0
        %v4756 = vadd.f32 %v3948, %v4755
        %v4757 = vpop.f32.mrb[0].mxu0
        %v4758 = vpop.f32.mrb[0].mxu0
        %v4759 = vadd.f32 %v3953, %v4758
        %v4760 = vpop.f32.mrb[0].mxu0
        %4761 = vmatprep.mubr.bf16.mxu0 %v4315
        %4762 = vmatmul.mubr.bf16.gmra.mrb[0].mxu0 %v4227
        %v4763 = vpop.f32.mrb[0].mxu0
        %v4764 = vadd.f32 %v3958, %v4763
        %v4765 = vpop.f32.mrb[0].mxu0
        %v4766 = vpop.f32.mrb[0].mxu0
        %v4767 = vadd.f32 %v3963, %v4766
        %v4768 = vpop.f32.mrb[0].mxu0
        %4769 = vmatprep.mubr.bf16.mxu0 %v4318
        %4770 = vmatmul.mubr.bf16.gmra.mrb[0].mxu0 %v4229
        %v4771 = vpop.f32.mrb[0].mxu0
        %v4772 = vadd.f32 %v3968, %v4771
        %v4773 = vpop.f32.mrb[0].mxu0
        %v4774 = vpop.f32.mrb[0].mxu0
        %v4775 = vadd.f32 %v3973, %v4774
        %v4776 = vpop.f32.mrb[0].mxu0
        %4777 = vmatprep.mubr.bf16.mxu0 %v4321
        %4778 = vmatmul.mubr.bf16.gmra.mrb[0].mxu0 %v4231
        %v4779 = vpop.f32.mrb[0].mxu0
        %v4780 = vadd.f32 %v3978, %v4779
        %v4781 = vpop.f32.mrb[0].mxu0
        %v4782 = vpop.f32.mrb[0].mxu0
        %v4783 = vadd.f32 %v3983, %v4782
        %v4784 = vpop.f32.mrb[0].mxu0
        %4785 = vmatprep.mubr.bf16.mxu0 %v4324
        %4786 = vmatmul.mubr.bf16.gmra.mrb[0].mxu0 %v4233
        %v4787 = vpop.f32.mrb[0].mxu0
        %v4788 = vadd.f32 %v3988, %v4787
        %v4789 = vpop.f32.mrb[0].mxu0
        %v4790 = vpop.f32.mrb[0].mxu0
        %v4791 = vadd.f32 %v3993, %v4790
        %v4792 = vpop.f32.mrb[0].mxu0
        %4793 = vmatprep.mubr.bf16.mxu0 %v4327
        %4794 = vmatmul.mubr.bf16.gmra.mrb[0].mxu0 %v4235
        %v4795 = vpop.f32.mrb[0].mxu0
        %v4796 = vadd.f32 %v3998, %v4795
        %v4797 = vpop.f32.mrb[0].mxu0
        %v4798 = vpop.f32.mrb[0].mxu0
        %v4799 = vadd.f32 %v4003, %v4798
        %v4800 = vpop.f32.mrb[0].mxu0
        %4801 = vmatprep.mubr.bf16.mxu0 %v4330
        %4802 = vmatmul.mubr.bf16.gmra.mrb[0].mxu0 %v4237
        %v4803 = vpop.f32.mrb[0].mxu0
        %v4804 = vadd.f32 %v4008, %v4803
        %v4805 = vpop.f32.mrb[0].mxu0
        %v4806 = vpop.f32.mrb[0].mxu0
        %v4807 = vadd.f32 %v4013, %v4806
        %v4808 = vpop.f32.mrb[0].mxu0
        %4809 = vmatprep.mubr.bf16.mxu0 %v4333
        %4810 = vmatmul.mubr.bf16.gmra.mrb[0].mxu0 %v4239
        %v4811 = vpop.f32.mrb[0].mxu0
        %v4812 = vadd.f32 %v4018, %v4811
        %v4813 = vpop.f32.mrb[0].mxu0
        %v4814 = vpop.f32.mrb[0].mxu0
        %v4815 = vadd.f32 %v4023, %v4814
        %v4816 = vpop.f32.mrb[0].mxu0
        %4817 = vmatprep.mubr.bf16.mxu0 %v4336
        %4818 = vmatmul.mubr.bf16.gmra.mrb[0].mxu0 %v4241
        %v4819 = vpop.f32.mrb[0].mxu0
        %v4820 = vadd.f32 %v4028, %v4819
        %v4821 = vpop.f32.mrb[0].mxu0
        %v4822 = vpop.f32.mrb[0].mxu0
        %v4823 = vadd.f32 %v4033, %v4822
        %v4824 = vpop.f32.mrb[0].mxu0
        %4825 = vmatprep.mubr.bf16.mxu0 %v4339
        %4826 = vmatmul.mubr.bf16.gmra.mrb[0].mxu0 %v4243
        %v4827 = vpop.f32.mrb[0].mxu0
        %v4828 = vadd.f32 %v4038, %v4827
        %v4829 = vpop.f32.mrb[0].mxu0
        %v4830 = vpop.f32.mrb[0].mxu0
        %v4831 = vadd.f32 %v4043, %v4830
        %v4832 = vpop.f32.mrb[0].mxu0
        %4833 = vmatprep.mubr.bf16.mxu0 %v4342
        %4834 = vmatmul.mubr.bf16.gmra.mrb[0].mxu0 %v4245
        %v4835 = vpop.f32.mrb[0].mxu0
        %v4836 = vadd.f32 %v4048, %v4835
        %v4837 = vpop.f32.mrb[0].mxu0
        %v4838 = vpop.f32.mrb[0].mxu0
        %v4839 = vadd.f32 %v4053, %v4838
        %v4840 = vpop.f32.mrb[0].mxu0
        %4841 = vdwg.mxu0
        %v4842 = vmul.f32 %v4459, %v4379
        %v4843 = vmul.f32 %v4461, %v4381
        %v4844 = vmul.f32 %v4716, %v4652
        %v4845 = vmul.f32 %v4463, %v4383
        %v4846 = vmul.f32 %v4465, %v4385
        %v4847 = vmul.f32 %v4719, %v4655
        %v4848 = vmul.f32 %v4469, %v4389
        %v4849 = vmul.f32 %v4471, %v4391
        %v4850 = vmul.f32 %v4724, %v4660
        %v4851 = vmul.f32 %v4473, %v4393
        %v4852 = vmul.f32 %v4475, %v4395
        %v4853 = vmul.f32 %v4727, %v4663
        %v4854 = vmul.f32 %v4479, %v4399
        %v4855 = vmul.f32 %v4481, %v4401
        %v4856 = vmul.f32 %v4732, %v4668
        %v4857 = vmul.f32 %v4483, %v4403
        %v4858 = vmul.f32 %v4485, %v4405
        %v4859 = vmul.f32 %v4735, %v4671
        %v4860 = vmul.f32 %v4489, %v4409
        %v4861 = vmul.f32 %v4491, %v4411
        %v4862 = vmul.f32 %v4740, %v4676
        %v4863 = vmul.f32 %v4493, %v4413
        %v4864 = vmul.f32 %v4495, %v4415
        %v4865 = vmul.f32 %v4743, %v4679
        %v4866 = vmul.f32 %v4499, %v4419
        %v4867 = vmul.f32 %v4501, %v4421
        %v4868 = vmul.f32 %v4748, %v4684
        %v4869 = vmul.f32 %v4503, %v4423
        %v4870 = vmul.f32 %v4505, %v4425
        %v4871 = vmul.f32 %v4751, %v4687
        %v4872 = vmul.f32 %v4509, %v4429
        %v4873 = vmul.f32 %v4511, %v4431
        %v4874 = vmul.f32 %v4756, %v4692
        %v4875 = vmul.f32 %v4513, %v4433
        %v4876 = vmul.f32 %v4515, %v4435
        %v4877 = vmul.f32 %v4759, %v4695
        %v4878 = vmul.f32 %v4519, %v4439
        %v4879 = vmul.f32 %v4521, %v4441
        %v4880 = vmul.f32 %v4764, %v4700
        %v4881 = vmul.f32 %v4523, %v4443
        %v4882 = vmul.f32 %v4525, %v4445
        %v4883 = vmul.f32 %v4767, %v4703
        %v4884 = vmul.f32 %v4529, %v4449
        %v4885 = vmul.f32 %v4531, %v4451
        %v4886 = vmul.f32 %v4772, %v4708
        %v4887 = vmul.f32 %v4533, %v4453
        %v4888 = vmul.f32 %v4535, %v4455
        %v4889 = vmul.f32 %v4775, %v4711
        %v4890 = vmul.f32 %v4539, %v4379
        %v4891 = vmul.f32 %v4541, %v4381
        %v4892 = vmul.f32 %v4780, %v4652
        %v4893 = vmul.f32 %v4543, %v4383
        %v4894 = vmul.f32 %v4545, %v4385
        %v4895 = vmul.f32 %v4783, %v4655
        %v4896 = vmul.f32 %v4549, %v4389
        %v4897 = vmul.f32 %v4551, %v4391
        %v4898 = vmul.f32 %v4788, %v4660
        %v4899 = vmul.f32 %v4553, %v4393
        %v4900 = vmul.f32 %v4555, %v4395
        %v4901 = vmul.f32 %v4791, %v4663
        %v4902 = vmul.f32 %v4559, %v4399
        %v4903 = vmul.f32 %v4561, %v4401
        %v4904 = vmul.f32 %v4796, %v4668
        %v4905 = vmul.f32 %v4563, %v4403
        %v4906 = vmul.f32 %v4565, %v4405
        %v4907 = vmul.f32 %v4799, %v4671
        %v4908 = vmul.f32 %v4569, %v4409
        %v4909 = vmul.f32 %v4571, %v4411
        %v4910 = vmul.f32 %v4804, %v4676
        %v4911 = vmul.f32 %v4573, %v4413
        %v4912 = vmul.f32 %v4575, %v4415
        %v4913 = vmul.f32 %v4807, %v4679
        %v4914 = vmul.f32 %v4579, %v4419
        %v4915 = vmul.f32 %v4581, %v4421
        %v4916 = vmul.f32 %v4812, %v4684
        %v4917 = vmul.f32 %v4583, %v4423
        %v4918 = vmul.f32 %v4585, %v4425
        %v4919 = vmul.f32 %v4815, %v4687
        %v4920 = vmul.f32 %v4589, %v4429
        %v4921 = vmul.f32 %v4591, %v4431
        %v4922 = vmul.f32 %v4820, %v4692
        %v4923 = vmul.f32 %v4593, %v4433
        %v4924 = vmul.f32 %v4595, %v4435
        %v4925 = vmul.f32 %v4823, %v4695
        %v4926 = vmul.f32 %v4599, %v4439
        %v4927 = vmul.f32 %v4601, %v4441
        %v4928 = vmul.f32 %v4828, %v4700
        %v4929 = vmul.f32 %v4603, %v4443
        %v4930 = vmul.f32 %v4605, %v4445
        %v4931 = vmul.f32 %v4831, %v4703
        %v4932 = vmul.f32 %v4609, %v4449
        %v4933 = vmul.f32 %v4611, %v4451
        %v4934 = vmul.f32 %v4836, %v4708
        %v4935 = vmul.f32 %v4613, %v4453
        %v4936 = vmul.f32 %v4615, %v4455
        %v4937 = vmul.f32 %v4839, %v4711
        %v4938 = vld [vmem:[%s7] sm:$0xf]
        %v4941 = vunpack.c.l.s4 1983009808
        %v4942 = vunpack.c.0.s8 %v4941
        %v4943 = vlaneseq
        %v4944 = vshrl.u32 %v4943, 7
        %v4945 = vsub.s32 %v4942, %v4944
        %v4946 = vrot.slane %v4938, %v4945
        %v4947 = vcombine.high %v4946, %v4946
        %4950 = vmatprep.subr.mxu0 %v4843
        %4951 = vmatpush1.msra.mxu0 %v4842
        %4952 = vmatprep.subr.mxu0 %v4846
        %4953 = vmatpush1.msra.mxu0 %v4845
        %4954 = vmatprep.subr.mxu0 %v4849
        %4955 = vmatpush1.msra.mxu0 %v4848
        %4956 = vmatprep.subr.mxu0 %v4852
        %4957 = vmatpush1.msra.mxu0 %v4851
        %4958 = vmatprep.subr.mxu0 %v4855
        %4959 = vmatpush1.msra.mxu0 %v4854
        %4960 = vmatprep.subr.mxu0 %v4858
        %4961 = vmatpush1.msra.mxu0 %v4857
        %4962 = vmatprep.subr.mxu0 %v4861
        %4963 = vmatpush1.msra.mxu0 %v4860
        %4964 = vmatprep.subr.mxu0 %v4864
        %4965 = vmatpush1.msra.mxu0 %v4863
        %4966 = vmatprep.subr.mxu0 %v4867
        %4967 = vmatpush1.msra.mxu0 %v4866
        %4968 = vmatprep.subr.mxu0 %v4870
        %4969 = vmatpush1.msra.mxu0 %v4869
        %4970 = vmatprep.subr.mxu0 %v4873
        %4971 = vmatpush1.msra.mxu0 %v4872
        %4972 = vmatprep.subr.mxu0 %v4876
        %4973 = vmatpush1.msra.mxu0 %v4875
        %4974 = vmatprep.subr.mxu0 %v4879
        %4975 = vmatpush1.msra.mxu0 %v4878
        %4976 = vmatprep.subr.mxu0 %v4882
        %4977 = vmatpush1.msra.mxu0 %v4881
        %4978 = vmatprep.subr.mxu0 %v4885
        %4979 = vmatpush1.msra.mxu0 %v4884
        %4980 = vmatprep.subr.mxu0 %v4888
        %4981 = vmatpush1.msra.mxu0 %v4887
        %4982 = vmatprep.subr.mxu0 %v4891
        %4983 = vmatpush1.msra.mxu0 %v4890
        %4984 = vmatprep.subr.mxu0 %v4894
        %4985 = vmatpush1.msra.mxu0 %v4893
        %4986 = vmatprep.subr.mxu0 %v4897
        %4987 = vmatpush1.msra.mxu0 %v4896
        %4988 = vmatprep.subr.mxu0 %v4900
        %4989 = vmatpush1.msra.mxu0 %v4899
        %4990 = vmatprep.subr.mxu0 %v4903
        %4991 = vmatpush1.msra.mxu0 %v4902
        %4992 = vmatprep.subr.mxu0 %v4906
        %4993 = vmatpush1.msra.mxu0 %v4905
        %4994 = vmatprep.subr.mxu0 %v4909
        %4995 = vmatpush1.msra.mxu0 %v4908
        %4996 = vmatprep.subr.mxu0 %v4912
        %4997 = vmatpush1.msra.mxu0 %v4911
        %4998 = vmatprep.subr.mxu0 %v4915
        %4999 = vmatpush1.msra.mxu0 %v4914
        %5000 = vmatprep.subr.mxu0 %v4918
        %5001 = vmatpush1.msra.mxu0 %v4917
        %5002 = vmatprep.subr.mxu0 %v4921
        %5003 = vmatpush1.msra.mxu0 %v4920
        %5004 = vmatprep.subr.mxu0 %v4924
        %5005 = vmatpush1.msra.mxu0 %v4923
        %5006 = vmatprep.subr.mxu0 %v4927
        %5007 = vmatpush1.msra.mxu0 %v4926
        %5008 = vmatprep.subr.mxu0 %v4930
        %5009 = vmatpush1.msra.mxu0 %v4929
        %5010 = vmatprep.subr.mxu0 %v4933
        %5011 = vmatpush1.msra.mxu0 %v4932
        %5012 = vmatprep.subr.mxu0 %v4936
        %5013 = vmatpush1.msra.mxu0 %v4935
        %5014 = vmatprep.mubr.f32.mxu0 %v4947
        %5015 = vmatmul.mubr.f32.gmra.mrb[0].mxu0 %v4946
        %v5016 = vpop.f32.mrb[0].mxu0
        %v5017 = vadd.f32 0.0, %v5016
        %v5018 = vpop.f32.mrb[0].mxu0
        %v5019 = vadd.f32 0.0, %v5018
        %5020 = vdwg.mxu0
        %5021 = vmatprep.subr.mxu0 0.0
        %5022 = vmatpush1.msra.mxu0 %v4844
        %5023 = vmatprep.subr.mxu0 0.0
        %5024 = vmatpush1.msra.mxu0 %v4847
        %5025 = vmatprep.subr.mxu0 0.0
        %5026 = vmatpush1.msra.mxu0 %v4850
        %5027 = vmatprep.subr.mxu0 0.0
        %5028 = vmatpush1.msra.mxu0 %v4853
        %5029 = vmatprep.subr.mxu0 0.0
        %5030 = vmatpush1.msra.mxu0 %v4856
        %5031 = vmatprep.subr.mxu0 0.0
        %5032 = vmatpush1.msra.mxu0 %v4859
        %5033 = vmatprep.subr.mxu0 0.0
        %5034 = vmatpush1.msra.mxu0 %v4862
        %5035 = vmatprep.subr.mxu0 0.0
        %5036 = vmatpush1.msra.mxu0 %v4865
        %5037 = vmatprep.subr.mxu0 0.0
        %5038 = vmatpush1.msra.mxu0 %v4868
        %5039 = vmatprep.subr.mxu0 0.0
        %5040 = vmatpush1.msra.mxu0 %v4871
        %5041 = vmatprep.subr.mxu0 0.0
        %5042 = vmatpush1.msra.mxu0 %v4874
        %5043 = vmatprep.subr.mxu0 0.0
        %5044 = vmatpush1.msra.mxu0 %v4877
        %5045 = vmatprep.subr.mxu0 0.0
        %5046 = vmatpush1.msra.mxu0 %v4880
        %5047 = vmatprep.subr.mxu0 0.0
        %5048 = vmatpush1.msra.mxu0 %v4883
        %5049 = vmatprep.subr.mxu0 0.0
        %5050 = vmatpush1.msra.mxu0 %v4886
        %5051 = vmatprep.subr.mxu0 0.0
        %5052 = vmatpush1.msra.mxu0 %v4889
        %5053 = vmatprep.subr.mxu0 0.0
        %5054 = vmatpush1.msra.mxu0 %v4892
        %5055 = vmatprep.subr.mxu0 0.0
        %5056 = vmatpush1.msra.mxu0 %v4895
        %5057 = vmatprep.subr.mxu0 0.0
        %5058 = vmatpush1.msra.mxu0 %v4898
        %5059 = vmatprep.subr.mxu0 0.0
        %5060 = vmatpush1.msra.mxu0 %v4901
        %5061 = vmatprep.subr.mxu0 0.0
        %5062 = vmatpush1.msra.mxu0 %v4904
        %5063 = vmatprep.subr.mxu0 0.0
        %5064 = vmatpush1.msra.mxu0 %v4907
        %5065 = vmatprep.subr.mxu0 0.0
        %5066 = vmatpush1.msra.mxu0 %v4910
        %5067 = vmatprep.subr.mxu0 0.0
        %5068 = vmatpush1.msra.mxu0 %v4913
        %5069 = vmatprep.subr.mxu0 0.0
        %5070 = vmatpush1.msra.mxu0 %v4916
        %5071 = vmatprep.subr.mxu0 0.0
        %5072 = vmatpush1.msra.mxu0 %v4919
        %5073 = vmatprep.subr.mxu0 0.0
        %5074 = vmatpush1.msra.mxu0 %v4922
        %5075 = vmatprep.subr.mxu0 0.0
        %5076 = vmatpush1.msra.mxu0 %v4925
        %5077 = vmatprep.subr.mxu0 0.0
        %5078 = vmatpush1.msra.mxu0 %v4928
        %5079 = vmatprep.subr.mxu0 0.0
        %5080 = vmatpush1.msra.mxu0 %v4931
        %5081 = vmatprep.subr.mxu0 0.0
        %5082 = vmatpush1.msra.mxu0 %v4934
        %5083 = vmatprep.subr.mxu0 0.0
        %5084 = vmatpush1.msra.mxu0 %v4937
        %5085 = vmatprep.mubr.f32.mxu0 %v4947
        %5086 = vmatmul.mubr.f32.gmra.mrb[0].mxu0 %v4946
        %v5087 = vpop.f32.mrb[0].mxu0
        %v5088 = vadd.f32 0.0, %v5087
        %v5089 = vpop.f32.mrb[0].mxu0
        %5090 = vdwg.mxu0
        %v5094 = vcombine.low %v5017, %v5019
        %v5096 = vunpack.c.l.s4 1983009808
        %v5097 = vunpack.c.0.s8 %v5096
        %v5098 = vlaneseq
        %v5099 = vshrl.u32 %v5098, 7
        %v5100 = vsub.s32 %v5097, %v5099
        %v5101 = vrot.slane %v5094, %v5100
        %v5103 = vunpack.c.l.s4 1983009808
        %v5104 = vunpack.c.0.s8 %v5103
        %v5105 = vlaneseq
        %v5106 = vshrl.u32 %v5105, 7
        %v5107 = vsub.s32 %v5104, %v5106
        %v5108 = vrot.slane %v5088, %v5107
        %v5109 = vcombine.low %v5101, %v5108
        %5111 = vst [vmem:[%s299] sm:$0x3f] %v5109
        %s5112 = sand.u32 %s203, 1
        %s5113 = scalar_lea.sflag [#allocation3], %s5112
        %s5114 = sand.u32 %s203, 1
        %s5115 = smul.addr %s5114, 6
        %s5116 = scalar_lea.vmem [#allocation2], %s5115
        // Predicated region
        $region53: #{deeponet_forward.1} parent=51 // pred_check
          %p5117 = pneg %p213
        $region54: #{deeponet_forward.1} parent=51 // pred_check_branch
          %5119 = sbr.rel (%p5117) target = $region56
        $region55: #{deeponet_forward.1} parent=51 // pred_region
          %s5120 = smul.u32 3, %s22
          %s5122 = ssub.s32 96, 96
          %5123 = vsyncadd %s5113, %s5122
          %s5124 = smul.addr %s5120, 32
          %s5125 = scalar_lea.hbm %s8, %s5124
          %s5127 = sshll.u32 %s5116, 4
          %s5128 = int_to_ptr.vmem [resolvable:$true] %s5127
          %5130 = dma.vmem_to_hbm [thread:$0]  %s5128, 96, %s5125, %s5113
        $region56: #{deeponet_forward.1} parent=51 // pred_fallthru
          _
      $region52: #{deeponet_forward.1} parent=5 // pred_fallthru
        _
      %p5131 = scmp.le.s32.totalorder 2, %s17
      // Predicated region
      $region57: #{deeponet_forward.1} parent=5 // pred_check
        %p5132 = pneg %p5131
      $region58: #{deeponet_forward.1} parent=5 // pred_check_branch
        %5134 = sbr.rel (%p5132) target = $region60
      $region59: #{deeponet_forward.1} parent=5 // pred_region
        %s5135 = ssub.s32 %s17, 2
        // Predicated region
        $region61: #{deeponet_forward.1} parent=59 // pred_check
          %p5136 = pneg %p219
        $region62: #{deeponet_forward.1} parent=59 // pred_check_branch
          %5138 = sbr.rel (%p5136) target = $region64
        $region63: #{deeponet_forward.1} parent=59 // pred_region
          %s5139 = sand.u32 %s204, 1
          %s5140 = scalar_lea.sflag [#allocation3], %s5139
          %s5141 = sand.u32 %s204, 1
          %s5142 = smul.addr %s5141, 6
          %s5143 = scalar_lea.vmem [#allocation2], %s5142
          %5144 = dma.done %s5140, 96
        $region64: #{deeponet_forward.1} parent=59 // pred_fallthru
          _
      $region60: #{deeponet_forward.1} parent=5 // pred_fallthru
        _
    $region6: #{deeponet_forward.1} parent=1 // loop_footer
      %s21 = sadd.s32 1, %s17
    $region7: #{deeponet_forward.1} parent=1 // loop_footer_branch
      %16 = sbr.rel target = $region3
    $region8: #{deeponet_forward.1} parent=1 // loop_exit
      _
    %5145 = vsyncpa [#allocation3], 1
    %s5146 = scalar_lea.sflag [#allocation3], 1
    %5147 = vsyncpa %s5146, 1

</llo_original>
